<compile_context>
chip_gen: v7x
topology: tpu7x:2x2x1
jax: 0.10.0
libtpu: 0.0.40
codegen_flags: <defaults>
</compile_context>

<pallas_src>
import math
from functools import partial

import jax
import jax.numpy as jnp
from jax.experimental import pallas as pl
from jax.experimental.pallas import tpu as pltpu


# ----------------------------- math helpers -----------------------------

_SQRT1_2 = 1.0 / math.sqrt(2.0)


def _erf_approx(x):
    # Abramowitz & Stegun 7.1.26 rational approximation, |abs err| < 1.5e-7.
    # Keeps in-kernel lowering to exp/mul/select only (no lax.erf primitive).
    a1, a2, a3, a4, a5 = (0.254829592, -0.284496736, 1.421413741,
                          -1.453152027, 1.061405429)
    p = 0.3275911
    ax = jnp.abs(x)
    t = 1.0 / (1.0 + p * ax)
    poly = ((((a5 * t + a4) * t + a3) * t + a2) * t + a1) * t
    e = 1.0 - poly * jnp.exp(-ax * ax)
    return jnp.where(x < 0.0, -e, e)


def _gelu_kernel(x):
    # torch.nn.GELU() default = exact erf form; erf via tight poly in-kernel.
    return 0.5 * x * (1.0 + _erf_approx(x * _SQRT1_2))


def _gelu_exact(x):
    return 0.5 * x * (1.0 + jax.lax.erf(x * _SQRT1_2))


def _layernorm(x, g, b, eps):
    mu = jnp.mean(x, axis=-1, keepdims=True)
    xc = x - mu
    var = jnp.mean(xc * xc, axis=-1, keepdims=True)
    return xc * jax.lax.rsqrt(var + eps) * g + b


def _round_up(x, m):
    return (x + m - 1) // m * m


# ----------------------------- packed scalar-row layout -----------------------------

_SCAL_FIELDS = ('ln1_g', 'ln1_b', 'ln2_g', 'ln2_b', 'b_p', 'b_2',
                'mn_g', 'mn_b', 'b_1', 'b_qkv')


def _scal_layout(C, hid):
    sizes = {'ln1_g': C, 'ln1_b': C, 'ln2_g': C, 'ln2_b': C, 'b_p': C,
             'b_2': C, 'mn_g': hid, 'mn_b': hid, 'b_1': hid, 'b_qkv': 3 * C}
    offs, o = {}, 0
    for name in _SCAL_FIELDS:
        offs[name] = (o, o + sizes[name])
        o += sizes[name]
    return offs, o


# ----------------------------- fused block kernel -----------------------------

def _block_kernel(x_ref, scal_ref, wl_ref, wl2_ref, wr_qkv_ref, wr_ref, o_ref,
                  *, num_heads, num_tokens, eps):
    x = x_ref[...]                                   # (B*N, C) token-major slab
    BN, C = x.shape
    N = num_tokens
    B = BN // N
    H = num_heads
    hd = C // H
    hid, r = wl2_ref.shape                           # MLP hidden dim, TT rank

    offs, _ = _scal_layout(C, hid)

    def sc(name):                                    # (1, k) packed scalar row slice
        a, b = offs[name]
        return scal_ref[:, a:b]

    # static lane slices of the packed TT weights
    wl_qkv = wl_ref[:, 0:3 * r]                      # (C, 3r)
    wl_p = wl_ref[:, 3 * r:4 * r]                    # (C, r)
    wl_1 = wl_ref[:, 4 * r:5 * r]                    # (C, r)
    wr_1 = wr_ref[:, 0:hid]                          # (r, hid)  (128-lane aligned)
    wr_p = wr_ref[:, hid:hid + C]                    # (r, C)
    wr_2 = wr_ref[:, hid + C:hid + 2 * C]            # (r, C)

    # ---- attention branch ----
    h = _layernorm(x, sc('ln1_g'), sc('ln1_b'), eps)
    # fused Q/K/V TensorizedLinear: left halves concatenated, right halves
    # block-diagonal.  lat_qkv[:, i*r:(i+1)*r] == inter_res of to_q/to_k/to_v.
    lat_qkv = _gelu_kernel(jnp.dot(h, wl_qkv, preferred_element_type=jnp.float32))
    qkv = jnp.dot(lat_qkv, wr_qkv_ref[...],
                  preferred_element_type=jnp.float32) + sc('b_qkv')       # (BN, 3C)

    scale = 1.0 / math.sqrt(hd)
    a_heads = []
    for hh in range(H):                              # static unroll (H = 4)
        qh = qkv[:, hh * hd:(hh + 1) * hd].reshape(B, N, hd)
        kh = qkv[:, C + hh * hd:C + (hh + 1) * hd].reshape(B, N, hd)
        vh = qkv[:, 2 * C + hh * hd:2 * C + (hh + 1) * hd].reshape(B, N, hd)
        s = jnp.einsum('bqd,bkd->bqk', qh, kh,
                       preferred_element_type=jnp.float32) * scale
        s = s - jnp.max(s, axis=-1, keepdims=True)
        p = jnp.exp(s)
        p = p * pl.reciprocal(jnp.sum(p, axis=-1, keepdims=True), approx=True)
        a_h = jnp.einsum('bqk,bkd->bqd', p, vh, preferred_element_type=jnp.float32)
        a_heads.append(a_h.reshape(BN, hd))
    # concat-heads then ONE K=C left-TT matmul (no per-head accumulation chain)
    a_cat = jnp.concatenate(a_heads, axis=-1)        # (BN, C)

    lat_p = _gelu_kernel(jnp.dot(a_cat, wl_p, preferred_element_type=jnp.float32))
    attn_out = jnp.dot(lat_p, wr_p, preferred_element_type=jnp.float32) + sc('b_p')
    # ls1 / drop_path1 / attn_drop / proj_drop are identity (init_values=None,
    # p=0.0, eval mode).
    # TODO(synk): dropout / DropPath omitted (inference mode, p=0.0)
    x1 = x + attn_out

    # ---- MLP branch ----
    h2 = _layernorm(x1, sc('ln2_g'), sc('ln2_b'), eps)
    lat_1 = _gelu_kernel(jnp.dot(h2, wl_1, preferred_element_type=jnp.float32))
    m1 = jnp.dot(lat_1, wr_1, preferred_element_type=jnp.float32) + sc('b_1')
    m1 = _gelu_kernel(m1)                            # Block-level self.act
    m1 = _layernorm(m1, sc('mn_g'), sc('mn_b'), eps)
    lat_2 = _gelu_kernel(jnp.dot(m1, wl2_ref[...], preferred_element_type=jnp.float32))
    m2 = jnp.dot(lat_2, wr_2, preferred_element_type=jnp.float32) + sc('b_2')
    out = x1 + m2

    # ---- single lane-dense output slab [out | q|k|v|o|m1|m2 latents | pad] ----
    pad = o_ref.shape[1] - (C + 6 * r)
    pieces = [out, lat_qkv, lat_p, lat_1, lat_2]
    if pad > 0:
        pieces.append(jnp.zeros((BN, pad), jnp.float32))
    o_ref[...] = jnp.concatenate(pieces, axis=-1)


# ----------------------------- one-time parameter glue -----------------------------

def prepare_block_params(params):
    """Merge/pack all Block weights into 5 arrays (done ONCE at init)."""
    f32 = jnp.float32
    C = params['to_q']['wl'].shape[0]
    hid = params['fc1']['wr'].shape[1]

    wl_pack = jnp.concatenate(
        [params[n]['wl'] for n in ('to_q', 'to_k', 'to_v', 'proj', 'fc1')],
        axis=1).astype(f32)                                    # (C, 5r)
    wl2 = params['fc2']['wl'].astype(f32)                      # (hid, r)
    wr_qkv = jax.scipy.linalg.block_diag(
        params['to_q']['wr'], params['to_k']['wr'], params['to_v']['wr']
    ).astype(f32)                                              # (3r, 3C)
    wr_pack = jnp.concatenate(
        [params['fc1']['wr'], params['proj']['wr'], params['fc2']['wr']],
        axis=1).astype(f32)                                    # (r, hid + 2C)

    fields = {
        'ln1_g': params['ln1_g'], 'ln1_b': params['ln1_b'],
        'ln2_g': params['ln2_g'], 'ln2_b': params['ln2_b'],
        'b_p': params['proj']['b'], 'b_2': params['fc2']['b'],
        'mn_g': params['mlpnorm_g'], 'mn_b': params['mlpnorm_b'],
        'b_1': params['fc1']['b'],
        'b_qkv': jnp.concatenate([params['to_q']['b'], params['to_k']['b'],
                                  params['to_v']['b']]),
    }
    offs, total = _scal_layout(C, hid)
    for name in _SCAL_FIELDS:
        assert offs[name][1] - offs[name][0] == fields[name].size
    scal = jnp.concatenate(
        [fields[name].astype(f32).reshape(-1) for name in _SCAL_FIELDS]
    ).reshape(1, total)

    return {'scal': scal, 'wl': wl_pack, 'wl2': wl2,
            'wr_qkv': wr_qkv, 'wr': wr_pack}


# ----------------------------- wrapper -----------------------------

@partial(jax.jit, static_argnames=('num_heads',))
def block_forward(x, prepared, *, num_heads):
    B, N, C = x.shape
    r = prepared['wl2'].shape[1]
    out_lanes = _round_up(C + 6 * r, 128)            # 256 -> unmasked stores

    xf = x.reshape(B * N, C).astype(jnp.float32)     # fold batch into rows
    vmem = pl.BlockSpec(memory_space=pltpu.MemorySpace.VMEM)
    packed = pl.pallas_call(
        partial(_block_kernel, num_heads=num_heads, num_tokens=N, eps=1e-5),
        out_shape=jax.ShapeDtypeStruct((B * N, out_lanes), jnp.float32),
        in_specs=[vmem] * 6,
        out_specs=vmem,
    )(xf, prepared['scal'], prepared['wl'], prepared['wl2'],
      prepared['wr_qkv'], prepared['wr'])

    out = packed[:, :C].reshape(B, N, C)
    # [q_res, k_res, v_res, out_res, mlp1_res, mlp2_res], each (B*N, r)
    res = [packed[:, C + i * r: C + (i + 1) * r] for i in range(6)]
    return out, res


# ----------------------------- parameter setup -----------------------------

def make_tt_params(key, middim, ranks):
    """Deterministic 4-core TT-linear parameters, merged into Wl/Wr (glue, once)."""
    m0, m1, m2, m3 = middim
    r1, r2, r3 = ranks
    k0, k1, k2, k3, kb = jax.random.split(key, 5)

    def kaiming(k, shape):
        fan_in = int(math.prod(shape[1:])) if len(shape) > 1 else shape[0]
        return math.sqrt(2.0 / fan_in) * jax.random.normal(k, shape, dtype=jnp.float32)

    c0 = kaiming(k0, (m0, r1))
    c1 = kaiming(k1, (r1, m1, r2))
    c2 = kaiming(k2, (r2, m2, r3))
    c3 = kaiming(k3, (r3, m3))
    # 'abc,bg,gcj->aj' == x_flat @ Wl  with Wl[b*m1+c, j] = sum_g c0[b,g] c1[g,c,j]
    wl = jnp.einsum('bg,gcj->bcj', c0, c1).reshape(m0 * m1, r2)
    # 'aj,jkl,ln->akn' == y @ Wr       with Wr[j, k*m3+n] = sum_l c2[j,k,l] c3[l,n]
    wr = jnp.einsum('jkl,ln->jkn', c2, c3).reshape(r2, m2 * m3)
    b = jax.random.normal(kb, (m2 * m3,), dtype=jnp.float32)
    return {'wl': wl, 'wr': wr, 'b': b}


# ----------------------------- pure-JAX reference -----------------------------

def reference_block(x, params, num_heads):
    """Mirrors the torch Block forward (unfused, per-projection weights, exact erf)."""
    B, N, C = x.shape
    H = num_heads
    hd = C // H
    xf = x.reshape(B * N, C)

    def ln(v, g, b, eps=1e-5):
        mu = v.mean(-1, keepdims=True)
        xc = v - mu
        var = (xc * xc).mean(-1, keepdims=True)
        return xc / jnp.sqrt(var + eps) * g + b

    def tt(name, v):
        p = params[name]
        lat = _gelu_exact(v @ p['wl'])
        return lat @ p['wr'] + p['b'], lat

    h = ln(xf, params['ln1_g'], params['ln1_b'])
    q, _ = tt('to_q', h)
    k, _ = tt('to_k', h)
    v_, _ = tt('to_v', h)

    def heads(t):
        return t.reshape(B, N, H, hd).transpose(0, 2, 1, 3)

    qh, kh, vh = heads(q), heads(k), heads(v_)
    s = jnp.einsum('bhqd,bhkd->bhqk', qh, kh) / math.sqrt(hd)
    p = jax.nn.softmax(s, axis=-1)
    a = jnp.einsum('bhqk,bhkd->bhqd', p, vh).transpose(0, 2, 1, 3).reshape(B * N, C)
    attn_out, _ = tt('proj', a)
    x1 = xf + attn_out

    h2 = ln(x1, params['ln2_g'], params['ln2_b'])
    m1, _ = tt('fc1', h2)
    m1 = _gelu_exact(m1)
    m1 = ln(m1, params['mlpnorm_g'], params['mlpnorm_b'])
    m2, _ = tt('fc2', m1)
    return (x1 + m2).reshape(B, N, C)


# ----------------------------- main -----------------------------

if __name__ == "__main__":
    B, N, C, H = 2, 8, 64, 4
    MLP_HID = 128

    key = jax.random.PRNGKey(0)
    kx, kp = jax.random.split(key)
    x = jax.random.normal(kx, (B, N, C), dtype=jnp.float32)

    ks = jax.random.split(kp, 6)
    attn_middim, attn_ranks = (8, 8, 8, 8), (16, 16, 16)
    params = {
        'ln1_g': jnp.ones((C,), jnp.float32), 'ln1_b': jnp.zeros((C,), jnp.float32),
        'ln2_g': jnp.ones((C,), jnp.float32), 'ln2_b': jnp.zeros((C,), jnp.float32),
        'mlpnorm_g': jnp.ones((MLP_HID,), jnp.float32),
        'mlpnorm_b': jnp.zeros((MLP_HID,), jnp.float32),
        'to_q': make_tt_params(ks[0], attn_middim, attn_ranks),
        'to_k': make_tt_params(ks[1], attn_middim, attn_ranks),
        'to_v': make_tt_params(ks[2], attn_middim, attn_ranks),
        'proj': make_tt_params(ks[3], attn_middim, attn_ranks),
        'fc1': make_tt_params(ks[4], (8, 8, 8, 16), (16, 16, 16)),   # 64 -> 128
        'fc2': make_tt_params(ks[5], (8, 16, 8, 8), (16, 16, 16)),   # 128 -> 64
    }

    prepared = prepare_block_params(params)        # one-time glue, outside hot path
    out, res = block_forward(x, prepared, num_heads=H)
    out = jax.block_until_ready(out)

    assert out.shape == (B, N, C)
    assert len(res) == 6 and all(r.shape == (B * N, 16) for r in res)
    assert bool(jnp.all(jnp.isfinite(out)))

    # tolerance check vs pure-JAX reference (exact softmax divide / erf / unmerged weights)
    ref = reference_block(x, params, num_heads=H)
    rel_err = float(jnp.max(jnp.abs(out - ref)) / (jnp.max(jnp.abs(ref)) + 1e-6))
    assert rel_err < 5e-3, f"mismatch vs reference: rel_err={rel_err}"

    print("KERNEL_OK")
</pallas_src>

<mosaic_0001>
module attributes {stable_mosaic.version = 11 : i64} {
  func.func @_block_kernel(%arg0: memref<16x64xf32, #tpu.memory_space<vmem>>, %arg1: memref<1x960xf32, #tpu.memory_space<vmem>>, %arg2: memref<64x80xf32, #tpu.memory_space<vmem>>, %arg3: memref<128x16xf32, #tpu.memory_space<vmem>>, %arg4: memref<48x192xf32, #tpu.memory_space<vmem>>, %arg5: memref<16x256xf32, #tpu.memory_space<vmem>>, %arg6: memref<16x256xf32, #tpu.memory_space<vmem>>) attributes {dimension_semantics = [], scalar_prefetch = 0 : i64, scratch_operands = 0 : i64, tpu.core_type = #tpu.core_type<tc>} {
    %c0 = arith.constant 0 : index
    %c0_0 = arith.constant 0 : index
    %0 = vector.load %arg0[%c0, %c0_0] : memref<16x64xf32, #tpu.memory_space<vmem>>, vector<16x64xf32>
    %c0_1 = arith.constant 0 : index
    %c0_2 = arith.constant 0 : index
    %1 = vector.load %arg2[%c0_1, %c0_2] : memref<64x80xf32, #tpu.memory_space<vmem>>, vector<64x48xf32>
    %c0_3 = arith.constant 0 : index
    %c48 = arith.constant 48 : index
    %2 = vector.load %arg2[%c0_3, %c48] : memref<64x80xf32, #tpu.memory_space<vmem>>, vector<64x16xf32>
    %c0_4 = arith.constant 0 : index
    %c64 = arith.constant 64 : index
    %3 = vector.load %arg2[%c0_4, %c64] : memref<64x80xf32, #tpu.memory_space<vmem>>, vector<64x16xf32>
    %c0_5 = arith.constant 0 : index
    %c0_6 = arith.constant 0 : index
    %4 = vector.load %arg5[%c0_5, %c0_6] : memref<16x256xf32, #tpu.memory_space<vmem>>, vector<16x128xf32>
    %c0_7 = arith.constant 0 : index
    %c128 = arith.constant 128 : index
    %5 = vector.load %arg5[%c0_7, %c128] : memref<16x256xf32, #tpu.memory_space<vmem>>, vector<16x64xf32>
    %c0_8 = arith.constant 0 : index
    %c192 = arith.constant 192 : index
    %6 = vector.load %arg5[%c0_8, %c192] : memref<16x256xf32, #tpu.memory_space<vmem>>, vector<16x64xf32>
    %c0_9 = arith.constant 0 : index
    %c0_10 = arith.constant 0 : index
    %7 = vector.load %arg1[%c0_9, %c0_10] : memref<1x960xf32, #tpu.memory_space<vmem>>, vector<1x64xf32>
    %c0_11 = arith.constant 0 : index
    %c64_12 = arith.constant 64 : index
    %8 = vector.load %arg1[%c0_11, %c64_12] : memref<1x960xf32, #tpu.memory_space<vmem>>, vector<1x64xf32>
    %cst = arith.constant dense<0.000000e+00> : vector<16xf32>
    %9 = vector.multi_reduction <add>, %0, %cst [1] : vector<16x64xf32> to vector<16xf32>
    %10 = vector.shape_cast %9 : vector<16xf32> to vector<16x1xf32>
    %cst_13 = arith.constant 6.400000e+01 : f32
    %11 = vector.broadcast %cst_13 : f32 to vector<16x1xf32>
    %12 = arith.divf %10, %11 : vector<16x1xf32>
    %13 = vector.broadcast %12 : vector<16x1xf32> to vector<16x64xf32>
    %14 = arith.subf %0, %13 : vector<16x64xf32>
    %15 = arith.mulf %14, %14 : vector<16x64xf32>
    %cst_14 = arith.constant dense<0.000000e+00> : vector<16xf32>
    %16 = vector.multi_reduction <add>, %15, %cst_14 [1] : vector<16x64xf32> to vector<16xf32>
    %17 = vector.shape_cast %16 : vector<16xf32> to vector<16x1xf32>
    %cst_15 = arith.constant 6.400000e+01 : f32
    %18 = vector.broadcast %cst_15 : f32 to vector<16x1xf32>
    %19 = arith.divf %17, %18 : vector<16x1xf32>
    %cst_16 = arith.constant 9.99999974E-6 : f32
    %20 = vector.broadcast %cst_16 : f32 to vector<16x1xf32>
    %21 = arith.addf %19, %20 : vector<16x1xf32>
    %22 = math.rsqrt %21 : vector<16x1xf32>
    %23 = vector.broadcast %22 : vector<16x1xf32> to vector<16x64xf32>
    %24 = arith.mulf %14, %23 : vector<16x64xf32>
    %25 = vector.broadcast %7 : vector<1x64xf32> to vector<16x64xf32>
    %26 = arith.mulf %24, %25 : vector<16x64xf32>
    %27 = vector.broadcast %8 : vector<1x64xf32> to vector<16x64xf32>
    %28 = arith.addf %26, %27 : vector<16x64xf32>
    %cst_17 = arith.constant dense<0.000000e+00> : vector<16x48xf32>
    %29 = tpu.matmul %28, %1, %cst_17 {dimension_numbers = #tpu.dot_dimension_numbers<[1], [0], [0], [1], [0, 0, 1, 1], [], []>} : vector<16x64xf32>, vector<64x48xf32>, vector<16x48xf32> -> vector<16x48xf32>
    %cst_18 = arith.constant 5.000000e-01 : f32
    %30 = vector.broadcast %cst_18 : f32 to vector<16x48xf32>
    %31 = arith.mulf %30, %29 : vector<16x48xf32>
    %cst_19 = arith.constant 0.707106769 : f32
    %32 = vector.broadcast %cst_19 : f32 to vector<16x48xf32>
    %33 = arith.mulf %29, %32 : vector<16x48xf32>
    %34 = math.absf %33 : vector<16x48xf32>
    %cst_20 = arith.constant 0.327591091 : f32
    %35 = vector.broadcast %cst_20 : f32 to vector<16x48xf32>
    %36 = arith.mulf %35, %34 : vector<16x48xf32>
    %cst_21 = arith.constant 1.000000e+00 : f32
    %37 = vector.broadcast %cst_21 : f32 to vector<16x48xf32>
    %38 = arith.addf %37, %36 : vector<16x48xf32>
    %cst_22 = arith.constant 1.000000e+00 : f32
    %39 = vector.broadcast %cst_22 : f32 to vector<16x48xf32>
    %40 = arith.divf %39, %38 : vector<16x48xf32>
    %cst_23 = arith.constant 1.06140542 : f32
    %41 = vector.broadcast %cst_23 : f32 to vector<16x48xf32>
    %42 = arith.mulf %41, %40 : vector<16x48xf32>
    %cst_24 = arith.constant -1.45315206 : f32
    %43 = vector.broadcast %cst_24 : f32 to vector<16x48xf32>
    %44 = arith.addf %42, %43 : vector<16x48xf32>
    %45 = arith.mulf %44, %40 : vector<16x48xf32>
    %cst_25 = arith.constant 1.42141378 : f32
    %46 = vector.broadcast %cst_25 : f32 to vector<16x48xf32>
    %47 = arith.addf %45, %46 : vector<16x48xf32>
    %48 = arith.mulf %47, %40 : vector<16x48xf32>
    %cst_26 = arith.constant -0.284496725 : f32
    %49 = vector.broadcast %cst_26 : f32 to vector<16x48xf32>
    %50 = arith.addf %48, %49 : vector<16x48xf32>
    %51 = arith.mulf %50, %40 : vector<16x48xf32>
    %cst_27 = arith.constant 0.254829586 : f32
    %52 = vector.broadcast %cst_27 : f32 to vector<16x48xf32>
    %53 = arith.addf %51, %52 : vector<16x48xf32>
    %54 = arith.mulf %53, %40 : vector<16x48xf32>
    %cst_28 = arith.constant 0.000000e+00 : f32
    %55 = vector.broadcast %cst_28 : f32 to vector<16x48xf32>
    %56 = arith.subf %55, %34 : vector<16x48xf32>
    %57 = arith.mulf %56, %34 : vector<16x48xf32>
    %58 = math.exp %57 : vector<16x48xf32>
    %59 = arith.mulf %54, %58 : vector<16x48xf32>
    %cst_29 = arith.constant 1.000000e+00 : f32
    %60 = vector.broadcast %cst_29 : f32 to vector<16x48xf32>
    %61 = arith.subf %60, %59 : vector<16x48xf32>
    %cst_30 = arith.constant 0.000000e+00 : f32
    %62 = vector.broadcast %cst_30 : f32 to vector<16x48xf32>
    %63 = arith.cmpf olt, %33, %62 : vector<16x48xf32>
    %cst_31 = arith.constant 0.000000e+00 : f32
    %64 = vector.broadcast %cst_31 : f32 to vector<16x48xf32>
    %65 = arith.subf %64, %61 : vector<16x48xf32>
    %66 = arith.select %63, %65, %61 : vector<16x48xi1>, vector<16x48xf32>
    %cst_32 = arith.constant 1.000000e+00 : f32
    %67 = vector.broadcast %cst_32 : f32 to vector<16x48xf32>
    %68 = arith.addf %67, %66 : vector<16x48xf32>
    %69 = arith.mulf %31, %68 : vector<16x48xf32>
    %c0_33 = arith.constant 0 : index
    %c0_34 = arith.constant 0 : index
    %70 = vector.load %arg4[%c0_33, %c0_34] : memref<48x192xf32, #tpu.memory_space<vmem>>, vector<48x192xf32>
    %cst_35 = arith.constant dense<0.000000e+00> : vector<16x192xf32>
    %71 = tpu.matmul %69, %70, %cst_35 {dimension_numbers = #tpu.dot_dimension_numbers<[1], [0], [0], [1], [0, 0, 1, 1], [], []>} : vector<16x48xf32>, vector<48x192xf32>, vector<16x192xf32> -> vector<16x192xf32>
    %c0_36 = arith.constant 0 : index
    %c768 = arith.constant 768 : index
    %72 = vector.load %arg1[%c0_36, %c768] : memref<1x960xf32, #tpu.memory_space<vmem>>, vector<1x192xf32>
    %73 = vector.broadcast %72 : vector<1x192xf32> to vector<16x192xf32>
    %74 = arith.addf %71, %73 : vector<16x192xf32>
    %75 = vector.extract_strided_slice %74 {offsets = [0, 0], sizes = [16, 16], strides = [1, 1]} : vector<16x192xf32> to vector<16x16xf32>
    %76 = vector.shape_cast %75 : vector<16x16xf32> to vector<2x8x16xf32>
    %77 = vector.extract_strided_slice %74 {offsets = [0, 64], sizes = [16, 16], strides = [1, 1]} : vector<16x192xf32> to vector<16x16xf32>
    %78 = vector.shape_cast %77 : vector<16x16xf32> to vector<2x8x16xf32>
    %79 = vector.extract_strided_slice %74 {offsets = [0, 128], sizes = [16, 16], strides = [1, 1]} : vector<16x192xf32> to vector<16x16xf32>
    %80 = vector.shape_cast %79 : vector<16x16xf32> to vector<2x8x16xf32>
    "tpu.trace_start"() <{level = 10 : i32, message = "bqd,bkd->bqk"}> : () -> ()
    %cst_37 = arith.constant dense<0.000000e+00> : vector<2x8x8xf32>
    %81 = tpu.matmul %76, %78, %cst_37 {dimension_numbers = #tpu.dot_dimension_numbers<[2], [2], [1], [1], [0, 0, 0, 1, 1, 1], [0], [0]>} : vector<2x8x16xf32>, vector<2x8x16xf32>, vector<2x8x8xf32> -> vector<2x8x8xf32>
    "tpu.trace_stop"() : () -> ()
    %cst_38 = arith.constant 2.500000e-01 : f32
    %82 = vector.broadcast %cst_38 : f32 to vector<2x8x8xf32>
    %83 = arith.mulf %81, %82 : vector<2x8x8xf32>
    %cst_39 = arith.constant dense<0xFF800000> : vector<2x8xf32>
    %84 = vector.multi_reduction <maximumf>, %83, %cst_39 [2] : vector<2x8x8xf32> to vector<2x8xf32>
    %85 = vector.shape_cast %84 : vector<2x8xf32> to vector<2x8x1xf32>
    %86 = vector.broadcast %85 : vector<2x8x1xf32> to vector<2x8x8xf32>
    %87 = arith.subf %83, %86 : vector<2x8x8xf32>
    %88 = math.exp %87 : vector<2x8x8xf32>
    %cst_40 = arith.constant dense<0.000000e+00> : vector<2x8xf32>
    %89 = vector.multi_reduction <add>, %88, %cst_40 [2] : vector<2x8x8xf32> to vector<2x8xf32>
    %90 = vector.shape_cast %89 : vector<2x8xf32> to vector<2x8x1xf32>
    %91 = tpu.reciprocal %90 {approx = true} : vector<2x8x1xf32> -> vector<2x8x1xf32>
    %92 = vector.broadcast %91 : vector<2x8x1xf32> to vector<2x8x8xf32>
    %93 = arith.mulf %88, %92 : vector<2x8x8xf32>
    "tpu.trace_start"() <{level = 10 : i32, message = "bqk,bkd->bqd"}> : () -> ()
    %cst_41 = arith.constant dense<0.000000e+00> : vector<2x8x16xf32>
    %94 = tpu.matmul %93, %80, %cst_41 {dimension_numbers = #tpu.dot_dimension_numbers<[2], [1], [1], [2], [0, 0, 0, 1, 1, 2], [0], [0]>} : vector<2x8x8xf32>, vector<2x8x16xf32>, vector<2x8x16xf32> -> vector<2x8x16xf32>
    "tpu.trace_stop"() : () -> ()
    %95 = vector.shape_cast %94 : vector<2x8x16xf32> to vector<16x16xf32>
    %96 = vector.extract_strided_slice %74 {offsets = [0, 16], sizes = [16, 16], strides = [1, 1]} : vector<16x192xf32> to vector<16x16xf32>
    %97 = vector.shape_cast %96 : vector<16x16xf32> to vector<2x8x16xf32>
    %98 = vector.extract_strided_slice %74 {offsets = [0, 80], sizes = [16, 16], strides = [1, 1]} : vector<16x192xf32> to vector<16x16xf32>
    %99 = vector.shape_cast %98 : vector<16x16xf32> to vector<2x8x16xf32>
    %100 = vector.extract_strided_slice %74 {offsets = [0, 144], sizes = [16, 16], strides = [1, 1]} : vector<16x192xf32> to vector<16x16xf32>
    %101 = vector.shape_cast %100 : vector<16x16xf32> to vector<2x8x16xf32>
    "tpu.trace_start"() <{level = 10 : i32, message = "bqd,bkd->bqk"}> : () -> ()
    %cst_42 = arith.constant dense<0.000000e+00> : vector<2x8x8xf32>
    %102 = tpu.matmul %97, %99, %cst_42 {dimension_numbers = #tpu.dot_dimension_numbers<[2], [2], [1], [1], [0, 0, 0, 1, 1, 1], [0], [0]>} : vector<2x8x16xf32>, vector<2x8x16xf32>, vector<2x8x8xf32> -> vector<2x8x8xf32>
    "tpu.trace_stop"() : () -> ()
    %cst_43 = arith.constant 2.500000e-01 : f32
    %103 = vector.broadcast %cst_43 : f32 to vector<2x8x8xf32>
    %104 = arith.mulf %102, %103 : vector<2x8x8xf32>
    %cst_44 = arith.constant dense<0xFF800000> : vector<2x8xf32>
    %105 = vector.multi_reduction <maximumf>, %104, %cst_44 [2] : vector<2x8x8xf32> to vector<2x8xf32>
    %106 = vector.shape_cast %105 : vector<2x8xf32> to vector<2x8x1xf32>
    %107 = vector.broadcast %106 : vector<2x8x1xf32> to vector<2x8x8xf32>
    %108 = arith.subf %104, %107 : vector<2x8x8xf32>
    %109 = math.exp %108 : vector<2x8x8xf32>
    %cst_45 = arith.constant dense<0.000000e+00> : vector<2x8xf32>
    %110 = vector.multi_reduction <add>, %109, %cst_45 [2] : vector<2x8x8xf32> to vector<2x8xf32>
    %111 = vector.shape_cast %110 : vector<2x8xf32> to vector<2x8x1xf32>
    %112 = tpu.reciprocal %111 {approx = true} : vector<2x8x1xf32> -> vector<2x8x1xf32>
    %113 = vector.broadcast %112 : vector<2x8x1xf32> to vector<2x8x8xf32>
    %114 = arith.mulf %109, %113 : vector<2x8x8xf32>
    "tpu.trace_start"() <{level = 10 : i32, message = "bqk,bkd->bqd"}> : () -> ()
    %cst_46 = arith.constant dense<0.000000e+00> : vector<2x8x16xf32>
    %115 = tpu.matmul %114, %101, %cst_46 {dimension_numbers = #tpu.dot_dimension_numbers<[2], [1], [1], [2], [0, 0, 0, 1, 1, 2], [0], [0]>} : vector<2x8x8xf32>, vector<2x8x16xf32>, vector<2x8x16xf32> -> vector<2x8x16xf32>
    "tpu.trace_stop"() : () -> ()
    %116 = vector.shape_cast %115 : vector<2x8x16xf32> to vector<16x16xf32>
    %117 = vector.extract_strided_slice %74 {offsets = [0, 32], sizes = [16, 16], strides = [1, 1]} : vector<16x192xf32> to vector<16x16xf32>
    %118 = vector.shape_cast %117 : vector<16x16xf32> to vector<2x8x16xf32>
    %119 = vector.extract_strided_slice %74 {offsets = [0, 96], sizes = [16, 16], strides = [1, 1]} : vector<16x192xf32> to vector<16x16xf32>
    %120 = vector.shape_cast %119 : vector<16x16xf32> to vector<2x8x16xf32>
    %121 = vector.extract_strided_slice %74 {offsets = [0, 160], sizes = [16, 16], strides = [1, 1]} : vector<16x192xf32> to vector<16x16xf32>
    %122 = vector.shape_cast %121 : vector<16x16xf32> to vector<2x8x16xf32>
    "tpu.trace_start"() <{level = 10 : i32, message = "bqd,bkd->bqk"}> : () -> ()
    %cst_47 = arith.constant dense<0.000000e+00> : vector<2x8x8xf32>
    %123 = tpu.matmul %118, %120, %cst_47 {dimension_numbers = #tpu.dot_dimension_numbers<[2], [2], [1], [1], [0, 0, 0, 1, 1, 1], [0], [0]>} : vector<2x8x16xf32>, vector<2x8x16xf32>, vector<2x8x8xf32> -> vector<2x8x8xf32>
    "tpu.trace_stop"() : () -> ()
    %cst_48 = arith.constant 2.500000e-01 : f32
    %124 = vector.broadcast %cst_48 : f32 to vector<2x8x8xf32>
    %125 = arith.mulf %123, %124 : vector<2x8x8xf32>
    %cst_49 = arith.constant dense<0xFF800000> : vector<2x8xf32>
    %126 = vector.multi_reduction <maximumf>, %125, %cst_49 [2] : vector<2x8x8xf32> to vector<2x8xf32>
    %127 = vector.shape_cast %126 : vector<2x8xf32> to vector<2x8x1xf32>
    %128 = vector.broadcast %127 : vector<2x8x1xf32> to vector<2x8x8xf32>
    %129 = arith.subf %125, %128 : vector<2x8x8xf32>
    %130 = math.exp %129 : vector<2x8x8xf32>
    %cst_50 = arith.constant dense<0.000000e+00> : vector<2x8xf32>
    %131 = vector.multi_reduction <add>, %130, %cst_50 [2] : vector<2x8x8xf32> to vector<2x8xf32>
    %132 = vector.shape_cast %131 : vector<2x8xf32> to vector<2x8x1xf32>
    %133 = tpu.reciprocal %132 {approx = true} : vector<2x8x1xf32> -> vector<2x8x1xf32>
    %134 = vector.broadcast %133 : vector<2x8x1xf32> to vector<2x8x8xf32>
    %135 = arith.mulf %130, %134 : vector<2x8x8xf32>
    "tpu.trace_start"() <{level = 10 : i32, message = "bqk,bkd->bqd"}> : () -> ()
    %cst_51 = arith.constant dense<0.000000e+00> : vector<2x8x16xf32>
    %136 = tpu.matmul %135, %122, %cst_51 {dimension_numbers = #tpu.dot_dimension_numbers<[2], [1], [1], [2], [0, 0, 0, 1, 1, 2], [0], [0]>} : vector<2x8x8xf32>, vector<2x8x16xf32>, vector<2x8x16xf32> -> vector<2x8x16xf32>
    "tpu.trace_stop"() : () -> ()
    %137 = vector.shape_cast %136 : vector<2x8x16xf32> to vector<16x16xf32>
    %138 = vector.extract_strided_slice %74 {offsets = [0, 48], sizes = [16, 16], strides = [1, 1]} : vector<16x192xf32> to vector<16x16xf32>
    %139 = vector.shape_cast %138 : vector<16x16xf32> to vector<2x8x16xf32>
    %140 = vector.extract_strided_slice %74 {offsets = [0, 112], sizes = [16, 16], strides = [1, 1]} : vector<16x192xf32> to vector<16x16xf32>
    %141 = vector.shape_cast %140 : vector<16x16xf32> to vector<2x8x16xf32>
    %142 = vector.extract_strided_slice %74 {offsets = [0, 176], sizes = [16, 16], strides = [1, 1]} : vector<16x192xf32> to vector<16x16xf32>
    %143 = vector.shape_cast %142 : vector<16x16xf32> to vector<2x8x16xf32>
    "tpu.trace_start"() <{level = 10 : i32, message = "bqd,bkd->bqk"}> : () -> ()
    %cst_52 = arith.constant dense<0.000000e+00> : vector<2x8x8xf32>
    %144 = tpu.matmul %139, %141, %cst_52 {dimension_numbers = #tpu.dot_dimension_numbers<[2], [2], [1], [1], [0, 0, 0, 1, 1, 1], [0], [0]>} : vector<2x8x16xf32>, vector<2x8x16xf32>, vector<2x8x8xf32> -> vector<2x8x8xf32>
    "tpu.trace_stop"() : () -> ()
    %cst_53 = arith.constant 2.500000e-01 : f32
    %145 = vector.broadcast %cst_53 : f32 to vector<2x8x8xf32>
    %146 = arith.mulf %144, %145 : vector<2x8x8xf32>
    %cst_54 = arith.constant dense<0xFF800000> : vector<2x8xf32>
    %147 = vector.multi_reduction <maximumf>, %146, %cst_54 [2] : vector<2x8x8xf32> to vector<2x8xf32>
    %148 = vector.shape_cast %147 : vector<2x8xf32> to vector<2x8x1xf32>
    %149 = vector.broadcast %148 : vector<2x8x1xf32> to vector<2x8x8xf32>
    %150 = arith.subf %146, %149 : vector<2x8x8xf32>
    %151 = math.exp %150 : vector<2x8x8xf32>
    %cst_55 = arith.constant dense<0.000000e+00> : vector<2x8xf32>
    %152 = vector.multi_reduction <add>, %151, %cst_55 [2] : vector<2x8x8xf32> to vector<2x8xf32>
    %153 = vector.shape_cast %152 : vector<2x8xf32> to vector<2x8x1xf32>
    %154 = tpu.reciprocal %153 {approx = true} : vector<2x8x1xf32> -> vector<2x8x1xf32>
    %155 = vector.broadcast %154 : vector<2x8x1xf32> to vector<2x8x8xf32>
    %156 = arith.mulf %151, %155 : vector<2x8x8xf32>
    "tpu.trace_start"() <{level = 10 : i32, message = "bqk,bkd->bqd"}> : () -> ()
    %cst_56 = arith.constant dense<0.000000e+00> : vector<2x8x16xf32>
    %157 = tpu.matmul %156, %143, %cst_56 {dimension_numbers = #tpu.dot_dimension_numbers<[2], [1], [1], [2], [0, 0, 0, 1, 1, 2], [0], [0]>} : vector<2x8x8xf32>, vector<2x8x16xf32>, vector<2x8x16xf32> -> vector<2x8x16xf32>
    "tpu.trace_stop"() : () -> ()
    %158 = vector.shape_cast %157 : vector<2x8x16xf32> to vector<16x16xf32>
    %159 = tpu.concatenate %95, %116, %137, %158 in 1 : vector<16x16xf32>, vector<16x16xf32>, vector<16x16xf32>, vector<16x16xf32> -> vector<16x64xf32>
    %cst_57 = arith.constant dense<0.000000e+00> : vector<16x16xf32>
    %160 = tpu.matmul %159, %2, %cst_57 {dimension_numbers = #tpu.dot_dimension_numbers<[1], [0], [0], [1], [0, 0, 1, 1], [], []>} : vector<16x64xf32>, vector<64x16xf32>, vector<16x16xf32> -> vector<16x16xf32>
    %cst_58 = arith.constant 5.000000e-01 : f32
    %161 = vector.broadcast %cst_58 : f32 to vector<16x16xf32>
    %162 = arith.mulf %161, %160 : vector<16x16xf32>
    %cst_59 = arith.constant 0.707106769 : f32
    %163 = vector.broadcast %cst_59 : f32 to vector<16x16xf32>
    %164 = arith.mulf %160, %163 : vector<16x16xf32>
    %165 = math.absf %164 : vector<16x16xf32>
    %cst_60 = arith.constant 0.327591091 : f32
    %166 = vector.broadcast %cst_60 : f32 to vector<16x16xf32>
    %167 = arith.mulf %166, %165 : vector<16x16xf32>
    %cst_61 = arith.constant 1.000000e+00 : f32
    %168 = vector.broadcast %cst_61 : f32 to vector<16x16xf32>
    %169 = arith.addf %168, %167 : vector<16x16xf32>
    %cst_62 = arith.constant 1.000000e+00 : f32
    %170 = vector.broadcast %cst_62 : f32 to vector<16x16xf32>
    %171 = arith.divf %170, %169 : vector<16x16xf32>
    %cst_63 = arith.constant 1.06140542 : f32
    %172 = vector.broadcast %cst_63 : f32 to vector<16x16xf32>
    %173 = arith.mulf %172, %171 : vector<16x16xf32>
    %cst_64 = arith.constant -1.45315206 : f32
    %174 = vector.broadcast %cst_64 : f32 to vector<16x16xf32>
    %175 = arith.addf %173, %174 : vector<16x16xf32>
    %176 = arith.mulf %175, %171 : vector<16x16xf32>
    %cst_65 = arith.constant 1.42141378 : f32
    %177 = vector.broadcast %cst_65 : f32 to vector<16x16xf32>
    %178 = arith.addf %176, %177 : vector<16x16xf32>
    %179 = arith.mulf %178, %171 : vector<16x16xf32>
    %cst_66 = arith.constant -0.284496725 : f32
    %180 = vector.broadcast %cst_66 : f32 to vector<16x16xf32>
    %181 = arith.addf %179, %180 : vector<16x16xf32>
    %182 = arith.mulf %181, %171 : vector<16x16xf32>
    %cst_67 = arith.constant 0.254829586 : f32
    %183 = vector.broadcast %cst_67 : f32 to vector<16x16xf32>
    %184 = arith.addf %182, %183 : vector<16x16xf32>
    %185 = arith.mulf %184, %171 : vector<16x16xf32>
    %cst_68 = arith.constant 0.000000e+00 : f32
    %186 = vector.broadcast %cst_68 : f32 to vector<16x16xf32>
    %187 = arith.subf %186, %165 : vector<16x16xf32>
    %188 = arith.mulf %187, %165 : vector<16x16xf32>
    %189 = math.exp %188 : vector<16x16xf32>
    %190 = arith.mulf %185, %189 : vector<16x16xf32>
    %cst_69 = arith.constant 1.000000e+00 : f32
    %191 = vector.broadcast %cst_69 : f32 to vector<16x16xf32>
    %192 = arith.subf %191, %190 : vector<16x16xf32>
    %cst_70 = arith.constant 0.000000e+00 : f32
    %193 = vector.broadcast %cst_70 : f32 to vector<16x16xf32>
    %194 = arith.cmpf olt, %164, %193 : vector<16x16xf32>
    %cst_71 = arith.constant 0.000000e+00 : f32
    %195 = vector.broadcast %cst_71 : f32 to vector<16x16xf32>
    %196 = arith.subf %195, %192 : vector<16x16xf32>
    %197 = arith.select %194, %196, %192 : vector<16x16xi1>, vector<16x16xf32>
    %cst_72 = arith.constant 1.000000e+00 : f32
    %198 = vector.broadcast %cst_72 : f32 to vector<16x16xf32>
    %199 = arith.addf %198, %197 : vector<16x16xf32>
    %200 = arith.mulf %162, %199 : vector<16x16xf32>
    %cst_73 = arith.constant dense<0.000000e+00> : vector<16x64xf32>
    %201 = tpu.matmul %200, %5, %cst_73 {dimension_numbers = #tpu.dot_dimension_numbers<[1], [0], [0], [1], [0, 0, 1, 1], [], []>} : vector<16x16xf32>, vector<16x64xf32>, vector<16x64xf32> -> vector<16x64xf32>
    %c0_74 = arith.constant 0 : index
    %c256 = arith.constant 256 : index
    %202 = vector.load %arg1[%c0_74, %c256] : memref<1x960xf32, #tpu.memory_space<vmem>>, vector<1x64xf32>
    %203 = vector.broadcast %202 : vector<1x64xf32> to vector<16x64xf32>
    %204 = arith.addf %201, %203 : vector<16x64xf32>
    %205 = arith.addf %0, %204 : vector<16x64xf32>
    %c0_75 = arith.constant 0 : index
    %c128_76 = arith.constant 128 : index
    %206 = vector.load %arg1[%c0_75, %c128_76] : memref<1x960xf32, #tpu.memory_space<vmem>>, vector<1x64xf32>
    %c0_77 = arith.constant 0 : index
    %c192_78 = arith.constant 192 : index
    %207 = vector.load %arg1[%c0_77, %c192_78] : memref<1x960xf32, #tpu.memory_space<vmem>>, vector<1x64xf32>
    %cst_79 = arith.constant dense<0.000000e+00> : vector<16xf32>
    %208 = vector.multi_reduction <add>, %205, %cst_79 [1] : vector<16x64xf32> to vector<16xf32>
    %209 = vector.shape_cast %208 : vector<16xf32> to vector<16x1xf32>
    %cst_80 = arith.constant 6.400000e+01 : f32
    %210 = vector.broadcast %cst_80 : f32 to vector<16x1xf32>
    %211 = arith.divf %209, %210 : vector<16x1xf32>
    %212 = vector.broadcast %211 : vector<16x1xf32> to vector<16x64xf32>
    %213 = arith.subf %205, %212 : vector<16x64xf32>
    %214 = arith.mulf %213, %213 : vector<16x64xf32>
    %cst_81 = arith.constant dense<0.000000e+00> : vector<16xf32>
    %215 = vector.multi_reduction <add>, %214, %cst_81 [1] : vector<16x64xf32> to vector<16xf32>
    %216 = vector.shape_cast %215 : vector<16xf32> to vector<16x1xf32>
    %cst_82 = arith.constant 6.400000e+01 : f32
    %217 = vector.broadcast %cst_82 : f32 to vector<16x1xf32>
    %218 = arith.divf %216, %217 : vector<16x1xf32>
    %cst_83 = arith.constant 9.99999974E-6 : f32
    %219 = vector.broadcast %cst_83 : f32 to vector<16x1xf32>
    %220 = arith.addf %218, %219 : vector<16x1xf32>
    %221 = math.rsqrt %220 : vector<16x1xf32>
    %222 = vector.broadcast %221 : vector<16x1xf32> to vector<16x64xf32>
    %223 = arith.mulf %213, %222 : vector<16x64xf32>
    %224 = vector.broadcast %206 : vector<1x64xf32> to vector<16x64xf32>
    %225 = arith.mulf %223, %224 : vector<16x64xf32>
    %226 = vector.broadcast %207 : vector<1x64xf32> to vector<16x64xf32>
    %227 = arith.addf %225, %226 : vector<16x64xf32>
    %cst_84 = arith.constant dense<0.000000e+00> : vector<16x16xf32>
    %228 = tpu.matmul %227, %3, %cst_84 {dimension_numbers = #tpu.dot_dimension_numbers<[1], [0], [0], [1], [0, 0, 1, 1], [], []>} : vector<16x64xf32>, vector<64x16xf32>, vector<16x16xf32> -> vector<16x16xf32>
    %cst_85 = arith.constant 5.000000e-01 : f32
    %229 = vector.broadcast %cst_85 : f32 to vector<16x16xf32>
    %230 = arith.mulf %229, %228 : vector<16x16xf32>
    %cst_86 = arith.constant 0.707106769 : f32
    %231 = vector.broadcast %cst_86 : f32 to vector<16x16xf32>
    %232 = arith.mulf %228, %231 : vector<16x16xf32>
    %233 = math.absf %232 : vector<16x16xf32>
    %cst_87 = arith.constant 0.327591091 : f32
    %234 = vector.broadcast %cst_87 : f32 to vector<16x16xf32>
    %235 = arith.mulf %234, %233 : vector<16x16xf32>
    %cst_88 = arith.constant 1.000000e+00 : f32
    %236 = vector.broadcast %cst_88 : f32 to vector<16x16xf32>
    %237 = arith.addf %236, %235 : vector<16x16xf32>
    %cst_89 = arith.constant 1.000000e+00 : f32
    %238 = vector.broadcast %cst_89 : f32 to vector<16x16xf32>
    %239 = arith.divf %238, %237 : vector<16x16xf32>
    %cst_90 = arith.constant 1.06140542 : f32
    %240 = vector.broadcast %cst_90 : f32 to vector<16x16xf32>
    %241 = arith.mulf %240, %239 : vector<16x16xf32>
    %cst_91 = arith.constant -1.45315206 : f32
    %242 = vector.broadcast %cst_91 : f32 to vector<16x16xf32>
    %243 = arith.addf %241, %242 : vector<16x16xf32>
    %244 = arith.mulf %243, %239 : vector<16x16xf32>
    %cst_92 = arith.constant 1.42141378 : f32
    %245 = vector.broadcast %cst_92 : f32 to vector<16x16xf32>
    %246 = arith.addf %244, %245 : vector<16x16xf32>
    %247 = arith.mulf %246, %239 : vector<16x16xf32>
    %cst_93 = arith.constant -0.284496725 : f32
    %248 = vector.broadcast %cst_93 : f32 to vector<16x16xf32>
    %249 = arith.addf %247, %248 : vector<16x16xf32>
    %250 = arith.mulf %249, %239 : vector<16x16xf32>
    %cst_94 = arith.constant 0.254829586 : f32
    %251 = vector.broadcast %cst_94 : f32 to vector<16x16xf32>
    %252 = arith.addf %250, %251 : vector<16x16xf32>
    %253 = arith.mulf %252, %239 : vector<16x16xf32>
    %cst_95 = arith.constant 0.000000e+00 : f32
    %254 = vector.broadcast %cst_95 : f32 to vector<16x16xf32>
    %255 = arith.subf %254, %233 : vector<16x16xf32>
    %256 = arith.mulf %255, %233 : vector<16x16xf32>
    %257 = math.exp %256 : vector<16x16xf32>
    %258 = arith.mulf %253, %257 : vector<16x16xf32>
    %cst_96 = arith.constant 1.000000e+00 : f32
    %259 = vector.broadcast %cst_96 : f32 to vector<16x16xf32>
    %260 = arith.subf %259, %258 : vector<16x16xf32>
    %cst_97 = arith.constant 0.000000e+00 : f32
    %261 = vector.broadcast %cst_97 : f32 to vector<16x16xf32>
    %262 = arith.cmpf olt, %232, %261 : vector<16x16xf32>
    %cst_98 = arith.constant 0.000000e+00 : f32
    %263 = vector.broadcast %cst_98 : f32 to vector<16x16xf32>
    %264 = arith.subf %263, %260 : vector<16x16xf32>
    %265 = arith.select %262, %264, %260 : vector<16x16xi1>, vector<16x16xf32>
    %cst_99 = arith.constant 1.000000e+00 : f32
    %266 = vector.broadcast %cst_99 : f32 to vector<16x16xf32>
    %267 = arith.addf %266, %265 : vector<16x16xf32>
    %268 = arith.mulf %230, %267 : vector<16x16xf32>
    %cst_100 = arith.constant dense<0.000000e+00> : vector<16x128xf32>
    %269 = tpu.matmul %268, %4, %cst_100 {dimension_numbers = #tpu.dot_dimension_numbers<[1], [0], [0], [1], [0, 0, 1, 1], [], []>} : vector<16x16xf32>, vector<16x128xf32>, vector<16x128xf32> -> vector<16x128xf32>
    %c0_101 = arith.constant 0 : index
    %c640 = arith.constant 640 : index
    %270 = vector.load %arg1[%c0_101, %c640] : memref<1x960xf32, #tpu.memory_space<vmem>>, vector<1x128xf32>
    %271 = vector.broadcast %270 : vector<1x128xf32> to vector<16x128xf32>
    %272 = arith.addf %269, %271 : vector<16x128xf32>
    %cst_102 = arith.constant 5.000000e-01 : f32
    %273 = vector.broadcast %cst_102 : f32 to vector<16x128xf32>
    %274 = arith.mulf %273, %272 : vector<16x128xf32>
    %cst_103 = arith.constant 0.707106769 : f32
    %275 = vector.broadcast %cst_103 : f32 to vector<16x128xf32>
    %276 = arith.mulf %272, %275 : vector<16x128xf32>
    %277 = math.absf %276 : vector<16x128xf32>
    %cst_104 = arith.constant 0.327591091 : f32
    %278 = vector.broadcast %cst_104 : f32 to vector<16x128xf32>
    %279 = arith.mulf %278, %277 : vector<16x128xf32>
    %cst_105 = arith.constant 1.000000e+00 : f32
    %280 = vector.broadcast %cst_105 : f32 to vector<16x128xf32>
    %281 = arith.addf %280, %279 : vector<16x128xf32>
    %cst_106 = arith.constant 1.000000e+00 : f32
    %282 = vector.broadcast %cst_106 : f32 to vector<16x128xf32>
    %283 = arith.divf %282, %281 : vector<16x128xf32>
    %cst_107 = arith.constant 1.06140542 : f32
    %284 = vector.broadcast %cst_107 : f32 to vector<16x128xf32>
    %285 = arith.mulf %284, %283 : vector<16x128xf32>
    %cst_108 = arith.constant -1.45315206 : f32
    %286 = vector.broadcast %cst_108 : f32 to vector<16x128xf32>
    %287 = arith.addf %285, %286 : vector<16x128xf32>
    %288 = arith.mulf %287, %283 : vector<16x128xf32>
    %cst_109 = arith.constant 1.42141378 : f32
    %289 = vector.broadcast %cst_109 : f32 to vector<16x128xf32>
    %290 = arith.addf %288, %289 : vector<16x128xf32>
    %291 = arith.mulf %290, %283 : vector<16x128xf32>
    %cst_110 = arith.constant -0.284496725 : f32
    %292 = vector.broadcast %cst_110 : f32 to vector<16x128xf32>
    %293 = arith.addf %291, %292 : vector<16x128xf32>
    %294 = arith.mulf %293, %283 : vector<16x128xf32>
    %cst_111 = arith.constant 0.254829586 : f32
    %295 = vector.broadcast %cst_111 : f32 to vector<16x128xf32>
    %296 = arith.addf %294, %295 : vector<16x128xf32>
    %297 = arith.mulf %296, %283 : vector<16x128xf32>
    %cst_112 = arith.constant 0.000000e+00 : f32
    %298 = vector.broadcast %cst_112 : f32 to vector<16x128xf32>
    %299 = arith.subf %298, %277 : vector<16x128xf32>
    %300 = arith.mulf %299, %277 : vector<16x128xf32>
    %301 = math.exp %300 : vector<16x128xf32>
    %302 = arith.mulf %297, %301 : vector<16x128xf32>
    %cst_113 = arith.constant 1.000000e+00 : f32
    %303 = vector.broadcast %cst_113 : f32 to vector<16x128xf32>
    %304 = arith.subf %303, %302 : vector<16x128xf32>
    %cst_114 = arith.constant 0.000000e+00 : f32
    %305 = vector.broadcast %cst_114 : f32 to vector<16x128xf32>
    %306 = arith.cmpf olt, %276, %305 : vector<16x128xf32>
    %cst_115 = arith.constant 0.000000e+00 : f32
    %307 = vector.broadcast %cst_115 : f32 to vector<16x128xf32>
    %308 = arith.subf %307, %304 : vector<16x128xf32>
    %309 = arith.select %306, %308, %304 : vector<16x128xi1>, vector<16x128xf32>
    %cst_116 = arith.constant 1.000000e+00 : f32
    %310 = vector.broadcast %cst_116 : f32 to vector<16x128xf32>
    %311 = arith.addf %310, %309 : vector<16x128xf32>
    %312 = arith.mulf %274, %311 : vector<16x128xf32>
    %c0_117 = arith.constant 0 : index
    %c384 = arith.constant 384 : index
    %313 = vector.load %arg1[%c0_117, %c384] : memref<1x960xf32, #tpu.memory_space<vmem>>, vector<1x128xf32>
    %c0_118 = arith.constant 0 : index
    %c512 = arith.constant 512 : index
    %314 = vector.load %arg1[%c0_118, %c512] : memref<1x960xf32, #tpu.memory_space<vmem>>, vector<1x128xf32>
    %cst_119 = arith.constant dense<0.000000e+00> : vector<16xf32>
    %315 = vector.multi_reduction <add>, %312, %cst_119 [1] : vector<16x128xf32> to vector<16xf32>
    %316 = vector.shape_cast %315 : vector<16xf32> to vector<16x1xf32>
    %cst_120 = arith.constant 1.280000e+02 : f32
    %317 = vector.broadcast %cst_120 : f32 to vector<16x1xf32>
    %318 = arith.divf %316, %317 : vector<16x1xf32>
    %319 = vector.broadcast %318 : vector<16x1xf32> to vector<16x128xf32>
    %320 = arith.subf %312, %319 : vector<16x128xf32>
    %321 = arith.mulf %320, %320 : vector<16x128xf32>
    %cst_121 = arith.constant dense<0.000000e+00> : vector<16xf32>
    %322 = vector.multi_reduction <add>, %321, %cst_121 [1] : vector<16x128xf32> to vector<16xf32>
    %323 = vector.shape_cast %322 : vector<16xf32> to vector<16x1xf32>
    %cst_122 = arith.constant 1.280000e+02 : f32
    %324 = vector.broadcast %cst_122 : f32 to vector<16x1xf32>
    %325 = arith.divf %323, %324 : vector<16x1xf32>
    %cst_123 = arith.constant 9.99999974E-6 : f32
    %326 = vector.broadcast %cst_123 : f32 to vector<16x1xf32>
    %327 = arith.addf %325, %326 : vector<16x1xf32>
    %328 = math.rsqrt %327 : vector<16x1xf32>
    %329 = vector.broadcast %328 : vector<16x1xf32> to vector<16x128xf32>
    %330 = arith.mulf %320, %329 : vector<16x128xf32>
    %331 = vector.broadcast %313 : vector<1x128xf32> to vector<16x128xf32>
    %332 = arith.mulf %330, %331 : vector<16x128xf32>
    %333 = vector.broadcast %314 : vector<1x128xf32> to vector<16x128xf32>
    %334 = arith.addf %332, %333 : vector<16x128xf32>
    %c0_124 = arith.constant 0 : index
    %c0_125 = arith.constant 0 : index
    %335 = vector.load %arg3[%c0_124, %c0_125] : memref<128x16xf32, #tpu.memory_space<vmem>>, vector<128x16xf32>
    %cst_126 = arith.constant dense<0.000000e+00> : vector<16x16xf32>
    %336 = tpu.matmul %334, %335, %cst_126 {dimension_numbers = #tpu.dot_dimension_numbers<[1], [0], [0], [1], [0, 0, 1, 1], [], []>} : vector<16x128xf32>, vector<128x16xf32>, vector<16x16xf32> -> vector<16x16xf32>
    %cst_127 = arith.constant 5.000000e-01 : f32
    %337 = vector.broadcast %cst_127 : f32 to vector<16x16xf32>
    %338 = arith.mulf %337, %336 : vector<16x16xf32>
    %cst_128 = arith.constant 0.707106769 : f32
    %339 = vector.broadcast %cst_128 : f32 to vector<16x16xf32>
    %340 = arith.mulf %336, %339 : vector<16x16xf32>
    %341 = math.absf %340 : vector<16x16xf32>
    %cst_129 = arith.constant 0.327591091 : f32
    %342 = vector.broadcast %cst_129 : f32 to vector<16x16xf32>
    %343 = arith.mulf %342, %341 : vector<16x16xf32>
    %cst_130 = arith.constant 1.000000e+00 : f32
    %344 = vector.broadcast %cst_130 : f32 to vector<16x16xf32>
    %345 = arith.addf %344, %343 : vector<16x16xf32>
    %cst_131 = arith.constant 1.000000e+00 : f32
    %346 = vector.broadcast %cst_131 : f32 to vector<16x16xf32>
    %347 = arith.divf %346, %345 : vector<16x16xf32>
    %cst_132 = arith.constant 1.06140542 : f32
    %348 = vector.broadcast %cst_132 : f32 to vector<16x16xf32>
    %349 = arith.mulf %348, %347 : vector<16x16xf32>
    %cst_133 = arith.constant -1.45315206 : f32
    %350 = vector.broadcast %cst_133 : f32 to vector<16x16xf32>
    %351 = arith.addf %349, %350 : vector<16x16xf32>
    %352 = arith.mulf %351, %347 : vector<16x16xf32>
    %cst_134 = arith.constant 1.42141378 : f32
    %353 = vector.broadcast %cst_134 : f32 to vector<16x16xf32>
    %354 = arith.addf %352, %353 : vector<16x16xf32>
    %355 = arith.mulf %354, %347 : vector<16x16xf32>
    %cst_135 = arith.constant -0.284496725 : f32
    %356 = vector.broadcast %cst_135 : f32 to vector<16x16xf32>
    %357 = arith.addf %355, %356 : vector<16x16xf32>
    %358 = arith.mulf %357, %347 : vector<16x16xf32>
    %cst_136 = arith.constant 0.254829586 : f32
    %359 = vector.broadcast %cst_136 : f32 to vector<16x16xf32>
    %360 = arith.addf %358, %359 : vector<16x16xf32>
    %361 = arith.mulf %360, %347 : vector<16x16xf32>
    %cst_137 = arith.constant 0.000000e+00 : f32
    %362 = vector.broadcast %cst_137 : f32 to vector<16x16xf32>
    %363 = arith.subf %362, %341 : vector<16x16xf32>
    %364 = arith.mulf %363, %341 : vector<16x16xf32>
    %365 = math.exp %364 : vector<16x16xf32>
    %366 = arith.mulf %361, %365 : vector<16x16xf32>
    %cst_138 = arith.constant 1.000000e+00 : f32
    %367 = vector.broadcast %cst_138 : f32 to vector<16x16xf32>
    %368 = arith.subf %367, %366 : vector<16x16xf32>
    %cst_139 = arith.constant 0.000000e+00 : f32
    %369 = vector.broadcast %cst_139 : f32 to vector<16x16xf32>
    %370 = arith.cmpf olt, %340, %369 : vector<16x16xf32>
    %cst_140 = arith.constant 0.000000e+00 : f32
    %371 = vector.broadcast %cst_140 : f32 to vector<16x16xf32>
    %372 = arith.subf %371, %368 : vector<16x16xf32>
    %373 = arith.select %370, %372, %368 : vector<16x16xi1>, vector<16x16xf32>
    %cst_141 = arith.constant 1.000000e+00 : f32
    %374 = vector.broadcast %cst_141 : f32 to vector<16x16xf32>
    %375 = arith.addf %374, %373 : vector<16x16xf32>
    %376 = arith.mulf %338, %375 : vector<16x16xf32>
    %cst_142 = arith.constant dense<0.000000e+00> : vector<16x64xf32>
    %377 = tpu.matmul %376, %6, %cst_142 {dimension_numbers = #tpu.dot_dimension_numbers<[1], [0], [0], [1], [0, 0, 1, 1], [], []>} : vector<16x16xf32>, vector<16x64xf32>, vector<16x64xf32> -> vector<16x64xf32>
    %c0_143 = arith.constant 0 : index
    %c320 = arith.constant 320 : index
    %378 = vector.load %arg1[%c0_143, %c320] : memref<1x960xf32, #tpu.memory_space<vmem>>, vector<1x64xf32>
    %379 = vector.broadcast %378 : vector<1x64xf32> to vector<16x64xf32>
    %380 = arith.addf %377, %379 : vector<16x64xf32>
    %381 = arith.addf %205, %380 : vector<16x64xf32>
    %cst_144 = arith.constant 0.000000e+00 : f32
    %382 = vector.broadcast %cst_144 : f32 to vector<16x96xf32>
    %383 = tpu.concatenate %381, %69, %200, %268, %376, %382 in 1 : vector<16x64xf32>, vector<16x48xf32>, vector<16x16xf32>, vector<16x16xf32>, vector<16x16xf32>, vector<16x96xf32> -> vector<16x256xf32>
    %c0_145 = arith.constant 0 : index
    %c0_146 = arith.constant 0 : index
    %384 = vector.load %arg6[%c0_145, %c0_146] : memref<16x256xf32, #tpu.memory_space<vmem>>, vector<16x256xf32>
    tpu.vector_store %arg6[%c0_145, %c0_146], %383 {strides = array<i32>} : memref<16x256xf32, #tpu.memory_space<vmem>>, vector<16x256xf32>,
    return
  }
}

</mosaic_0001>

<llo_original>
// kernel: block_forward.1
$region0: #{block_forward.1}
  #allocation0 [shape = 'u32[]', space=smem, size = 0x4, offset = 0x4, fixed_abs, tag = 'smem constant byte address 0x4 - core index']
  #allocation1 [shape = 'u32[144,128]{1,0:T(1,128)}', space=vmem, size = 0x12000, scoped, tag = 'internal scratch']
  %s0 = inlined_call_operand.hbm [shape: f32[16,64], index: 0, kind: input, shape index: {}]
  %s1 = inlined_call_operand.hbm [shape: f32[1,960], index: 1, kind: input, shape index: {}]
  %s2 = inlined_call_operand.vmem [shape: f32[64,80], index: 2, kind: input, shape index: {}]
  %s3 = inlined_call_operand.vmem [shape: f32[128,16], index: 3, kind: input, shape index: {}]
  %s4 = inlined_call_operand.vmem [shape: f32[48,192], index: 4, kind: input, shape index: {}]
  %s5 = inlined_call_operand.hbm [shape: f32[16,256], index: 5, kind: input, shape index: {}]
  %s6 = inlined_call_operand.vmem [shape: f32[16,256], index: 6, kind: output, shape index: {}]
  %s7 = sld [smem:[#allocation0]]
  $region46: #{block_forward.1} parent=0
    _
  %s9 = ssub.s32 1, %s7
  %s10 = scalar_select 0, %s9, %s7
  $region1: #{block_forward.1} parent=0
    #allocation2 [shape = 'u8[8192]{0}', space=vmem, size = 0x2000, scoped, tag = 'input window, operand 0, single buffered']
    #allocation3 [shape = 's32[1]{0}', space=sflag, size = 0x4, scoped, tag = 'scoped memory for block_forward.1']
    #allocation4 [shape = 'u8[4096]{0}', space=vmem, size = 0x1000, scoped, tag = 'input window, operand 1, single buffered']
    #allocation5 [shape = 's32[1]{0}', space=sflag, size = 0x4, scoped, tag = 'scoped memory for block_forward.1']
    #allocation6 [shape = 'u8[16384]{0}', space=vmem, size = 0x4000, scoped, tag = 'input window, operand 5, single buffered']
    %11 = vsyncpa [#allocation3], 0
    %12 = vsyncpa [#allocation5], 0
    // Predicated region
    $region2: #{block_forward.1} parent=1 // pred_check
      _
    $region3: #{block_forward.1} parent=1 // pred_check_branch
      %14 = sbr.rel (0) target = $region5
    $region4: #{block_forward.1} parent=1 // pred_region
      %s16 = ssub.s32 256, 256
      %17 = vsyncadd [#allocation3], %s16
      %s18 = sshll.u32 [#allocation2], 4
      %s19 = int_to_ptr.vmem [resolvable:$true] %s18
      %24 = dma.hbm_to_vmem [thread:$0]  %s0, 256, %s19, [#allocation3], 128, 128, 8
    $region5: #{block_forward.1} parent=1 // pred_fallthru
      _
    // Predicated region
    $region6: #{block_forward.1} parent=1 // pred_check
      _
    $region7: #{block_forward.1} parent=1 // pred_check_branch
      %26 = sbr.rel (0) target = $region9
    $region8: #{block_forward.1} parent=1 // pred_region
      %s28 = ssub.s32 128, 128
      %29 = vsyncadd [#allocation5], %s28
      %s31 = sshll.u32 [#allocation4], 4
      %s32 = int_to_ptr.vmem [resolvable:$true] %s31
      %34 = dma.hbm_to_vmem [thread:$0]  %s1, 128, %s32, [#allocation5]
    $region9: #{block_forward.1} parent=1 // pred_fallthru
      _
    // Predicated region
    $region10: #{block_forward.1} parent=1 // pred_check
      _
    $region11: #{block_forward.1} parent=1 // pred_check_branch
      %36 = sbr.rel (0) target = $region13
    $region12: #{block_forward.1} parent=1 // pred_region
      _
    $region13: #{block_forward.1} parent=1 // pred_fallthru
      _
    // Predicated region
    $region14: #{block_forward.1} parent=1 // pred_check
      _
    $region15: #{block_forward.1} parent=1 // pred_check_branch
      %38 = sbr.rel (0) target = $region17
    $region16: #{block_forward.1} parent=1 // pred_region
      _
    $region17: #{block_forward.1} parent=1 // pred_fallthru
      _
    // Predicated region
    $region18: #{block_forward.1} parent=1 // pred_check
      _
    $region19: #{block_forward.1} parent=1 // pred_check_branch
      %40 = sbr.rel (0) target = $region21
    $region20: #{block_forward.1} parent=1 // pred_region
      _
    $region21: #{block_forward.1} parent=1 // pred_fallthru
      _
    // Predicated region
    $region22: #{block_forward.1} parent=1 // pred_check
      _
    $region23: #{block_forward.1} parent=1 // pred_check_branch
      %42 = sbr.rel (0) target = $region25
    $region24: #{block_forward.1} parent=1 // pred_region
      %s44 = ssub.s32 512, 512
      %45 = vsyncadd [#allocation5], %s44
      %s46 = sshll.u32 [#allocation6], 4
      %s47 = int_to_ptr.vmem [resolvable:$true] %s46
      %52 = dma.hbm_to_vmem [thread:$0]  %s5, 512, %s47, [#allocation5], 256, 256, 16
    $region25: #{block_forward.1} parent=1 // pred_fallthru
      _
    // Predicated region
    $region26: #{block_forward.1} parent=1 // pred_check
      _
    $region27: #{block_forward.1} parent=1 // pred_check_branch
      %54 = sbr.rel (0) target = $region29
    $region28: #{block_forward.1} parent=1 // pred_region
      %55 = dma.done [#allocation3], 256
    $region29: #{block_forward.1} parent=1 // pred_fallthru
      _
    // Predicated region
    $region30: #{block_forward.1} parent=1 // pred_check
      _
    $region31: #{block_forward.1} parent=1 // pred_check_branch
      %57 = sbr.rel (0) target = $region33
    $region32: #{block_forward.1} parent=1 // pred_region
      %58 = dma.done [#allocation5], 128
    $region33: #{block_forward.1} parent=1 // pred_fallthru
      _
    // Predicated region
    $region34: #{block_forward.1} parent=1 // pred_check
      _
    $region35: #{block_forward.1} parent=1 // pred_check_branch
      %60 = sbr.rel (0) target = $region37
    $region36: #{block_forward.1} parent=1 // pred_region
      %61 = dma.done [#allocation5], 512
    $region37: #{block_forward.1} parent=1 // pred_fallthru
      _
    %v62 = vld [vmem:[#allocation2] sm:$0xff]
    %v63 = vld [vmem:[#allocation2 + $0x8] sm:$0xff]
    %v64 = vld [vmem:[%s2] sm:$0xff]
    %v65 = vld [vmem:[%s2 + $0x8] sm:$0xff]
    %v66 = vld [vmem:[%s2 + $0x10] sm:$0xff]
    %v67 = vld [vmem:[%s2 + $0x18] sm:$0xff]
    %v68 = vld [vmem:[%s2 + $0x20] sm:$0xff]
    %v69 = vld [vmem:[%s2 + $0x28] sm:$0xff]
    %v70 = vld [vmem:[%s2 + $0x30] sm:$0xff]
    %v71 = vld [vmem:[%s2 + $0x38] sm:$0xff]
    %v72 = vld [vmem:[#allocation6] sm:$0xff]
    %v73 = vld [vmem:[#allocation6 + $0x10] sm:$0xff]
    %v74 = vld [vmem:[#allocation6 + $0x8] sm:$0xff]
    %v75 = vld [vmem:[#allocation6 + $0x18] sm:$0xff]
    %v76 = vld [vmem:[#allocation4] sm:$0x1]
    %vm77 = vcmask 523264
    %v78 = vsel %vm77, %v62, 0.0
    %79 = vadd.xlane.f32.xlu0 %v78
    %v80 = vpop.xlane.xlu0 %79
    %v81 = vsel %vm77, %v63, 0.0
    %82 = vadd.xlane.f32.xlu0 %v81
    %v83 = vpop.xlane.xlu0 %82
    %v84 = vrcp.pop 64.0
    %v85 = vmul.f32 %v80, %v84
    %v86 = vmul.f32 %v83, %v84
    %v87 = vsub.f32 %v62, %v85
    %v88 = vsub.f32 %v63, %v86
    %v89 = vmul.f32 %v87, %v87
    %v90 = vmul.f32 %v88, %v88
    %v91 = vsel %vm77, %v89, 0.0
    %92 = vadd.xlane.f32.xlu0 %v91
    %v93 = vpop.xlane.xlu0 %92
    %v94 = vsel %vm77, %v90, 0.0
    %95 = vadd.xlane.f32.xlu0 %v94
    %v96 = vpop.xlane.xlu0 %95
    %v97 = vmul.f32 %v93, %v84
    %v98 = vmul.f32 %v96, %v84
    %v99 = vadd.f32 %v97, 1e-05
    %v100 = vadd.f32 %v98, 1e-05
    %v101 = vrsqrt.pop %v99
    %v102 = vrsqrt.pop %v100
    %v103 = vmul.f32 %v87, %v101
    %v104 = vmul.f32 %v88, %v102
    %v106 = vlaneseq
    %v107 = vshrl.u32 %v106, 7
    %v108 = vsub.s32 0, %v107
    %v109 = vrot.slane %v76, %v108
    %v111 = vmul.f32 %v103, %v109
    %v112 = vmul.f32 %v104, %v109
    %113 = vrot.lane.b32.xlu0 %v109, 64
    %v114 = vpop.permute.xlu0 %113
    %v116 = vadd.f32 %v111, %v114
    %v117 = vadd.f32 %v112, %v114
    %v119 = vsel %vm77, %v116, 0
    %v122 = vsel %vm77, %v117, 0
    %124 = vmatprep.subr.mxu0 0.0
    %125 = vmatpush1.msra.mxu0 %v64
    %126 = vmatprep.subr.mxu0 0.0
    %127 = vmatpush1.msra.mxu0 %v65
    %128 = vmatprep.subr.mxu0 0.0
    %129 = vmatpush1.msra.mxu0 %v66
    %130 = vmatprep.subr.mxu0 0.0
    %131 = vmatpush1.msra.mxu0 %v67
    %132 = vmatprep.subr.mxu0 0.0
    %133 = vmatpush1.msra.mxu0 %v68
    %134 = vmatprep.subr.mxu0 0.0
    %135 = vmatpush1.msra.mxu0 %v69
    %136 = vmatprep.subr.mxu0 0.0
    %137 = vmatpush1.msra.mxu0 %v70
    %138 = vmatprep.subr.mxu0 0.0
    %139 = vmatpush1.msra.mxu0 %v71
    %140 = vmatprep.subr.mxu0 0.0
    %141 = vmatpush1.msra.mxu0 0.0
    %142 = vmatprep.subr.mxu0 0.0
    %143 = vmatpush1.msra.mxu0 0.0
    %144 = vmatprep.subr.mxu0 0.0
    %145 = vmatpush1.msra.mxu0 0.0
    %146 = vmatprep.subr.mxu0 0.0
    %147 = vmatpush1.msra.mxu0 0.0
    %148 = vmatprep.subr.mxu0 0.0
    %149 = vmatpush1.msra.mxu0 0.0
    %150 = vmatprep.subr.mxu0 0.0
    %151 = vmatpush1.msra.mxu0 0.0
    %152 = vmatprep.subr.mxu0 0.0
    %153 = vmatpush1.msra.mxu0 0.0
    %154 = vmatprep.subr.mxu0 0.0
    %155 = vmatpush1.msra.mxu0 0.0
    %156 = vmatprep.subr.mxu0 0.0
    %157 = vmatpush1.msra.mxu0 0.0
    %158 = vmatprep.subr.mxu0 0.0
    %159 = vmatpush1.msra.mxu0 0.0
    %160 = vmatprep.subr.mxu0 0.0
    %161 = vmatpush1.msra.mxu0 0.0
    %162 = vmatprep.subr.mxu0 0.0
    %163 = vmatpush1.msra.mxu0 0.0
    %164 = vmatprep.subr.mxu0 0.0
    %165 = vmatpush1.msra.mxu0 0.0
    %166 = vmatprep.subr.mxu0 0.0
    %167 = vmatpush1.msra.mxu0 0.0
    %168 = vmatprep.subr.mxu0 0.0
    %169 = vmatpush1.msra.mxu0 0.0
    %170 = vmatprep.subr.mxu0 0.0
    %171 = vmatpush1.msra.mxu0 0.0
    %172 = vmatprep.subr.mxu0 0.0
    %173 = vmatpush1.msra.mxu0 0.0
    %174 = vmatprep.subr.mxu0 0.0
    %175 = vmatpush1.msra.mxu0 0.0
    %176 = vmatprep.subr.mxu0 0.0
    %177 = vmatpush1.msra.mxu0 0.0
    %178 = vmatprep.subr.mxu0 0.0
    %179 = vmatpush1.msra.mxu0 0.0
    %180 = vmatprep.subr.mxu0 0.0
    %181 = vmatpush1.msra.mxu0 0.0
    %182 = vmatprep.subr.mxu0 0.0
    %183 = vmatpush1.msra.mxu0 0.0
    %184 = vmatprep.subr.mxu0 0.0
    %185 = vmatpush1.msra.mxu0 0.0
    %186 = vmatprep.subr.mxu0 0.0
    %187 = vmatpush1.msra.mxu0 0.0
    %188 = vmatprep.mubr.f32.mxu0 0.0
    %189 = vmatmul.mubr.f32.gmra.mrb[0].mxu0 %v119
    %v190 = vpop.f32.mrb[0].mxu0
    %v191 = vadd.f32 0.0, %v190
    %v192 = vpop.f32.mrb[0].mxu0
    %193 = vmatprep.mubr.f32.mxu0 0.0
    %194 = vmatmul.mubr.f32.gmra.mrb[0].mxu0 %v122
    %v195 = vpop.f32.mrb[0].mxu0
    %v196 = vadd.f32 0.0, %v195
    %v197 = vpop.f32.mrb[0].mxu0
    %198 = vdwg.mxu0
    %v199 = vmul.f32 %v191, 0.5
    %v200 = vmul.f32 %v196, 0.5
    %v201 = vmul.f32 %v191, 0.70710677
    %v202 = vmul.f32 %v196, 0.70710677
    %v203 = vand.u32 2147483647, %v201
    %v204 = vand.u32 2147483647, %v202
    %v205 = vmul.f32 %v203, 0.3275911
    %v206 = vmul.f32 %v204, 0.3275911
    %v207 = vadd.f32 %v205, 1.0
    %v208 = vadd.f32 %v206, 1.0
    %v209 = vrcp.pop %v207
    %v210 = vmul.f32 1.0, %v209
    %v211 = vrcp.pop %v208
    %v212 = vmul.f32 1.0, %v211
    %v213 = vmul.f32 %v210, 1.0614054
    %v214 = vmul.f32 %v212, 1.0614054
    %v215 = vadd.f32 %v213, -1.4531521
    %v216 = vadd.f32 %v214, -1.4531521
    %v217 = vmul.f32 %v215, %v210
    %v218 = vmul.f32 %v216, %v212
    %v219 = vadd.f32 %v217, 1.4214138
    %v220 = vadd.f32 %v218, 1.4214138
    %v221 = vmul.f32 %v219, %v210
    %v222 = vmul.f32 %v220, %v212
    %v223 = vadd.f32 %v221, -0.28449672
    %v224 = vadd.f32 %v222, -0.28449672
    %v225 = vmul.f32 %v223, %v210
    %v226 = vmul.f32 %v224, %v212
    %v227 = vadd.f32 %v225, 0.2548296
    %v228 = vadd.f32 %v226, 0.2548296
    %v229 = vmul.f32 %v227, %v210
    %v230 = vmul.f32 %v228, %v212
    %v231 = vsub.f32 0.0, %v203
    %v232 = vsub.f32 0.0, %v204
    %v233 = vmul.f32 %v231, %v203
    %v234 = vmul.f32 %v232, %v204
    %v235 = vmul.f32 %v233, 1.442695
    %v236 = vpow.pop %v235
    %v237 = vmul.f32 %v234, 1.442695
    %v238 = vpow.pop %v237
    %v239 = vmul.f32 %v229, %v236
    %v240 = vmul.f32 %v230, %v238
    %v241 = vsub.f32 1.0, %v239
    %v242 = vsub.f32 1.0, %v240
    %vm243 = vcmp.lt.f32.partialorder %v201, 0.0
    %vm244 = vcmp.lt.f32.partialorder %v202, 0.0
    %v245 = vsub.f32 0.0, %v241
    %v246 = vsub.f32 0.0, %v242
    %v247 = vsel %vm243, %v245, %v241
    %v248 = vsel %vm244, %v246, %v242
    %v249 = vadd.f32 %v247, 1.0
    %v250 = vadd.f32 %v248, 1.0
    %v251 = vmul.f32 %v199, %v249
    %v252 = vmul.f32 %v200, %v250
    %v253 = vld [vmem:[%s4] sm:$0xff]
    %v254 = vld [vmem:[%s4 + $0x8] sm:$0xff]
    %v255 = vld [vmem:[%s4 + $0x10] sm:$0xff]
    %v256 = vld [vmem:[%s4 + $0x18] sm:$0xff]
    %v257 = vld [vmem:[%s4 + $0x20] sm:$0xff]
    %v258 = vld [vmem:[%s4 + $0x28] sm:$0xff]
    %v259 = vld [vmem:[%s4 + $0x30] sm:$0xff]
    %v260 = vld [vmem:[%s4 + $0x38] sm:$0xff]
    %v261 = vld [vmem:[%s4 + $0x40] sm:$0xff]
    %v262 = vld [vmem:[%s4 + $0x48] sm:$0xff]
    %v263 = vld [vmem:[%s4 + $0x50] sm:$0xff]
    %v264 = vld [vmem:[%s4 + $0x58] sm:$0xff]
    %v265 = vld [vmem:[#allocation4 + $0x6] sm:$0x3]
    %v267 = vlaneseq
    %v268 = vshrl.u32 %v267, 7
    %v269 = vsub.s32 0, %v268
    %v270 = vrot.slane %v265, %v269
    %v271 = vlaneseq
    %v272 = vshrl.u32 %v271, 7
    %v273 = vsub.s32 1, %v272
    %v274 = vrot.slane %v265, %v273
    %vm277 = vcmask 392192
    %v279 = vsel %vm277, %v251, 0
    %v282 = vsel %vm277, %v252, 0
    %284 = vmatprep.subr.mxu0 %v254
    %285 = vmatpush1.msra.mxu0 %v253
    %286 = vmatprep.subr.mxu0 %v256
    %287 = vmatpush1.msra.mxu0 %v255
    %288 = vmatprep.subr.mxu0 %v258
    %289 = vmatpush1.msra.mxu0 %v257
    %290 = vmatprep.subr.mxu0 %v260
    %291 = vmatpush1.msra.mxu0 %v259
    %292 = vmatprep.subr.mxu0 %v262
    %293 = vmatpush1.msra.mxu0 %v261
    %294 = vmatprep.subr.mxu0 %v264
    %295 = vmatpush1.msra.mxu0 %v263
    %296 = vmatprep.subr.mxu0 0.0
    %297 = vmatpush1.msra.mxu0 0.0
    %298 = vmatprep.subr.mxu0 0.0
    %299 = vmatpush1.msra.mxu0 0.0
    %300 = vmatprep.subr.mxu0 0.0
    %301 = vmatpush1.msra.mxu0 0.0
    %302 = vmatprep.subr.mxu0 0.0
    %303 = vmatpush1.msra.mxu0 0.0
    %304 = vmatprep.subr.mxu0 0.0
    %305 = vmatpush1.msra.mxu0 0.0
    %306 = vmatprep.subr.mxu0 0.0
    %307 = vmatpush1.msra.mxu0 0.0
    %308 = vmatprep.subr.mxu0 0.0
    %309 = vmatpush1.msra.mxu0 0.0
    %310 = vmatprep.subr.mxu0 0.0
    %311 = vmatpush1.msra.mxu0 0.0
    %312 = vmatprep.subr.mxu0 0.0
    %313 = vmatpush1.msra.mxu0 0.0
    %314 = vmatprep.subr.mxu0 0.0
    %315 = vmatpush1.msra.mxu0 0.0
    %316 = vmatprep.subr.mxu0 0.0
    %317 = vmatpush1.msra.mxu0 0.0
    %318 = vmatprep.subr.mxu0 0.0
    %319 = vmatpush1.msra.mxu0 0.0
    %320 = vmatprep.subr.mxu0 0.0
    %321 = vmatpush1.msra.mxu0 0.0
    %322 = vmatprep.subr.mxu0 0.0
    %323 = vmatpush1.msra.mxu0 0.0
    %324 = vmatprep.subr.mxu0 0.0
    %325 = vmatpush1.msra.mxu0 0.0
    %326 = vmatprep.subr.mxu0 0.0
    %327 = vmatpush1.msra.mxu0 0.0
    %328 = vmatprep.subr.mxu0 0.0
    %329 = vmatpush1.msra.mxu0 0.0
    %330 = vmatprep.subr.mxu0 0.0
    %331 = vmatpush1.msra.mxu0 0.0
    %332 = vmatprep.subr.mxu0 0.0
    %333 = vmatpush1.msra.mxu0 0.0
    %334 = vmatprep.subr.mxu0 0.0
    %335 = vmatpush1.msra.mxu0 0.0
    %336 = vmatprep.subr.mxu0 0.0
    %337 = vmatpush1.msra.mxu0 0.0
    %338 = vmatprep.subr.mxu0 0.0
    %339 = vmatpush1.msra.mxu0 0.0
    %340 = vmatprep.subr.mxu0 0.0
    %341 = vmatpush1.msra.mxu0 0.0
    %342 = vmatprep.subr.mxu0 0.0
    %343 = vmatpush1.msra.mxu0 0.0
    %344 = vmatprep.subr.mxu0 0.0
    %345 = vmatpush1.msra.mxu0 0.0
    %346 = vmatprep.subr.mxu0 0.0
    %347 = vmatpush1.msra.mxu0 0.0
    %348 = vmatprep.mubr.f32.mxu0 0.0
    %349 = vmatmul.mubr.f32.gmra.mrb[0].mxu0 %v279
    %v350 = vpop.f32.mrb[0].mxu0
    %v351 = vadd.f32 %v270, %v350
    %v352 = vpop.f32.mrb[0].mxu0
    %v353 = vadd.f32 %v274, %v352
    %354 = vmatprep.mubr.f32.mxu0 0.0
    %355 = vmatmul.mubr.f32.gmra.mrb[0].mxu0 %v282
    %v356 = vpop.f32.mrb[0].mxu0
    %v357 = vadd.f32 %v270, %v356
    %v358 = vpop.f32.mrb[0].mxu0
    %v359 = vadd.f32 %v274, %v358
    %360 = vdwg.mxu0
    %362 = vrot.lane.b32.xlu0 %v351, 64
    %v363 = vpop.permute.xlu0 %362
    %vm364 = vcmask 130048
    %v365 = vsel %vm364, %v351, 0
    %v367 = vsel %vm364, %v363, 0
    %369 = vmatprep.subr.mxu0 0.0
    %370 = vmatpush1.xpose.msra.mxu0 %v367
    %371 = vmatprep.subr.mxu0 0.0
    %372 = vmatpush1.xpose.msra.mxu0 0.0
    %373 = vmatprep.subr.mxu0 0.0
    %374 = vmatpush1.xpose.msra.mxu0 0.0
    %375 = vmatprep.subr.mxu0 0.0
    %376 = vmatpush1.xpose.msra.mxu0 0.0
    %377 = vmatprep.subr.mxu0 0.0
    %378 = vmatpush1.xpose.msra.mxu0 0.0
    %379 = vmatprep.subr.mxu0 0.0
    %380 = vmatpush1.xpose.msra.mxu0 0.0
    %381 = vmatprep.subr.mxu0 0.0
    %382 = vmatpush1.xpose.msra.mxu0 0.0
    %383 = vmatprep.subr.mxu0 0.0
    %384 = vmatpush1.xpose.msra.mxu0 0.0
    %385 = vmatprep.subr.mxu0 0.0
    %386 = vmatpush1.xpose.msra.mxu0 0.0
    %387 = vmatprep.subr.mxu0 0.0
    %388 = vmatpush1.xpose.msra.mxu0 0.0
    %389 = vmatprep.subr.mxu0 0.0
    %390 = vmatpush1.xpose.msra.mxu0 0.0
    %391 = vmatprep.subr.mxu0 0.0
    %392 = vmatpush1.xpose.msra.mxu0 0.0
    %393 = vmatprep.subr.mxu0 0.0
    %394 = vmatpush1.xpose.msra.mxu0 0.0
    %395 = vmatprep.subr.mxu0 0.0
    %396 = vmatpush1.xpose.msra.mxu0 0.0
    %397 = vmatprep.subr.mxu0 0.0
    %398 = vmatpush1.xpose.msra.mxu0 0.0
    %399 = vmatprep.subr.mxu0 0.0
    %400 = vmatpush1.xpose.msra.mxu0 0.0
    %401 = vmatprep.subr.mxu0 0.0
    %402 = vmatpush1.xpose.msra.mxu0 0.0
    %403 = vmatprep.subr.mxu0 0.0
    %404 = vmatpush1.xpose.msra.mxu0 0.0
    %405 = vmatprep.subr.mxu0 0.0
    %406 = vmatpush1.xpose.msra.mxu0 0.0
    %407 = vmatprep.subr.mxu0 0.0
    %408 = vmatpush1.xpose.msra.mxu0 0.0
    %409 = vmatprep.subr.mxu0 0.0
    %410 = vmatpush1.xpose.msra.mxu0 0.0
    %411 = vmatprep.subr.mxu0 0.0
    %412 = vmatpush1.xpose.msra.mxu0 0.0
    %413 = vmatprep.subr.mxu0 0.0
    %414 = vmatpush1.xpose.msra.mxu0 0.0
    %415 = vmatprep.subr.mxu0 0.0
    %416 = vmatpush1.xpose.msra.mxu0 0.0
    %417 = vmatprep.subr.mxu0 0.0
    %418 = vmatpush1.xpose.msra.mxu0 0.0
    %419 = vmatprep.subr.mxu0 0.0
    %420 = vmatpush1.xpose.msra.mxu0 0.0
    %421 = vmatprep.subr.mxu0 0.0
    %422 = vmatpush1.xpose.msra.mxu0 0.0
    %423 = vmatprep.subr.mxu0 0.0
    %424 = vmatpush1.xpose.msra.mxu0 0.0
    %425 = vmatprep.subr.mxu0 0.0
    %426 = vmatpush1.xpose.msra.mxu0 0.0
    %427 = vmatprep.subr.mxu0 0.0
    %428 = vmatpush1.xpose.msra.mxu0 0.0
    %429 = vmatprep.subr.mxu0 0.0
    %430 = vmatpush1.xpose.msra.mxu0 0.0
    %431 = vmatprep.subr.mxu0 0.0
    %432 = vmatpush1.xpose.msra.mxu0 0.0
    %433 = vmatprep.mubr.f32.mxu0 0.0
    %434 = vmatmul.mubr.f32.gmra.mrb[0].mxu0 %v365
    %v435 = vpop.f32.mrb[0].mxu0
    %v436 = vadd.f32 0.0, %v435
    %v437 = vpop.f32.mrb[0].mxu0
    %438 = vdwg.mxu0
    %440 = vrot.lane.b32.xlu0 %v357, 64
    %v441 = vpop.permute.xlu0 %440
    %v442 = vsel %vm364, %v357, 0
    %v444 = vsel %vm364, %v441, 0
    %446 = vmatprep.subr.mxu0 0.0
    %447 = vmatpush1.xpose.msra.mxu0 %v444
    %448 = vmatprep.subr.mxu0 0.0
    %449 = vmatpush1.xpose.msra.mxu0 0.0
    %450 = vmatprep.subr.mxu0 0.0
    %451 = vmatpush1.xpose.msra.mxu0 0.0
    %452 = vmatprep.subr.mxu0 0.0
    %453 = vmatpush1.xpose.msra.mxu0 0.0
    %454 = vmatprep.subr.mxu0 0.0
    %455 = vmatpush1.xpose.msra.mxu0 0.0
    %456 = vmatprep.subr.mxu0 0.0
    %457 = vmatpush1.xpose.msra.mxu0 0.0
    %458 = vmatprep.subr.mxu0 0.0
    %459 = vmatpush1.xpose.msra.mxu0 0.0
    %460 = vmatprep.subr.mxu0 0.0
    %461 = vmatpush1.xpose.msra.mxu0 0.0
    %462 = vmatprep.subr.mxu0 0.0
    %463 = vmatpush1.xpose.msra.mxu0 0.0
    %464 = vmatprep.subr.mxu0 0.0
    %465 = vmatpush1.xpose.msra.mxu0 0.0
    %466 = vmatprep.subr.mxu0 0.0
    %467 = vmatpush1.xpose.msra.mxu0 0.0
    %468 = vmatprep.subr.mxu0 0.0
    %469 = vmatpush1.xpose.msra.mxu0 0.0
    %470 = vmatprep.subr.mxu0 0.0
    %471 = vmatpush1.xpose.msra.mxu0 0.0
    %472 = vmatprep.subr.mxu0 0.0
    %473 = vmatpush1.xpose.msra.mxu0 0.0
    %474 = vmatprep.subr.mxu0 0.0
    %475 = vmatpush1.xpose.msra.mxu0 0.0
    %476 = vmatprep.subr.mxu0 0.0
    %477 = vmatpush1.xpose.msra.mxu0 0.0
    %478 = vmatprep.subr.mxu0 0.0
    %479 = vmatpush1.xpose.msra.mxu0 0.0
    %480 = vmatprep.subr.mxu0 0.0
    %481 = vmatpush1.xpose.msra.mxu0 0.0
    %482 = vmatprep.subr.mxu0 0.0
    %483 = vmatpush1.xpose.msra.mxu0 0.0
    %484 = vmatprep.subr.mxu0 0.0
    %485 = vmatpush1.xpose.msra.mxu0 0.0
    %486 = vmatprep.subr.mxu0 0.0
    %487 = vmatpush1.xpose.msra.mxu0 0.0
    %488 = vmatprep.subr.mxu0 0.0
    %489 = vmatpush1.xpose.msra.mxu0 0.0
    %490 = vmatprep.subr.mxu0 0.0
    %491 = vmatpush1.xpose.msra.mxu0 0.0
    %492 = vmatprep.subr.mxu0 0.0
    %493 = vmatpush1.xpose.msra.mxu0 0.0
    %494 = vmatprep.subr.mxu0 0.0
    %495 = vmatpush1.xpose.msra.mxu0 0.0
    %496 = vmatprep.subr.mxu0 0.0
    %497 = vmatpush1.xpose.msra.mxu0 0.0
    %498 = vmatprep.subr.mxu0 0.0
    %499 = vmatpush1.xpose.msra.mxu0 0.0
    %500 = vmatprep.subr.mxu0 0.0
    %501 = vmatpush1.xpose.msra.mxu0 0.0
    %502 = vmatprep.subr.mxu0 0.0
    %503 = vmatpush1.xpose.msra.mxu0 0.0
    %504 = vmatprep.subr.mxu0 0.0
    %505 = vmatpush1.xpose.msra.mxu0 0.0
    %506 = vmatprep.subr.mxu0 0.0
    %507 = vmatpush1.xpose.msra.mxu0 0.0
    %508 = vmatprep.subr.mxu0 0.0
    %509 = vmatpush1.xpose.msra.mxu0 0.0
    %510 = vmatprep.mubr.f32.mxu0 0.0
    %511 = vmatmul.mubr.f32.gmra.mrb[0].mxu0 %v442
    %v512 = vpop.f32.mrb[0].mxu0
    %v513 = vadd.f32 0.0, %v512
    %v514 = vpop.f32.mrb[0].mxu0
    %515 = vdwg.mxu0
    %v516 = vmul.f32 %v436, 0.25
    %v517 = vmul.f32 %v513, 0.25
    %vm518 = vcmask 64512
    %v519 = vsel %vm518, %v516, -inf
    %520 = vmax.xlane.f32.xlu0 %v519
    %v521 = vpop.xlane.xlu0 %520
    %v522 = vsel %vm518, %v517, -inf
    %523 = vmax.xlane.f32.xlu0 %v522
    %v524 = vpop.xlane.xlu0 %523
    %v525 = vsub.f32 %v516, %v521
    %v526 = vsub.f32 %v517, %v524
    %v527 = vmul.f32 %v525, 1.442695
    %v528 = vpow.pop %v527
    %v529 = vmul.f32 %v526, 1.442695
    %v530 = vpow.pop %v529
    %v531 = vsel %vm518, %v528, 0.0
    %532 = vadd.xlane.f32.xlu0 %v531
    %v533 = vpop.xlane.xlu0 %532
    %v534 = vsel %vm518, %v530, 0.0
    %535 = vadd.xlane.f32.xlu0 %v534
    %v536 = vpop.xlane.xlu0 %535
    %v537 = vrcp.pop %v533
    %v538 = vrcp.pop %v536
    %v539 = vmul.f32 %v528, %v537
    %v540 = vmul.f32 %v530, %v538
    %v542 = vsel %vm518, %v539, 0
    %544 = vmatprep.subr.mxu0 0.0
    %545 = vmatpush1.msra.mxu0 %v353
    %546 = vmatprep.subr.mxu0 0.0
    %547 = vmatpush1.msra.mxu0 0.0
    %548 = vmatprep.subr.mxu0 0.0
    %549 = vmatpush1.msra.mxu0 0.0
    %550 = vmatprep.subr.mxu0 0.0
    %551 = vmatpush1.msra.mxu0 0.0
    %552 = vmatprep.subr.mxu0 0.0
    %553 = vmatpush1.msra.mxu0 0.0
    %554 = vmatprep.subr.mxu0 0.0
    %555 = vmatpush1.msra.mxu0 0.0
    %556 = vmatprep.subr.mxu0 0.0
    %557 = vmatpush1.msra.mxu0 0.0
    %558 = vmatprep.subr.mxu0 0.0
    %559 = vmatpush1.msra.mxu0 0.0
    %560 = vmatprep.subr.mxu0 0.0
    %561 = vmatpush1.msra.mxu0 0.0
    %562 = vmatprep.subr.mxu0 0.0
    %563 = vmatpush1.msra.mxu0 0.0
    %564 = vmatprep.subr.mxu0 0.0
    %565 = vmatpush1.msra.mxu0 0.0
    %566 = vmatprep.subr.mxu0 0.0
    %567 = vmatpush1.msra.mxu0 0.0
    %568 = vmatprep.subr.mxu0 0.0
    %569 = vmatpush1.msra.mxu0 0.0
    %570 = vmatprep.subr.mxu0 0.0
    %571 = vmatpush1.msra.mxu0 0.0
    %572 = vmatprep.subr.mxu0 0.0
    %573 = vmatpush1.msra.mxu0 0.0
    %574 = vmatprep.subr.mxu0 0.0
    %575 = vmatpush1.msra.mxu0 0.0
    %576 = vmatprep.subr.mxu0 0.0
    %577 = vmatpush1.msra.mxu0 0.0
    %578 = vmatprep.subr.mxu0 0.0
    %579 = vmatpush1.msra.mxu0 0.0
    %580 = vmatprep.subr.mxu0 0.0
    %581 = vmatpush1.msra.mxu0 0.0
    %582 = vmatprep.subr.mxu0 0.0
    %583 = vmatpush1.msra.mxu0 0.0
    %584 = vmatprep.subr.mxu0 0.0
    %585 = vmatpush1.msra.mxu0 0.0
    %586 = vmatprep.subr.mxu0 0.0
    %587 = vmatpush1.msra.mxu0 0.0
    %588 = vmatprep.subr.mxu0 0.0
    %589 = vmatpush1.msra.mxu0 0.0
    %590 = vmatprep.subr.mxu0 0.0
    %591 = vmatpush1.msra.mxu0 0.0
    %592 = vmatprep.subr.mxu0 0.0
    %593 = vmatpush1.msra.mxu0 0.0
    %594 = vmatprep.subr.mxu0 0.0
    %595 = vmatpush1.msra.mxu0 0.0
    %596 = vmatprep.subr.mxu0 0.0
    %597 = vmatpush1.msra.mxu0 0.0
    %598 = vmatprep.subr.mxu0 0.0
    %599 = vmatpush1.msra.mxu0 0.0
    %600 = vmatprep.subr.mxu0 0.0
    %601 = vmatpush1.msra.mxu0 0.0
    %602 = vmatprep.subr.mxu0 0.0
    %603 = vmatpush1.msra.mxu0 0.0
    %604 = vmatprep.subr.mxu0 0.0
    %605 = vmatpush1.msra.mxu0 0.0
    %606 = vmatprep.subr.mxu0 0.0
    %607 = vmatpush1.msra.mxu0 0.0
    %608 = vmatprep.mubr.f32.mxu0 0.0
    %609 = vmatmul.mubr.f32.gmra.mrb[0].mxu0 %v542
    %v610 = vpop.f32.mrb[0].mxu0
    %v611 = vadd.f32 0.0, %v610
    %v612 = vpop.f32.mrb[0].mxu0
    %613 = vdwg.mxu0
    %v615 = vsel %vm518, %v540, 0
    %617 = vmatprep.subr.mxu0 0.0
    %618 = vmatpush1.msra.mxu0 %v359
    %619 = vmatprep.subr.mxu0 0.0
    %620 = vmatpush1.msra.mxu0 0.0
    %621 = vmatprep.subr.mxu0 0.0
    %622 = vmatpush1.msra.mxu0 0.0
    %623 = vmatprep.subr.mxu0 0.0
    %624 = vmatpush1.msra.mxu0 0.0
    %625 = vmatprep.subr.mxu0 0.0
    %626 = vmatpush1.msra.mxu0 0.0
    %627 = vmatprep.subr.mxu0 0.0
    %628 = vmatpush1.msra.mxu0 0.0
    %629 = vmatprep.subr.mxu0 0.0
    %630 = vmatpush1.msra.mxu0 0.0
    %631 = vmatprep.subr.mxu0 0.0
    %632 = vmatpush1.msra.mxu0 0.0
    %633 = vmatprep.subr.mxu0 0.0
    %634 = vmatpush1.msra.mxu0 0.0
    %635 = vmatprep.subr.mxu0 0.0
    %636 = vmatpush1.msra.mxu0 0.0
    %637 = vmatprep.subr.mxu0 0.0
    %638 = vmatpush1.msra.mxu0 0.0
    %639 = vmatprep.subr.mxu0 0.0
    %640 = vmatpush1.msra.mxu0 0.0
    %641 = vmatprep.subr.mxu0 0.0
    %642 = vmatpush1.msra.mxu0 0.0
    %643 = vmatprep.subr.mxu0 0.0
    %644 = vmatpush1.msra.mxu0 0.0
    %645 = vmatprep.subr.mxu0 0.0
    %646 = vmatpush1.msra.mxu0 0.0
    %647 = vmatprep.subr.mxu0 0.0
    %648 = vmatpush1.msra.mxu0 0.0
    %649 = vmatprep.subr.mxu0 0.0
    %650 = vmatpush1.msra.mxu0 0.0
    %651 = vmatprep.subr.mxu0 0.0
    %652 = vmatpush1.msra.mxu0 0.0
    %653 = vmatprep.subr.mxu0 0.0
    %654 = vmatpush1.msra.mxu0 0.0
    %655 = vmatprep.subr.mxu0 0.0
    %656 = vmatpush1.msra.mxu0 0.0
    %657 = vmatprep.subr.mxu0 0.0
    %658 = vmatpush1.msra.mxu0 0.0
    %659 = vmatprep.subr.mxu0 0.0
    %660 = vmatpush1.msra.mxu0 0.0
    %661 = vmatprep.subr.mxu0 0.0
    %662 = vmatpush1.msra.mxu0 0.0
    %663 = vmatprep.subr.mxu0 0.0
    %664 = vmatpush1.msra.mxu0 0.0
    %665 = vmatprep.subr.mxu0 0.0
    %666 = vmatpush1.msra.mxu0 0.0
    %667 = vmatprep.subr.mxu0 0.0
    %668 = vmatpush1.msra.mxu0 0.0
    %669 = vmatprep.subr.mxu0 0.0
    %670 = vmatpush1.msra.mxu0 0.0
    %671 = vmatprep.subr.mxu0 0.0
    %672 = vmatpush1.msra.mxu0 0.0
    %673 = vmatprep.subr.mxu0 0.0
    %674 = vmatpush1.msra.mxu0 0.0
    %675 = vmatprep.subr.mxu0 0.0
    %676 = vmatpush1.msra.mxu0 0.0
    %677 = vmatprep.subr.mxu0 0.0
    %678 = vmatpush1.msra.mxu0 0.0
    %679 = vmatprep.subr.mxu0 0.0
    %680 = vmatpush1.msra.mxu0 0.0
    %681 = vmatprep.mubr.f32.mxu0 0.0
    %682 = vmatmul.mubr.f32.gmra.mrb[0].mxu0 %v615
    %v683 = vpop.f32.mrb[0].mxu0
    %v684 = vadd.f32 0.0, %v683
    %v685 = vpop.f32.mrb[0].mxu0
    %686 = vdwg.mxu0
    %687 = vrot.lane.b32.xlu0 %v351, 112
    %v688 = vpop.permute.xlu0 %687
    %689 = vrot.lane.b32.xlu0 %v351, 48
    %v690 = vpop.permute.xlu0 %689
    %v691 = vsel %vm364, %v688, 0
    %v693 = vsel %vm364, %v690, 0
    %695 = vmatprep.subr.mxu0 0.0
    %696 = vmatpush1.xpose.msra.mxu0 %v693
    %697 = vmatprep.subr.mxu0 0.0
    %698 = vmatpush1.xpose.msra.mxu0 0.0
    %699 = vmatprep.subr.mxu0 0.0
    %700 = vmatpush1.xpose.msra.mxu0 0.0
    %701 = vmatprep.subr.mxu0 0.0
    %702 = vmatpush1.xpose.msra.mxu0 0.0
    %703 = vmatprep.subr.mxu0 0.0
    %704 = vmatpush1.xpose.msra.mxu0 0.0
    %705 = vmatprep.subr.mxu0 0.0
    %706 = vmatpush1.xpose.msra.mxu0 0.0
    %707 = vmatprep.subr.mxu0 0.0
    %708 = vmatpush1.xpose.msra.mxu0 0.0
    %709 = vmatprep.subr.mxu0 0.0
    %710 = vmatpush1.xpose.msra.mxu0 0.0
    %711 = vmatprep.subr.mxu0 0.0
    %712 = vmatpush1.xpose.msra.mxu0 0.0
    %713 = vmatprep.subr.mxu0 0.0
    %714 = vmatpush1.xpose.msra.mxu0 0.0
    %715 = vmatprep.subr.mxu0 0.0
    %716 = vmatpush1.xpose.msra.mxu0 0.0
    %717 = vmatprep.subr.mxu0 0.0
    %718 = vmatpush1.xpose.msra.mxu0 0.0
    %719 = vmatprep.subr.mxu0 0.0
    %720 = vmatpush1.xpose.msra.mxu0 0.0
    %721 = vmatprep.subr.mxu0 0.0
    %722 = vmatpush1.xpose.msra.mxu0 0.0
    %723 = vmatprep.subr.mxu0 0.0
    %724 = vmatpush1.xpose.msra.mxu0 0.0
    %725 = vmatprep.subr.mxu0 0.0
    %726 = vmatpush1.xpose.msra.mxu0 0.0
    %727 = vmatprep.subr.mxu0 0.0
    %728 = vmatpush1.xpose.msra.mxu0 0.0
    %729 = vmatprep.subr.mxu0 0.0
    %730 = vmatpush1.xpose.msra.mxu0 0.0
    %731 = vmatprep.subr.mxu0 0.0
    %732 = vmatpush1.xpose.msra.mxu0 0.0
    %733 = vmatprep.subr.mxu0 0.0
    %734 = vmatpush1.xpose.msra.mxu0 0.0
    %735 = vmatprep.subr.mxu0 0.0
    %736 = vmatpush1.xpose.msra.mxu0 0.0
    %737 = vmatprep.subr.mxu0 0.0
    %738 = vmatpush1.xpose.msra.mxu0 0.0
    %739 = vmatprep.subr.mxu0 0.0
    %740 = vmatpush1.xpose.msra.mxu0 0.0
    %741 = vmatprep.subr.mxu0 0.0
    %742 = vmatpush1.xpose.msra.mxu0 0.0
    %743 = vmatprep.subr.mxu0 0.0
    %744 = vmatpush1.xpose.msra.mxu0 0.0
    %745 = vmatprep.subr.mxu0 0.0
    %746 = vmatpush1.xpose.msra.mxu0 0.0
    %747 = vmatprep.subr.mxu0 0.0
    %748 = vmatpush1.xpose.msra.mxu0 0.0
    %749 = vmatprep.subr.mxu0 0.0
    %750 = vmatpush1.xpose.msra.mxu0 0.0
    %751 = vmatprep.subr.mxu0 0.0
    %752 = vmatpush1.xpose.msra.mxu0 0.0
    %753 = vmatprep.subr.mxu0 0.0
    %754 = vmatpush1.xpose.msra.mxu0 0.0
    %755 = vmatprep.subr.mxu0 0.0
    %756 = vmatpush1.xpose.msra.mxu0 0.0
    %757 = vmatprep.subr.mxu0 0.0
    %758 = vmatpush1.xpose.msra.mxu0 0.0
    %759 = vmatprep.mubr.f32.mxu0 0.0
    %760 = vmatmul.mubr.f32.gmra.mrb[0].mxu0 %v691
    %v761 = vpop.f32.mrb[0].mxu0
    %v762 = vadd.f32 0.0, %v761
    %v763 = vpop.f32.mrb[0].mxu0
    %764 = vdwg.mxu0
    %765 = vrot.lane.b32.xlu0 %v357, 112
    %v766 = vpop.permute.xlu0 %765
    %767 = vrot.lane.b32.xlu0 %v357, 48
    %v768 = vpop.permute.xlu0 %767
    %v769 = vsel %vm364, %v766, 0
    %v771 = vsel %vm364, %v768, 0
    %773 = vmatprep.subr.mxu0 0.0
    %774 = vmatpush1.xpose.msra.mxu0 %v771
    %775 = vmatprep.subr.mxu0 0.0
    %776 = vmatpush1.xpose.msra.mxu0 0.0
    %777 = vmatprep.subr.mxu0 0.0
    %778 = vmatpush1.xpose.msra.mxu0 0.0
    %779 = vmatprep.subr.mxu0 0.0
    %780 = vmatpush1.xpose.msra.mxu0 0.0
    %781 = vmatprep.subr.mxu0 0.0
    %782 = vmatpush1.xpose.msra.mxu0 0.0
    %783 = vmatprep.subr.mxu0 0.0
    %784 = vmatpush1.xpose.msra.mxu0 0.0
    %785 = vmatprep.subr.mxu0 0.0
    %786 = vmatpush1.xpose.msra.mxu0 0.0
    %787 = vmatprep.subr.mxu0 0.0
    %788 = vmatpush1.xpose.msra.mxu0 0.0
    %789 = vmatprep.subr.mxu0 0.0
    %790 = vmatpush1.xpose.msra.mxu0 0.0
    %791 = vmatprep.subr.mxu0 0.0
    %792 = vmatpush1.xpose.msra.mxu0 0.0
    %793 = vmatprep.subr.mxu0 0.0
    %794 = vmatpush1.xpose.msra.mxu0 0.0
    %795 = vmatprep.subr.mxu0 0.0
    %796 = vmatpush1.xpose.msra.mxu0 0.0
    %797 = vmatprep.subr.mxu0 0.0
    %798 = vmatpush1.xpose.msra.mxu0 0.0
    %799 = vmatprep.subr.mxu0 0.0
    %800 = vmatpush1.xpose.msra.mxu0 0.0
    %801 = vmatprep.subr.mxu0 0.0
    %802 = vmatpush1.xpose.msra.mxu0 0.0
    %803 = vmatprep.subr.mxu0 0.0
    %804 = vmatpush1.xpose.msra.mxu0 0.0
    %805 = vmatprep.subr.mxu0 0.0
    %806 = vmatpush1.xpose.msra.mxu0 0.0
    %807 = vmatprep.subr.mxu0 0.0
    %808 = vmatpush1.xpose.msra.mxu0 0.0
    %809 = vmatprep.subr.mxu0 0.0
    %810 = vmatpush1.xpose.msra.mxu0 0.0
    %811 = vmatprep.subr.mxu0 0.0
    %812 = vmatpush1.xpose.msra.mxu0 0.0
    %813 = vmatprep.subr.mxu0 0.0
    %814 = vmatpush1.xpose.msra.mxu0 0.0
    %815 = vmatprep.subr.mxu0 0.0
    %816 = vmatpush1.xpose.msra.mxu0 0.0
    %817 = vmatprep.subr.mxu0 0.0
    %818 = vmatpush1.xpose.msra.mxu0 0.0
    %819 = vmatprep.subr.mxu0 0.0
    %820 = vmatpush1.xpose.msra.mxu0 0.0
    %821 = vmatprep.subr.mxu0 0.0
    %822 = vmatpush1.xpose.msra.mxu0 0.0
    %823 = vmatprep.subr.mxu0 0.0
    %824 = vmatpush1.xpose.msra.mxu0 0.0
    %825 = vmatprep.subr.mxu0 0.0
    %826 = vmatpush1.xpose.msra.mxu0 0.0
    %827 = vmatprep.subr.mxu0 0.0
    %828 = vmatpush1.xpose.msra.mxu0 0.0
    %829 = vmatprep.subr.mxu0 0.0
    %830 = vmatpush1.xpose.msra.mxu0 0.0
    %831 = vmatprep.subr.mxu0 0.0
    %832 = vmatpush1.xpose.msra.mxu0 0.0
    %833 = vmatprep.subr.mxu0 0.0
    %834 = vmatpush1.xpose.msra.mxu0 0.0
    %835 = vmatprep.subr.mxu0 0.0
    %836 = vmatpush1.xpose.msra.mxu0 0.0
    %837 = vmatprep.mubr.f32.mxu0 0.0
    %838 = vmatmul.mubr.f32.gmra.mrb[0].mxu0 %v769
    %v839 = vpop.f32.mrb[0].mxu0
    %v840 = vadd.f32 0.0, %v839
    %v841 = vpop.f32.mrb[0].mxu0
    %842 = vdwg.mxu0
    %v843 = vmul.f32 %v762, 0.25
    %v844 = vmul.f32 %v840, 0.25
    %v845 = vsel %vm518, %v843, -inf
    %846 = vmax.xlane.f32.xlu0 %v845
    %v847 = vpop.xlane.xlu0 %846
    %v848 = vsel %vm518, %v844, -inf
    %849 = vmax.xlane.f32.xlu0 %v848
    %v850 = vpop.xlane.xlu0 %849
    %v851 = vsub.f32 %v843, %v847
    %v852 = vsub.f32 %v844, %v850
    %v853 = vmul.f32 %v851, 1.442695
    %v854 = vpow.pop %v853
    %v855 = vmul.f32 %v852, 1.442695
    %v856 = vpow.pop %v855
    %v857 = vsel %vm518, %v854, 0.0
    %858 = vadd.xlane.f32.xlu0 %v857
    %v859 = vpop.xlane.xlu0 %858
    %v860 = vsel %vm518, %v856, 0.0
    %861 = vadd.xlane.f32.xlu0 %v860
    %v862 = vpop.xlane.xlu0 %861
    %v863 = vrcp.pop %v859
    %v864 = vrcp.pop %v862
    %v865 = vmul.f32 %v854, %v863
    %v866 = vmul.f32 %v856, %v864
    %868 = vrot.lane.b32.xlu0 %v353, 112
    %v869 = vpop.permute.xlu0 %868
    %v872 = vsel %vm518, %v865, 0
    %874 = vmatprep.subr.mxu0 0.0
    %875 = vmatpush1.msra.mxu0 %v869
    %876 = vmatprep.subr.mxu0 0.0
    %877 = vmatpush1.msra.mxu0 0.0
    %878 = vmatprep.subr.mxu0 0.0
    %879 = vmatpush1.msra.mxu0 0.0
    %880 = vmatprep.subr.mxu0 0.0
    %881 = vmatpush1.msra.mxu0 0.0
    %882 = vmatprep.subr.mxu0 0.0
    %883 = vmatpush1.msra.mxu0 0.0
    %884 = vmatprep.subr.mxu0 0.0
    %885 = vmatpush1.msra.mxu0 0.0
    %886 = vmatprep.subr.mxu0 0.0
    %887 = vmatpush1.msra.mxu0 0.0
    %888 = vmatprep.subr.mxu0 0.0
    %889 = vmatpush1.msra.mxu0 0.0
    %890 = vmatprep.subr.mxu0 0.0
    %891 = vmatpush1.msra.mxu0 0.0
    %892 = vmatprep.subr.mxu0 0.0
    %893 = vmatpush1.msra.mxu0 0.0
    %894 = vmatprep.subr.mxu0 0.0
    %895 = vmatpush1.msra.mxu0 0.0
    %896 = vmatprep.subr.mxu0 0.0
    %897 = vmatpush1.msra.mxu0 0.0
    %898 = vmatprep.subr.mxu0 0.0
    %899 = vmatpush1.msra.mxu0 0.0
    %900 = vmatprep.subr.mxu0 0.0
    %901 = vmatpush1.msra.mxu0 0.0
    %902 = vmatprep.subr.mxu0 0.0
    %903 = vmatpush1.msra.mxu0 0.0
    %904 = vmatprep.subr.mxu0 0.0
    %905 = vmatpush1.msra.mxu0 0.0
    %906 = vmatprep.subr.mxu0 0.0
    %907 = vmatpush1.msra.mxu0 0.0
    %908 = vmatprep.subr.mxu0 0.0
    %909 = vmatpush1.msra.mxu0 0.0
    %910 = vmatprep.subr.mxu0 0.0
    %911 = vmatpush1.msra.mxu0 0.0
    %912 = vmatprep.subr.mxu0 0.0
    %913 = vmatpush1.msra.mxu0 0.0
    %914 = vmatprep.subr.mxu0 0.0
    %915 = vmatpush1.msra.mxu0 0.0
    %916 = vmatprep.subr.mxu0 0.0
    %917 = vmatpush1.msra.mxu0 0.0
    %918 = vmatprep.subr.mxu0 0.0
    %919 = vmatpush1.msra.mxu0 0.0
    %920 = vmatprep.subr.mxu0 0.0
    %921 = vmatpush1.msra.mxu0 0.0
    %922 = vmatprep.subr.mxu0 0.0
    %923 = vmatpush1.msra.mxu0 0.0
    %924 = vmatprep.subr.mxu0 0.0
    %925 = vmatpush1.msra.mxu0 0.0
    %926 = vmatprep.subr.mxu0 0.0
    %927 = vmatpush1.msra.mxu0 0.0
    %928 = vmatprep.subr.mxu0 0.0
    %929 = vmatpush1.msra.mxu0 0.0
    %930 = vmatprep.subr.mxu0 0.0
    %931 = vmatpush1.msra.mxu0 0.0
    %932 = vmatprep.subr.mxu0 0.0
    %933 = vmatpush1.msra.mxu0 0.0
    %934 = vmatprep.subr.mxu0 0.0
    %935 = vmatpush1.msra.mxu0 0.0
    %936 = vmatprep.subr.mxu0 0.0
    %937 = vmatpush1.msra.mxu0 0.0
    %938 = vmatprep.mubr.f32.mxu0 0.0
    %939 = vmatmul.mubr.f32.gmra.mrb[0].mxu0 %v872
    %v940 = vpop.f32.mrb[0].mxu0
    %v941 = vadd.f32 0.0, %v940
    %v942 = vpop.f32.mrb[0].mxu0
    %943 = vdwg.mxu0
    %945 = vrot.lane.b32.xlu0 %v359, 112
    %v946 = vpop.permute.xlu0 %945
    %v949 = vsel %vm518, %v866, 0
    %951 = vmatprep.subr.mxu0 0.0
    %952 = vmatpush1.msra.mxu0 %v946
    %953 = vmatprep.subr.mxu0 0.0
    %954 = vmatpush1.msra.mxu0 0.0
    %955 = vmatprep.subr.mxu0 0.0
    %956 = vmatpush1.msra.mxu0 0.0
    %957 = vmatprep.subr.mxu0 0.0
    %958 = vmatpush1.msra.mxu0 0.0
    %959 = vmatprep.subr.mxu0 0.0
    %960 = vmatpush1.msra.mxu0 0.0
    %961 = vmatprep.subr.mxu0 0.0
    %962 = vmatpush1.msra.mxu0 0.0
    %963 = vmatprep.subr.mxu0 0.0
    %964 = vmatpush1.msra.mxu0 0.0
    %965 = vmatprep.subr.mxu0 0.0
    %966 = vmatpush1.msra.mxu0 0.0
    %967 = vmatprep.subr.mxu0 0.0
    %968 = vmatpush1.msra.mxu0 0.0
    %969 = vmatprep.subr.mxu0 0.0
    %970 = vmatpush1.msra.mxu0 0.0
    %971 = vmatprep.subr.mxu0 0.0
    %972 = vmatpush1.msra.mxu0 0.0
    %973 = vmatprep.subr.mxu0 0.0
    %974 = vmatpush1.msra.mxu0 0.0
    %975 = vmatprep.subr.mxu0 0.0
    %976 = vmatpush1.msra.mxu0 0.0
    %977 = vmatprep.subr.mxu0 0.0
    %978 = vmatpush1.msra.mxu0 0.0
    %979 = vmatprep.subr.mxu0 0.0
    %980 = vmatpush1.msra.mxu0 0.0
    %981 = vmatprep.subr.mxu0 0.0
    %982 = vmatpush1.msra.mxu0 0.0
    %983 = vmatprep.subr.mxu0 0.0
    %984 = vmatpush1.msra.mxu0 0.0
    %985 = vmatprep.subr.mxu0 0.0
    %986 = vmatpush1.msra.mxu0 0.0
    %987 = vmatprep.subr.mxu0 0.0
    %988 = vmatpush1.msra.mxu0 0.0
    %989 = vmatprep.subr.mxu0 0.0
    %990 = vmatpush1.msra.mxu0 0.0
    %991 = vmatprep.subr.mxu0 0.0
    %992 = vmatpush1.msra.mxu0 0.0
    %993 = vmatprep.subr.mxu0 0.0
    %994 = vmatpush1.msra.mxu0 0.0
    %995 = vmatprep.subr.mxu0 0.0
    %996 = vmatpush1.msra.mxu0 0.0
    %997 = vmatprep.subr.mxu0 0.0
    %998 = vmatpush1.msra.mxu0 0.0
    %999 = vmatprep.subr.mxu0 0.0
    %1000 = vmatpush1.msra.mxu0 0.0
    %1001 = vmatprep.subr.mxu0 0.0
    %1002 = vmatpush1.msra.mxu0 0.0
    %1003 = vmatprep.subr.mxu0 0.0
    %1004 = vmatpush1.msra.mxu0 0.0
    %1005 = vmatprep.subr.mxu0 0.0
    %1006 = vmatpush1.msra.mxu0 0.0
    %1007 = vmatprep.subr.mxu0 0.0
    %1008 = vmatpush1.msra.mxu0 0.0
    %1009 = vmatprep.subr.mxu0 0.0
    %1010 = vmatpush1.msra.mxu0 0.0
    %1011 = vmatprep.subr.mxu0 0.0
    %1012 = vmatpush1.msra.mxu0 0.0
    %1013 = vmatprep.subr.mxu0 0.0
    %1014 = vmatpush1.msra.mxu0 0.0
    %1015 = vmatprep.mubr.f32.mxu0 0.0
    %1016 = vmatmul.mubr.f32.gmra.mrb[0].mxu0 %v949
    %v1017 = vpop.f32.mrb[0].mxu0
    %v1018 = vadd.f32 0.0, %v1017
    %v1019 = vpop.f32.mrb[0].mxu0
    %1020 = vdwg.mxu0
    %1021 = vrot.lane.b32.xlu0 %v351, 96
    %v1022 = vpop.permute.xlu0 %1021
    %1023 = vrot.lane.b32.xlu0 %v351, 32
    %v1024 = vpop.permute.xlu0 %1023
    %v1025 = vsel %vm364, %v1022, 0
    %v1027 = vsel %vm364, %v1024, 0
    %1029 = vmatprep.subr.mxu0 0.0
    %1030 = vmatpush1.xpose.msra.mxu0 %v1027
    %1031 = vmatprep.subr.mxu0 0.0
    %1032 = vmatpush1.xpose.msra.mxu0 0.0
    %1033 = vmatprep.subr.mxu0 0.0
    %1034 = vmatpush1.xpose.msra.mxu0 0.0
    %1035 = vmatprep.subr.mxu0 0.0
    %1036 = vmatpush1.xpose.msra.mxu0 0.0
    %1037 = vmatprep.subr.mxu0 0.0
    %1038 = vmatpush1.xpose.msra.mxu0 0.0
    %1039 = vmatprep.subr.mxu0 0.0
    %1040 = vmatpush1.xpose.msra.mxu0 0.0
    %1041 = vmatprep.subr.mxu0 0.0
    %1042 = vmatpush1.xpose.msra.mxu0 0.0
    %1043 = vmatprep.subr.mxu0 0.0
    %1044 = vmatpush1.xpose.msra.mxu0 0.0
    %1045 = vmatprep.subr.mxu0 0.0
    %1046 = vmatpush1.xpose.msra.mxu0 0.0
    %1047 = vmatprep.subr.mxu0 0.0
    %1048 = vmatpush1.xpose.msra.mxu0 0.0
    %1049 = vmatprep.subr.mxu0 0.0
    %1050 = vmatpush1.xpose.msra.mxu0 0.0
    %1051 = vmatprep.subr.mxu0 0.0
    %1052 = vmatpush1.xpose.msra.mxu0 0.0
    %1053 = vmatprep.subr.mxu0 0.0
    %1054 = vmatpush1.xpose.msra.mxu0 0.0
    %1055 = vmatprep.subr.mxu0 0.0
    %1056 = vmatpush1.xpose.msra.mxu0 0.0
    %1057 = vmatprep.subr.mxu0 0.0
    %1058 = vmatpush1.xpose.msra.mxu0 0.0
    %1059 = vmatprep.subr.mxu0 0.0
    %1060 = vmatpush1.xpose.msra.mxu0 0.0
    %1061 = vmatprep.subr.mxu0 0.0
    %1062 = vmatpush1.xpose.msra.mxu0 0.0
    %1063 = vmatprep.subr.mxu0 0.0
    %1064 = vmatpush1.xpose.msra.mxu0 0.0
    %1065 = vmatprep.subr.mxu0 0.0
    %1066 = vmatpush1.xpose.msra.mxu0 0.0
    %1067 = vmatprep.subr.mxu0 0.0
    %1068 = vmatpush1.xpose.msra.mxu0 0.0
    %1069 = vmatprep.subr.mxu0 0.0
    %1070 = vmatpush1.xpose.msra.mxu0 0.0
    %1071 = vmatprep.subr.mxu0 0.0
    %1072 = vmatpush1.xpose.msra.mxu0 0.0
    %1073 = vmatprep.subr.mxu0 0.0
    %1074 = vmatpush1.xpose.msra.mxu0 0.0
    %1075 = vmatprep.subr.mxu0 0.0
    %1076 = vmatpush1.xpose.msra.mxu0 0.0
    %1077 = vmatprep.subr.mxu0 0.0
    %1078 = vmatpush1.xpose.msra.mxu0 0.0
    %1079 = vmatprep.subr.mxu0 0.0
    %1080 = vmatpush1.xpose.msra.mxu0 0.0
    %1081 = vmatprep.subr.mxu0 0.0
    %1082 = vmatpush1.xpose.msra.mxu0 0.0
    %1083 = vmatprep.subr.mxu0 0.0
    %1084 = vmatpush1.xpose.msra.mxu0 0.0
    %1085 = vmatprep.subr.mxu0 0.0
    %1086 = vmatpush1.xpose.msra.mxu0 0.0
    %1087 = vmatprep.subr.mxu0 0.0
    %1088 = vmatpush1.xpose.msra.mxu0 0.0
    %1089 = vmatprep.subr.mxu0 0.0
    %1090 = vmatpush1.xpose.msra.mxu0 0.0
    %1091 = vmatprep.subr.mxu0 0.0
    %1092 = vmatpush1.xpose.msra.mxu0 0.0
    %1093 = vmatprep.mubr.f32.mxu0 0.0
    %1094 = vmatmul.mubr.f32.gmra.mrb[0].mxu0 %v1025
    %v1095 = vpop.f32.mrb[0].mxu0
    %v1096 = vadd.f32 0.0, %v1095
    %v1097 = vpop.f32.mrb[0].mxu0
    %1098 = vdwg.mxu0
    %1099 = vrot.lane.b32.xlu0 %v357, 96
    %v1100 = vpop.permute.xlu0 %1099
    %1101 = vrot.lane.b32.xlu0 %v357, 32
    %v1102 = vpop.permute.xlu0 %1101
    %v1103 = vsel %vm364, %v1100, 0
    %v1105 = vsel %vm364, %v1102, 0
    %1107 = vmatprep.subr.mxu0 0.0
    %1108 = vmatpush1.xpose.msra.mxu0 %v1105
    %1109 = vmatprep.subr.mxu0 0.0
    %1110 = vmatpush1.xpose.msra.mxu0 0.0
    %1111 = vmatprep.subr.mxu0 0.0
    %1112 = vmatpush1.xpose.msra.mxu0 0.0
    %1113 = vmatprep.subr.mxu0 0.0
    %1114 = vmatpush1.xpose.msra.mxu0 0.0
    %1115 = vmatprep.subr.mxu0 0.0
    %1116 = vmatpush1.xpose.msra.mxu0 0.0
    %1117 = vmatprep.subr.mxu0 0.0
    %1118 = vmatpush1.xpose.msra.mxu0 0.0
    %1119 = vmatprep.subr.mxu0 0.0
    %1120 = vmatpush1.xpose.msra.mxu0 0.0
    %1121 = vmatprep.subr.mxu0 0.0
    %1122 = vmatpush1.xpose.msra.mxu0 0.0
    %1123 = vmatprep.subr.mxu0 0.0
    %1124 = vmatpush1.xpose.msra.mxu0 0.0
    %1125 = vmatprep.subr.mxu0 0.0
    %1126 = vmatpush1.xpose.msra.mxu0 0.0
    %1127 = vmatprep.subr.mxu0 0.0
    %1128 = vmatpush1.xpose.msra.mxu0 0.0
    %1129 = vmatprep.subr.mxu0 0.0
    %1130 = vmatpush1.xpose.msra.mxu0 0.0
    %1131 = vmatprep.subr.mxu0 0.0
    %1132 = vmatpush1.xpose.msra.mxu0 0.0
    %1133 = vmatprep.subr.mxu0 0.0
    %1134 = vmatpush1.xpose.msra.mxu0 0.0
    %1135 = vmatprep.subr.mxu0 0.0
    %1136 = vmatpush1.xpose.msra.mxu0 0.0
    %1137 = vmatprep.subr.mxu0 0.0
    %1138 = vmatpush1.xpose.msra.mxu0 0.0
    %1139 = vmatprep.subr.mxu0 0.0
    %1140 = vmatpush1.xpose.msra.mxu0 0.0
    %1141 = vmatprep.subr.mxu0 0.0
    %1142 = vmatpush1.xpose.msra.mxu0 0.0
    %1143 = vmatprep.subr.mxu0 0.0
    %1144 = vmatpush1.xpose.msra.mxu0 0.0
    %1145 = vmatprep.subr.mxu0 0.0
    %1146 = vmatpush1.xpose.msra.mxu0 0.0
    %1147 = vmatprep.subr.mxu0 0.0
    %1148 = vmatpush1.xpose.msra.mxu0 0.0
    %1149 = vmatprep.subr.mxu0 0.0
    %1150 = vmatpush1.xpose.msra.mxu0 0.0
    %1151 = vmatprep.subr.mxu0 0.0
    %1152 = vmatpush1.xpose.msra.mxu0 0.0
    %1153 = vmatprep.subr.mxu0 0.0
    %1154 = vmatpush1.xpose.msra.mxu0 0.0
    %1155 = vmatprep.subr.mxu0 0.0
    %1156 = vmatpush1.xpose.msra.mxu0 0.0
    %1157 = vmatprep.subr.mxu0 0.0
    %1158 = vmatpush1.xpose.msra.mxu0 0.0
    %1159 = vmatprep.subr.mxu0 0.0
    %1160 = vmatpush1.xpose.msra.mxu0 0.0
    %1161 = vmatprep.subr.mxu0 0.0
    %1162 = vmatpush1.xpose.msra.mxu0 0.0
    %1163 = vmatprep.subr.mxu0 0.0
    %1164 = vmatpush1.xpose.msra.mxu0 0.0
    %1165 = vmatprep.subr.mxu0 0.0
    %1166 = vmatpush1.xpose.msra.mxu0 0.0
    %1167 = vmatprep.subr.mxu0 0.0
    %1168 = vmatpush1.xpose.msra.mxu0 0.0
    %1169 = vmatprep.subr.mxu0 0.0
    %1170 = vmatpush1.xpose.msra.mxu0 0.0
    %1171 = vmatprep.mubr.f32.mxu0 0.0
    %1172 = vmatmul.mubr.f32.gmra.mrb[0].mxu0 %v1103
    %v1173 = vpop.f32.mrb[0].mxu0
    %v1174 = vadd.f32 0.0, %v1173
    %v1175 = vpop.f32.mrb[0].mxu0
    %1176 = vdwg.mxu0
    %v1177 = vmul.f32 %v1096, 0.25
    %v1178 = vmul.f32 %v1174, 0.25
    %v1179 = vsel %vm518, %v1177, -inf
    %1180 = vmax.xlane.f32.xlu0 %v1179
    %v1181 = vpop.xlane.xlu0 %1180
    %v1182 = vsel %vm518, %v1178, -inf
    %1183 = vmax.xlane.f32.xlu0 %v1182
    %v1184 = vpop.xlane.xlu0 %1183
    %v1185 = vsub.f32 %v1177, %v1181
    %v1186 = vsub.f32 %v1178, %v1184
    %v1187 = vmul.f32 %v1185, 1.442695
    %v1188 = vpow.pop %v1187
    %v1189 = vmul.f32 %v1186, 1.442695
    %v1190 = vpow.pop %v1189
    %v1191 = vsel %vm518, %v1188, 0.0
    %1192 = vadd.xlane.f32.xlu0 %v1191
    %v1193 = vpop.xlane.xlu0 %1192
    %v1194 = vsel %vm518, %v1190, 0.0
    %1195 = vadd.xlane.f32.xlu0 %v1194
    %v1196 = vpop.xlane.xlu0 %1195
    %v1197 = vrcp.pop %v1193
    %v1198 = vrcp.pop %v1196
    %v1199 = vmul.f32 %v1188, %v1197
    %v1200 = vmul.f32 %v1190, %v1198
    %1201 = vrot.lane.b32.xlu0 %v353, 96
    %v1202 = vpop.permute.xlu0 %1201
    %v1205 = vsel %vm518, %v1199, 0
    %1207 = vmatprep.subr.mxu0 0.0
    %1208 = vmatpush1.msra.mxu0 %v1202
    %1209 = vmatprep.subr.mxu0 0.0
    %1210 = vmatpush1.msra.mxu0 0.0
    %1211 = vmatprep.subr.mxu0 0.0
    %1212 = vmatpush1.msra.mxu0 0.0
    %1213 = vmatprep.subr.mxu0 0.0
    %1214 = vmatpush1.msra.mxu0 0.0
    %1215 = vmatprep.subr.mxu0 0.0
    %1216 = vmatpush1.msra.mxu0 0.0
    %1217 = vmatprep.subr.mxu0 0.0
    %1218 = vmatpush1.msra.mxu0 0.0
    %1219 = vmatprep.subr.mxu0 0.0
    %1220 = vmatpush1.msra.mxu0 0.0
    %1221 = vmatprep.subr.mxu0 0.0
    %1222 = vmatpush1.msra.mxu0 0.0
    %1223 = vmatprep.subr.mxu0 0.0
    %1224 = vmatpush1.msra.mxu0 0.0
    %1225 = vmatprep.subr.mxu0 0.0
    %1226 = vmatpush1.msra.mxu0 0.0
    %1227 = vmatprep.subr.mxu0 0.0
    %1228 = vmatpush1.msra.mxu0 0.0
    %1229 = vmatprep.subr.mxu0 0.0
    %1230 = vmatpush1.msra.mxu0 0.0
    %1231 = vmatprep.subr.mxu0 0.0
    %1232 = vmatpush1.msra.mxu0 0.0
    %1233 = vmatprep.subr.mxu0 0.0
    %1234 = vmatpush1.msra.mxu0 0.0
    %1235 = vmatprep.subr.mxu0 0.0
    %1236 = vmatpush1.msra.mxu0 0.0
    %1237 = vmatprep.subr.mxu0 0.0
    %1238 = vmatpush1.msra.mxu0 0.0
    %1239 = vmatprep.subr.mxu0 0.0
    %1240 = vmatpush1.msra.mxu0 0.0
    %1241 = vmatprep.subr.mxu0 0.0
    %1242 = vmatpush1.msra.mxu0 0.0
    %1243 = vmatprep.subr.mxu0 0.0
    %1244 = vmatpush1.msra.mxu0 0.0
    %1245 = vmatprep.subr.mxu0 0.0
    %1246 = vmatpush1.msra.mxu0 0.0
    %1247 = vmatprep.subr.mxu0 0.0
    %1248 = vmatpush1.msra.mxu0 0.0
    %1249 = vmatprep.subr.mxu0 0.0
    %1250 = vmatpush1.msra.mxu0 0.0
    %1251 = vmatprep.subr.mxu0 0.0
    %1252 = vmatpush1.msra.mxu0 0.0
    %1253 = vmatprep.subr.mxu0 0.0
    %1254 = vmatpush1.msra.mxu0 0.0
    %1255 = vmatprep.subr.mxu0 0.0
    %1256 = vmatpush1.msra.mxu0 0.0
    %1257 = vmatprep.subr.mxu0 0.0
    %1258 = vmatpush1.msra.mxu0 0.0
    %1259 = vmatprep.subr.mxu0 0.0
    %1260 = vmatpush1.msra.mxu0 0.0
    %1261 = vmatprep.subr.mxu0 0.0
    %1262 = vmatpush1.msra.mxu0 0.0
    %1263 = vmatprep.subr.mxu0 0.0
    %1264 = vmatpush1.msra.mxu0 0.0
    %1265 = vmatprep.subr.mxu0 0.0
    %1266 = vmatpush1.msra.mxu0 0.0
    %1267 = vmatprep.subr.mxu0 0.0
    %1268 = vmatpush1.msra.mxu0 0.0
    %1269 = vmatprep.subr.mxu0 0.0
    %1270 = vmatpush1.msra.mxu0 0.0
    %1271 = vmatprep.mubr.f32.mxu0 0.0
    %1272 = vmatmul.mubr.f32.gmra.mrb[0].mxu0 %v1205
    %v1273 = vpop.f32.mrb[0].mxu0
    %v1274 = vadd.f32 0.0, %v1273
    %v1275 = vpop.f32.mrb[0].mxu0
    %1276 = vdwg.mxu0
    %1277 = vrot.lane.b32.xlu0 %v359, 96
    %v1278 = vpop.permute.xlu0 %1277
    %v1281 = vsel %vm518, %v1200, 0
    %1283 = vmatprep.subr.mxu0 0.0
    %1284 = vmatpush1.msra.mxu0 %v1278
    %1285 = vmatprep.subr.mxu0 0.0
    %1286 = vmatpush1.msra.mxu0 0.0
    %1287 = vmatprep.subr.mxu0 0.0
    %1288 = vmatpush1.msra.mxu0 0.0
    %1289 = vmatprep.subr.mxu0 0.0
    %1290 = vmatpush1.msra.mxu0 0.0
    %1291 = vmatprep.subr.mxu0 0.0
    %1292 = vmatpush1.msra.mxu0 0.0
    %1293 = vmatprep.subr.mxu0 0.0
    %1294 = vmatpush1.msra.mxu0 0.0
    %1295 = vmatprep.subr.mxu0 0.0
    %1296 = vmatpush1.msra.mxu0 0.0
    %1297 = vmatprep.subr.mxu0 0.0
    %1298 = vmatpush1.msra.mxu0 0.0
    %1299 = vmatprep.subr.mxu0 0.0
    %1300 = vmatpush1.msra.mxu0 0.0
    %1301 = vmatprep.subr.mxu0 0.0
    %1302 = vmatpush1.msra.mxu0 0.0
    %1303 = vmatprep.subr.mxu0 0.0
    %1304 = vmatpush1.msra.mxu0 0.0
    %1305 = vmatprep.subr.mxu0 0.0
    %1306 = vmatpush1.msra.mxu0 0.0
    %1307 = vmatprep.subr.mxu0 0.0
    %1308 = vmatpush1.msra.mxu0 0.0
    %1309 = vmatprep.subr.mxu0 0.0
    %1310 = vmatpush1.msra.mxu0 0.0
    %1311 = vmatprep.subr.mxu0 0.0
    %1312 = vmatpush1.msra.mxu0 0.0
    %1313 = vmatprep.subr.mxu0 0.0
    %1314 = vmatpush1.msra.mxu0 0.0
    %1315 = vmatprep.subr.mxu0 0.0
    %1316 = vmatpush1.msra.mxu0 0.0
    %1317 = vmatprep.subr.mxu0 0.0
    %1318 = vmatpush1.msra.mxu0 0.0
    %1319 = vmatprep.subr.mxu0 0.0
    %1320 = vmatpush1.msra.mxu0 0.0
    %1321 = vmatprep.subr.mxu0 0.0
    %1322 = vmatpush1.msra.mxu0 0.0
    %1323 = vmatprep.subr.mxu0 0.0
    %1324 = vmatpush1.msra.mxu0 0.0
    %1325 = vmatprep.subr.mxu0 0.0
    %1326 = vmatpush1.msra.mxu0 0.0
    %1327 = vmatprep.subr.mxu0 0.0
    %1328 = vmatpush1.msra.mxu0 0.0
    %1329 = vmatprep.subr.mxu0 0.0
    %1330 = vmatpush1.msra.mxu0 0.0
    %1331 = vmatprep.subr.mxu0 0.0
    %1332 = vmatpush1.msra.mxu0 0.0
    %1333 = vmatprep.subr.mxu0 0.0
    %1334 = vmatpush1.msra.mxu0 0.0
    %1335 = vmatprep.subr.mxu0 0.0
    %1336 = vmatpush1.msra.mxu0 0.0
    %1337 = vmatprep.subr.mxu0 0.0
    %1338 = vmatpush1.msra.mxu0 0.0
    %1339 = vmatprep.subr.mxu0 0.0
    %1340 = vmatpush1.msra.mxu0 0.0
    %1341 = vmatprep.subr.mxu0 0.0
    %1342 = vmatpush1.msra.mxu0 0.0
    %1343 = vmatprep.subr.mxu0 0.0
    %1344 = vmatpush1.msra.mxu0 0.0
    %1345 = vmatprep.subr.mxu0 0.0
    %1346 = vmatpush1.msra.mxu0 0.0
    %1347 = vmatprep.mubr.f32.mxu0 0.0
    %1348 = vmatmul.mubr.f32.gmra.mrb[0].mxu0 %v1281
    %v1349 = vpop.f32.mrb[0].mxu0
    %v1350 = vadd.f32 0.0, %v1349
    %v1351 = vpop.f32.mrb[0].mxu0
    %1352 = vdwg.mxu0
    %1353 = vrot.lane.b32.xlu0 %v351, 80
    %v1354 = vpop.permute.xlu0 %1353
    %1355 = vrot.lane.b32.xlu0 %v351, 16
    %v1356 = vpop.permute.xlu0 %1355
    %v1357 = vsel %vm364, %v1354, 0
    %v1359 = vsel %vm364, %v1356, 0
    %1361 = vmatprep.subr.mxu0 0.0
    %1362 = vmatpush1.xpose.msra.mxu0 %v1359
    %1363 = vmatprep.subr.mxu0 0.0
    %1364 = vmatpush1.xpose.msra.mxu0 0.0
    %1365 = vmatprep.subr.mxu0 0.0
    %1366 = vmatpush1.xpose.msra.mxu0 0.0
    %1367 = vmatprep.subr.mxu0 0.0
    %1368 = vmatpush1.xpose.msra.mxu0 0.0
    %1369 = vmatprep.subr.mxu0 0.0
    %1370 = vmatpush1.xpose.msra.mxu0 0.0
    %1371 = vmatprep.subr.mxu0 0.0
    %1372 = vmatpush1.xpose.msra.mxu0 0.0
    %1373 = vmatprep.subr.mxu0 0.0
    %1374 = vmatpush1.xpose.msra.mxu0 0.0
    %1375 = vmatprep.subr.mxu0 0.0
    %1376 = vmatpush1.xpose.msra.mxu0 0.0
    %1377 = vmatprep.subr.mxu0 0.0
    %1378 = vmatpush1.xpose.msra.mxu0 0.0
    %1379 = vmatprep.subr.mxu0 0.0
    %1380 = vmatpush1.xpose.msra.mxu0 0.0
    %1381 = vmatprep.subr.mxu0 0.0
    %1382 = vmatpush1.xpose.msra.mxu0 0.0
    %1383 = vmatprep.subr.mxu0 0.0
    %1384 = vmatpush1.xpose.msra.mxu0 0.0
    %1385 = vmatprep.subr.mxu0 0.0
    %1386 = vmatpush1.xpose.msra.mxu0 0.0
    %1387 = vmatprep.subr.mxu0 0.0
    %1388 = vmatpush1.xpose.msra.mxu0 0.0
    %1389 = vmatprep.subr.mxu0 0.0
    %1390 = vmatpush1.xpose.msra.mxu0 0.0
    %1391 = vmatprep.subr.mxu0 0.0
    %1392 = vmatpush1.xpose.msra.mxu0 0.0
    %1393 = vmatprep.subr.mxu0 0.0
    %1394 = vmatpush1.xpose.msra.mxu0 0.0
    %1395 = vmatprep.subr.mxu0 0.0
    %1396 = vmatpush1.xpose.msra.mxu0 0.0
    %1397 = vmatprep.subr.mxu0 0.0
    %1398 = vmatpush1.xpose.msra.mxu0 0.0
    %1399 = vmatprep.subr.mxu0 0.0
    %1400 = vmatpush1.xpose.msra.mxu0 0.0
    %1401 = vmatprep.subr.mxu0 0.0
    %1402 = vmatpush1.xpose.msra.mxu0 0.0
    %1403 = vmatprep.subr.mxu0 0.0
    %1404 = vmatpush1.xpose.msra.mxu0 0.0
    %1405 = vmatprep.subr.mxu0 0.0
    %1406 = vmatpush1.xpose.msra.mxu0 0.0
    %1407 = vmatprep.subr.mxu0 0.0
    %1408 = vmatpush1.xpose.msra.mxu0 0.0
    %1409 = vmatprep.subr.mxu0 0.0
    %1410 = vmatpush1.xpose.msra.mxu0 0.0
    %1411 = vmatprep.subr.mxu0 0.0
    %1412 = vmatpush1.xpose.msra.mxu0 0.0
    %1413 = vmatprep.subr.mxu0 0.0
    %1414 = vmatpush1.xpose.msra.mxu0 0.0
    %1415 = vmatprep.subr.mxu0 0.0
    %1416 = vmatpush1.xpose.msra.mxu0 0.0
    %1417 = vmatprep.subr.mxu0 0.0
    %1418 = vmatpush1.xpose.msra.mxu0 0.0
    %1419 = vmatprep.subr.mxu0 0.0
    %1420 = vmatpush1.xpose.msra.mxu0 0.0
    %1421 = vmatprep.subr.mxu0 0.0
    %1422 = vmatpush1.xpose.msra.mxu0 0.0
    %1423 = vmatprep.subr.mxu0 0.0
    %1424 = vmatpush1.xpose.msra.mxu0 0.0
    %1425 = vmatprep.mubr.f32.mxu0 0.0
    %1426 = vmatmul.mubr.f32.gmra.mrb[0].mxu0 %v1357
    %v1427 = vpop.f32.mrb[0].mxu0
    %v1428 = vadd.f32 0.0, %v1427
    %v1429 = vpop.f32.mrb[0].mxu0
    %1430 = vdwg.mxu0
    %1431 = vrot.lane.b32.xlu0 %v357, 80
    %v1432 = vpop.permute.xlu0 %1431
    %1433 = vrot.lane.b32.xlu0 %v357, 16
    %v1434 = vpop.permute.xlu0 %1433
    %v1435 = vsel %vm364, %v1432, 0
    %v1437 = vsel %vm364, %v1434, 0
    %1439 = vmatprep.subr.mxu0 0.0
    %1440 = vmatpush1.xpose.msra.mxu0 %v1437
    %1441 = vmatprep.subr.mxu0 0.0
    %1442 = vmatpush1.xpose.msra.mxu0 0.0
    %1443 = vmatprep.subr.mxu0 0.0
    %1444 = vmatpush1.xpose.msra.mxu0 0.0
    %1445 = vmatprep.subr.mxu0 0.0
    %1446 = vmatpush1.xpose.msra.mxu0 0.0
    %1447 = vmatprep.subr.mxu0 0.0
    %1448 = vmatpush1.xpose.msra.mxu0 0.0
    %1449 = vmatprep.subr.mxu0 0.0
    %1450 = vmatpush1.xpose.msra.mxu0 0.0
    %1451 = vmatprep.subr.mxu0 0.0
    %1452 = vmatpush1.xpose.msra.mxu0 0.0
    %1453 = vmatprep.subr.mxu0 0.0
    %1454 = vmatpush1.xpose.msra.mxu0 0.0
    %1455 = vmatprep.subr.mxu0 0.0
    %1456 = vmatpush1.xpose.msra.mxu0 0.0
    %1457 = vmatprep.subr.mxu0 0.0
    %1458 = vmatpush1.xpose.msra.mxu0 0.0
    %1459 = vmatprep.subr.mxu0 0.0
    %1460 = vmatpush1.xpose.msra.mxu0 0.0
    %1461 = vmatprep.subr.mxu0 0.0
    %1462 = vmatpush1.xpose.msra.mxu0 0.0
    %1463 = vmatprep.subr.mxu0 0.0
    %1464 = vmatpush1.xpose.msra.mxu0 0.0
    %1465 = vmatprep.subr.mxu0 0.0
    %1466 = vmatpush1.xpose.msra.mxu0 0.0
    %1467 = vmatprep.subr.mxu0 0.0
    %1468 = vmatpush1.xpose.msra.mxu0 0.0
    %1469 = vmatprep.subr.mxu0 0.0
    %1470 = vmatpush1.xpose.msra.mxu0 0.0
    %1471 = vmatprep.subr.mxu0 0.0
    %1472 = vmatpush1.xpose.msra.mxu0 0.0
    %1473 = vmatprep.subr.mxu0 0.0
    %1474 = vmatpush1.xpose.msra.mxu0 0.0
    %1475 = vmatprep.subr.mxu0 0.0
    %1476 = vmatpush1.xpose.msra.mxu0 0.0
    %1477 = vmatprep.subr.mxu0 0.0
    %1478 = vmatpush1.xpose.msra.mxu0 0.0
    %1479 = vmatprep.subr.mxu0 0.0
    %1480 = vmatpush1.xpose.msra.mxu0 0.0
    %1481 = vmatprep.subr.mxu0 0.0
    %1482 = vmatpush1.xpose.msra.mxu0 0.0
    %1483 = vmatprep.subr.mxu0 0.0
    %1484 = vmatpush1.xpose.msra.mxu0 0.0
    %1485 = vmatprep.subr.mxu0 0.0
    %1486 = vmatpush1.xpose.msra.mxu0 0.0
    %1487 = vmatprep.subr.mxu0 0.0
    %1488 = vmatpush1.xpose.msra.mxu0 0.0
    %1489 = vmatprep.subr.mxu0 0.0
    %1490 = vmatpush1.xpose.msra.mxu0 0.0
    %1491 = vmatprep.subr.mxu0 0.0
    %1492 = vmatpush1.xpose.msra.mxu0 0.0
    %1493 = vmatprep.subr.mxu0 0.0
    %1494 = vmatpush1.xpose.msra.mxu0 0.0
    %1495 = vmatprep.subr.mxu0 0.0
    %1496 = vmatpush1.xpose.msra.mxu0 0.0
    %1497 = vmatprep.subr.mxu0 0.0
    %1498 = vmatpush1.xpose.msra.mxu0 0.0
    %1499 = vmatprep.subr.mxu0 0.0
    %1500 = vmatpush1.xpose.msra.mxu0 0.0
    %1501 = vmatprep.subr.mxu0 0.0
    %1502 = vmatpush1.xpose.msra.mxu0 0.0
    %1503 = vmatprep.mubr.f32.mxu0 0.0
    %1504 = vmatmul.mubr.f32.gmra.mrb[0].mxu0 %v1435
    %v1505 = vpop.f32.mrb[0].mxu0
    %v1506 = vadd.f32 0.0, %v1505
    %v1507 = vpop.f32.mrb[0].mxu0
    %1508 = vdwg.mxu0
    %v1509 = vmul.f32 %v1428, 0.25
    %v1510 = vmul.f32 %v1506, 0.25
    %v1511 = vsel %vm518, %v1509, -inf
    %1512 = vmax.xlane.f32.xlu0 %v1511
    %v1513 = vpop.xlane.xlu0 %1512
    %v1514 = vsel %vm518, %v1510, -inf
    %1515 = vmax.xlane.f32.xlu0 %v1514
    %v1516 = vpop.xlane.xlu0 %1515
    %v1517 = vsub.f32 %v1509, %v1513
    %v1518 = vsub.f32 %v1510, %v1516
    %v1519 = vmul.f32 %v1517, 1.442695
    %v1520 = vpow.pop %v1519
    %v1521 = vmul.f32 %v1518, 1.442695
    %v1522 = vpow.pop %v1521
    %v1523 = vsel %vm518, %v1520, 0.0
    %1524 = vadd.xlane.f32.xlu0 %v1523
    %v1525 = vpop.xlane.xlu0 %1524
    %v1526 = vsel %vm518, %v1522, 0.0
    %1527 = vadd.xlane.f32.xlu0 %v1526
    %v1528 = vpop.xlane.xlu0 %1527
    %v1529 = vrcp.pop %v1525
    %v1530 = vrcp.pop %v1528
    %v1531 = vmul.f32 %v1520, %v1529
    %v1532 = vmul.f32 %v1522, %v1530
    %1533 = vrot.lane.b32.xlu0 %v353, 80
    %v1534 = vpop.permute.xlu0 %1533
    %v1537 = vsel %vm518, %v1531, 0
    %1539 = vmatprep.subr.mxu0 0.0
    %1540 = vmatpush1.msra.mxu0 %v1534
    %1541 = vmatprep.subr.mxu0 0.0
    %1542 = vmatpush1.msra.mxu0 0.0
    %1543 = vmatprep.subr.mxu0 0.0
    %1544 = vmatpush1.msra.mxu0 0.0
    %1545 = vmatprep.subr.mxu0 0.0
    %1546 = vmatpush1.msra.mxu0 0.0
    %1547 = vmatprep.subr.mxu0 0.0
    %1548 = vmatpush1.msra.mxu0 0.0
    %1549 = vmatprep.subr.mxu0 0.0
    %1550 = vmatpush1.msra.mxu0 0.0
    %1551 = vmatprep.subr.mxu0 0.0
    %1552 = vmatpush1.msra.mxu0 0.0
    %1553 = vmatprep.subr.mxu0 0.0
    %1554 = vmatpush1.msra.mxu0 0.0
    %1555 = vmatprep.subr.mxu0 0.0
    %1556 = vmatpush1.msra.mxu0 0.0
    %1557 = vmatprep.subr.mxu0 0.0
    %1558 = vmatpush1.msra.mxu0 0.0
    %1559 = vmatprep.subr.mxu0 0.0
    %1560 = vmatpush1.msra.mxu0 0.0
    %1561 = vmatprep.subr.mxu0 0.0
    %1562 = vmatpush1.msra.mxu0 0.0
    %1563 = vmatprep.subr.mxu0 0.0
    %1564 = vmatpush1.msra.mxu0 0.0
    %1565 = vmatprep.subr.mxu0 0.0
    %1566 = vmatpush1.msra.mxu0 0.0
    %1567 = vmatprep.subr.mxu0 0.0
    %1568 = vmatpush1.msra.mxu0 0.0
    %1569 = vmatprep.subr.mxu0 0.0
    %1570 = vmatpush1.msra.mxu0 0.0
    %1571 = vmatprep.subr.mxu0 0.0
    %1572 = vmatpush1.msra.mxu0 0.0
    %1573 = vmatprep.subr.mxu0 0.0
    %1574 = vmatpush1.msra.mxu0 0.0
    %1575 = vmatprep.subr.mxu0 0.0
    %1576 = vmatpush1.msra.mxu0 0.0
    %1577 = vmatprep.subr.mxu0 0.0
    %1578 = vmatpush1.msra.mxu0 0.0
    %1579 = vmatprep.subr.mxu0 0.0
    %1580 = vmatpush1.msra.mxu0 0.0
    %1581 = vmatprep.subr.mxu0 0.0
    %1582 = vmatpush1.msra.mxu0 0.0
    %1583 = vmatprep.subr.mxu0 0.0
    %1584 = vmatpush1.msra.mxu0 0.0
    %1585 = vmatprep.subr.mxu0 0.0
    %1586 = vmatpush1.msra.mxu0 0.0
    %1587 = vmatprep.subr.mxu0 0.0
    %1588 = vmatpush1.msra.mxu0 0.0
    %1589 = vmatprep.subr.mxu0 0.0
    %1590 = vmatpush1.msra.mxu0 0.0
    %1591 = vmatprep.subr.mxu0 0.0
    %1592 = vmatpush1.msra.mxu0 0.0
    %1593 = vmatprep.subr.mxu0 0.0
    %1594 = vmatpush1.msra.mxu0 0.0
    %1595 = vmatprep.subr.mxu0 0.0
    %1596 = vmatpush1.msra.mxu0 0.0
    %1597 = vmatprep.subr.mxu0 0.0
    %1598 = vmatpush1.msra.mxu0 0.0
    %1599 = vmatprep.subr.mxu0 0.0
    %1600 = vmatpush1.msra.mxu0 0.0
    %1601 = vmatprep.subr.mxu0 0.0
    %1602 = vmatpush1.msra.mxu0 0.0
    %1603 = vmatprep.mubr.f32.mxu0 0.0
    %1604 = vmatmul.mubr.f32.gmra.mrb[0].mxu0 %v1537
    %v1605 = vpop.f32.mrb[0].mxu0
    %v1606 = vadd.f32 0.0, %v1605
    %v1607 = vpop.f32.mrb[0].mxu0
    %1608 = vdwg.mxu0
    %1609 = vrot.lane.b32.xlu0 %v359, 80
    %v1610 = vpop.permute.xlu0 %1609
    %v1613 = vsel %vm518, %v1532, 0
    %1615 = vmatprep.subr.mxu0 0.0
    %1616 = vmatpush1.msra.mxu0 %v1610
    %1617 = vmatprep.subr.mxu0 0.0
    %1618 = vmatpush1.msra.mxu0 0.0
    %1619 = vmatprep.subr.mxu0 0.0
    %1620 = vmatpush1.msra.mxu0 0.0
    %1621 = vmatprep.subr.mxu0 0.0
    %1622 = vmatpush1.msra.mxu0 0.0
    %1623 = vmatprep.subr.mxu0 0.0
    %1624 = vmatpush1.msra.mxu0 0.0
    %1625 = vmatprep.subr.mxu0 0.0
    %1626 = vmatpush1.msra.mxu0 0.0
    %1627 = vmatprep.subr.mxu0 0.0
    %1628 = vmatpush1.msra.mxu0 0.0
    %1629 = vmatprep.subr.mxu0 0.0
    %1630 = vmatpush1.msra.mxu0 0.0
    %1631 = vmatprep.subr.mxu0 0.0
    %1632 = vmatpush1.msra.mxu0 0.0
    %1633 = vmatprep.subr.mxu0 0.0
    %1634 = vmatpush1.msra.mxu0 0.0
    %1635 = vmatprep.subr.mxu0 0.0
    %1636 = vmatpush1.msra.mxu0 0.0
    %1637 = vmatprep.subr.mxu0 0.0
    %1638 = vmatpush1.msra.mxu0 0.0
    %1639 = vmatprep.subr.mxu0 0.0
    %1640 = vmatpush1.msra.mxu0 0.0
    %1641 = vmatprep.subr.mxu0 0.0
    %1642 = vmatpush1.msra.mxu0 0.0
    %1643 = vmatprep.subr.mxu0 0.0
    %1644 = vmatpush1.msra.mxu0 0.0
    %1645 = vmatprep.subr.mxu0 0.0
    %1646 = vmatpush1.msra.mxu0 0.0
    %1647 = vmatprep.subr.mxu0 0.0
    %1648 = vmatpush1.msra.mxu0 0.0
    %1649 = vmatprep.subr.mxu0 0.0
    %1650 = vmatpush1.msra.mxu0 0.0
    %1651 = vmatprep.subr.mxu0 0.0
    %1652 = vmatpush1.msra.mxu0 0.0
    %1653 = vmatprep.subr.mxu0 0.0
    %1654 = vmatpush1.msra.mxu0 0.0
    %1655 = vmatprep.subr.mxu0 0.0
    %1656 = vmatpush1.msra.mxu0 0.0
    %1657 = vmatprep.subr.mxu0 0.0
    %1658 = vmatpush1.msra.mxu0 0.0
    %1659 = vmatprep.subr.mxu0 0.0
    %1660 = vmatpush1.msra.mxu0 0.0
    %1661 = vmatprep.subr.mxu0 0.0
    %1662 = vmatpush1.msra.mxu0 0.0
    %1663 = vmatprep.subr.mxu0 0.0
    %1664 = vmatpush1.msra.mxu0 0.0
    %1665 = vmatprep.subr.mxu0 0.0
    %1666 = vmatpush1.msra.mxu0 0.0
    %1667 = vmatprep.subr.mxu0 0.0
    %1668 = vmatpush1.msra.mxu0 0.0
    %1669 = vmatprep.subr.mxu0 0.0
    %1670 = vmatpush1.msra.mxu0 0.0
    %1671 = vmatprep.subr.mxu0 0.0
    %1672 = vmatpush1.msra.mxu0 0.0
    %1673 = vmatprep.subr.mxu0 0.0
    %1674 = vmatpush1.msra.mxu0 0.0
    %1675 = vmatprep.subr.mxu0 0.0
    %1676 = vmatpush1.msra.mxu0 0.0
    %1677 = vmatprep.subr.mxu0 0.0
    %1678 = vmatpush1.msra.mxu0 0.0
    %1679 = vmatprep.mubr.f32.mxu0 0.0
    %1680 = vmatmul.mubr.f32.gmra.mrb[0].mxu0 %v1613
    %v1681 = vpop.f32.mrb[0].mxu0
    %v1682 = vadd.f32 0.0, %v1681
    %v1683 = vpop.f32.mrb[0].mxu0
    %1684 = vdwg.mxu0
    %1687 = vrot.lane.b32.xlu0 %v941, 16
    %v1688 = vpop.permute.xlu0 %1687
    %1689 = vrot.lane.b32.xlu0 %v1018, 16
    %v1690 = vpop.permute.xlu0 %1689
    %1695 = vrot.lane.b32.xlu0 %v1274, 32
    %v1696 = vpop.permute.xlu0 %1695
    %1697 = vrot.lane.b32.xlu0 %v1350, 32
    %v1698 = vpop.permute.xlu0 %1697
    %1703 = vrot.lane.b32.xlu0 %v1606, 48
    %v1704 = vpop.permute.xlu0 %1703
    %1705 = vrot.lane.b32.xlu0 %v1682, 48
    %v1706 = vpop.permute.xlu0 %1705
    %v1709 = vsel %vm364, %v611, %v1688
    %v1710 = vsel %vm364, %v684, %v1690
    %vm1711 = vcmask 261120
    %v1712 = vsel %vm1711, %v1709, %v1696
    %v1713 = vsel %vm1711, %v1710, %v1698
    %v1714 = vsel %vm277, %v1712, %v1704
    %v1715 = vsel %vm277, %v1713, %v1706
    %1724 = vrot.lane.b32.xlu0 %v64, 80
    %v1725 = vpop.permute.xlu0 %1724
    %1726 = vrot.lane.b32.xlu0 %v65, 80
    %v1727 = vpop.permute.xlu0 %1726
    %1728 = vrot.lane.b32.xlu0 %v66, 80
    %v1729 = vpop.permute.xlu0 %1728
    %1730 = vrot.lane.b32.xlu0 %v67, 80
    %v1731 = vpop.permute.xlu0 %1730
    %1732 = vrot.lane.b32.xlu0 %v68, 80
    %v1733 = vpop.permute.xlu0 %1732
    %1734 = vrot.lane.b32.xlu0 %v69, 80
    %v1735 = vpop.permute.xlu0 %1734
    %1736 = vrot.lane.b32.xlu0 %v70, 80
    %v1737 = vpop.permute.xlu0 %1736
    %1738 = vrot.lane.b32.xlu0 %v71, 80
    %v1739 = vpop.permute.xlu0 %1738
    %v1749 = vsel %vm77, %v1714, 0
    %v1752 = vsel %vm77, %v1715, 0
    %1754 = vmatprep.subr.mxu0 0.0
    %1755 = vmatpush1.msra.mxu0 %v1725
    %1756 = vmatprep.subr.mxu0 0.0
    %1757 = vmatpush1.msra.mxu0 %v1727
    %1758 = vmatprep.subr.mxu0 0.0
    %1759 = vmatpush1.msra.mxu0 %v1729
    %1760 = vmatprep.subr.mxu0 0.0
    %1761 = vmatpush1.msra.mxu0 %v1731
    %1762 = vmatprep.subr.mxu0 0.0
    %1763 = vmatpush1.msra.mxu0 %v1733
    %1764 = vmatprep.subr.mxu0 0.0
    %1765 = vmatpush1.msra.mxu0 %v1735
    %1766 = vmatprep.subr.mxu0 0.0
    %1767 = vmatpush1.msra.mxu0 %v1737
    %1768 = vmatprep.subr.mxu0 0.0
    %1769 = vmatpush1.msra.mxu0 %v1739
    %1770 = vmatprep.subr.mxu0 0.0
    %1771 = vmatpush1.msra.mxu0 0.0
    %1772 = vmatprep.subr.mxu0 0.0
    %1773 = vmatpush1.msra.mxu0 0.0
    %1774 = vmatprep.subr.mxu0 0.0
    %1775 = vmatpush1.msra.mxu0 0.0
    %1776 = vmatprep.subr.mxu0 0.0
    %1777 = vmatpush1.msra.mxu0 0.0
    %1778 = vmatprep.subr.mxu0 0.0
    %1779 = vmatpush1.msra.mxu0 0.0
    %1780 = vmatprep.subr.mxu0 0.0
    %1781 = vmatpush1.msra.mxu0 0.0
    %1782 = vmatprep.subr.mxu0 0.0
    %1783 = vmatpush1.msra.mxu0 0.0
    %1784 = vmatprep.subr.mxu0 0.0
    %1785 = vmatpush1.msra.mxu0 0.0
    %1786 = vmatprep.subr.mxu0 0.0
    %1787 = vmatpush1.msra.mxu0 0.0
    %1788 = vmatprep.subr.mxu0 0.0
    %1789 = vmatpush1.msra.mxu0 0.0
    %1790 = vmatprep.subr.mxu0 0.0
    %1791 = vmatpush1.msra.mxu0 0.0
    %1792 = vmatprep.subr.mxu0 0.0
    %1793 = vmatpush1.msra.mxu0 0.0
    %1794 = vmatprep.subr.mxu0 0.0
    %1795 = vmatpush1.msra.mxu0 0.0
    %1796 = vmatprep.subr.mxu0 0.0
    %1797 = vmatpush1.msra.mxu0 0.0
    %1798 = vmatprep.subr.mxu0 0.0
    %1799 = vmatpush1.msra.mxu0 0.0
    %1800 = vmatprep.subr.mxu0 0.0
    %1801 = vmatpush1.msra.mxu0 0.0
    %1802 = vmatprep.subr.mxu0 0.0
    %1803 = vmatpush1.msra.mxu0 0.0
    %1804 = vmatprep.subr.mxu0 0.0
    %1805 = vmatpush1.msra.mxu0 0.0
    %1806 = vmatprep.subr.mxu0 0.0
    %1807 = vmatpush1.msra.mxu0 0.0
    %1808 = vmatprep.subr.mxu0 0.0
    %1809 = vmatpush1.msra.mxu0 0.0
    %1810 = vmatprep.subr.mxu0 0.0
    %1811 = vmatpush1.msra.mxu0 0.0
    %1812 = vmatprep.subr.mxu0 0.0
    %1813 = vmatpush1.msra.mxu0 0.0
    %1814 = vmatprep.subr.mxu0 0.0
    %1815 = vmatpush1.msra.mxu0 0.0
    %1816 = vmatprep.subr.mxu0 0.0
    %1817 = vmatpush1.msra.mxu0 0.0
    %1818 = vmatprep.mubr.f32.mxu0 0.0
    %1819 = vmatmul.mubr.f32.gmra.mrb[0].mxu0 %v1749
    %v1820 = vpop.f32.mrb[0].mxu0
    %v1821 = vadd.f32 0.0, %v1820
    %v1822 = vpop.f32.mrb[0].mxu0
    %1823 = vmatprep.mubr.f32.mxu0 0.0
    %1824 = vmatmul.mubr.f32.gmra.mrb[0].mxu0 %v1752
    %v1825 = vpop.f32.mrb[0].mxu0
    %v1826 = vadd.f32 0.0, %v1825
    %v1827 = vpop.f32.mrb[0].mxu0
    %1828 = vdwg.mxu0
    %v1829 = vmul.f32 %v1821, 0.5
    %v1830 = vmul.f32 %v1826, 0.5
    %v1831 = vmul.f32 %v1821, 0.70710677
    %v1832 = vmul.f32 %v1826, 0.70710677
    %v1833 = vand.u32 2147483647, %v1831
    %v1834 = vand.u32 2147483647, %v1832
    %v1835 = vmul.f32 %v1833, 0.3275911
    %v1836 = vmul.f32 %v1834, 0.3275911
    %v1837 = vadd.f32 %v1835, 1.0
    %v1838 = vadd.f32 %v1836, 1.0
    %v1839 = vrcp.pop %v1837
    %v1840 = vmul.f32 1.0, %v1839
    %v1841 = vrcp.pop %v1838
    %v1842 = vmul.f32 1.0, %v1841
    %v1843 = vmul.f32 %v1840, 1.0614054
    %v1844 = vmul.f32 %v1842, 1.0614054
    %v1845 = vadd.f32 %v1843, -1.4531521
    %v1846 = vadd.f32 %v1844, -1.4531521
    %v1847 = vmul.f32 %v1845, %v1840
    %v1848 = vmul.f32 %v1846, %v1842
    %v1849 = vadd.f32 %v1847, 1.4214138
    %v1850 = vadd.f32 %v1848, 1.4214138
    %v1851 = vmul.f32 %v1849, %v1840
    %v1852 = vmul.f32 %v1850, %v1842
    %v1853 = vadd.f32 %v1851, -0.28449672
    %v1854 = vadd.f32 %v1852, -0.28449672
    %v1855 = vmul.f32 %v1853, %v1840
    %v1856 = vmul.f32 %v1854, %v1842
    %v1857 = vadd.f32 %v1855, 0.2548296
    %v1858 = vadd.f32 %v1856, 0.2548296
    %v1859 = vmul.f32 %v1857, %v1840
    %v1860 = vmul.f32 %v1858, %v1842
    %v1861 = vsub.f32 0.0, %v1833
    %v1862 = vsub.f32 0.0, %v1834
    %v1863 = vmul.f32 %v1861, %v1833
    %v1864 = vmul.f32 %v1862, %v1834
    %v1865 = vmul.f32 %v1863, 1.442695
    %v1866 = vpow.pop %v1865
    %v1867 = vmul.f32 %v1864, 1.442695
    %v1868 = vpow.pop %v1867
    %v1869 = vmul.f32 %v1859, %v1866
    %v1870 = vmul.f32 %v1860, %v1868
    %v1871 = vsub.f32 1.0, %v1869
    %v1872 = vsub.f32 1.0, %v1870
    %vm1873 = vcmp.lt.f32.partialorder %v1831, 0.0
    %vm1874 = vcmp.lt.f32.partialorder %v1832, 0.0
    %v1875 = vsub.f32 0.0, %v1871
    %v1876 = vsub.f32 0.0, %v1872
    %v1877 = vsel %vm1873, %v1875, %v1871
    %v1878 = vsel %vm1874, %v1876, %v1872
    %v1879 = vadd.f32 %v1877, 1.0
    %v1880 = vadd.f32 %v1878, 1.0
    %v1881 = vmul.f32 %v1829, %v1879
    %v1882 = vmul.f32 %v1830, %v1880
    %v1883 = vld [vmem:[#allocation4 + $0x2] sm:$0x1]
    %v1885 = vlaneseq
    %v1886 = vshrl.u32 %v1885, 7
    %v1887 = vsub.s32 0, %v1886
    %v1888 = vrot.slane %v1883, %v1887
    %v1891 = vsel %vm364, %v1881, 0
    %v1894 = vsel %vm364, %v1882, 0
    %1896 = vmatprep.subr.mxu0 0.0
    %1897 = vmatpush1.msra.mxu0 %v74
    %1898 = vmatprep.subr.mxu0 0.0
    %1899 = vmatpush1.msra.mxu0 %v75
    %1900 = vmatprep.subr.mxu0 0.0
    %1901 = vmatpush1.msra.mxu0 0.0
    %1902 = vmatprep.subr.mxu0 0.0
    %1903 = vmatpush1.msra.mxu0 0.0
    %1904 = vmatprep.subr.mxu0 0.0
    %1905 = vmatpush1.msra.mxu0 0.0
    %1906 = vmatprep.subr.mxu0 0.0
    %1907 = vmatpush1.msra.mxu0 0.0
    %1908 = vmatprep.subr.mxu0 0.0
    %1909 = vmatpush1.msra.mxu0 0.0
    %1910 = vmatprep.subr.mxu0 0.0
    %1911 = vmatpush1.msra.mxu0 0.0
    %1912 = vmatprep.subr.mxu0 0.0
    %1913 = vmatpush1.msra.mxu0 0.0
    %1914 = vmatprep.subr.mxu0 0.0
    %1915 = vmatpush1.msra.mxu0 0.0
    %1916 = vmatprep.subr.mxu0 0.0
    %1917 = vmatpush1.msra.mxu0 0.0
    %1918 = vmatprep.subr.mxu0 0.0
    %1919 = vmatpush1.msra.mxu0 0.0
    %1920 = vmatprep.subr.mxu0 0.0
    %1921 = vmatpush1.msra.mxu0 0.0
    %1922 = vmatprep.subr.mxu0 0.0
    %1923 = vmatpush1.msra.mxu0 0.0
    %1924 = vmatprep.subr.mxu0 0.0
    %1925 = vmatpush1.msra.mxu0 0.0
    %1926 = vmatprep.subr.mxu0 0.0
    %1927 = vmatpush1.msra.mxu0 0.0
    %1928 = vmatprep.subr.mxu0 0.0
    %1929 = vmatpush1.msra.mxu0 0.0
    %1930 = vmatprep.subr.mxu0 0.0
    %1931 = vmatpush1.msra.mxu0 0.0
    %1932 = vmatprep.subr.mxu0 0.0
    %1933 = vmatpush1.msra.mxu0 0.0
    %1934 = vmatprep.subr.mxu0 0.0
    %1935 = vmatpush1.msra.mxu0 0.0
    %1936 = vmatprep.subr.mxu0 0.0
    %1937 = vmatpush1.msra.mxu0 0.0
    %1938 = vmatprep.subr.mxu0 0.0
    %1939 = vmatpush1.msra.mxu0 0.0
    %1940 = vmatprep.subr.mxu0 0.0
    %1941 = vmatpush1.msra.mxu0 0.0
    %1942 = vmatprep.subr.mxu0 0.0
    %1943 = vmatpush1.msra.mxu0 0.0
    %1944 = vmatprep.subr.mxu0 0.0
    %1945 = vmatpush1.msra.mxu0 0.0
    %1946 = vmatprep.subr.mxu0 0.0
    %1947 = vmatpush1.msra.mxu0 0.0
    %1948 = vmatprep.subr.mxu0 0.0
    %1949 = vmatpush1.msra.mxu0 0.0
    %1950 = vmatprep.subr.mxu0 0.0
    %1951 = vmatpush1.msra.mxu0 0.0
    %1952 = vmatprep.subr.mxu0 0.0
    %1953 = vmatpush1.msra.mxu0 0.0
    %1954 = vmatprep.subr.mxu0 0.0
    %1955 = vmatpush1.msra.mxu0 0.0
    %1956 = vmatprep.subr.mxu0 0.0
    %1957 = vmatpush1.msra.mxu0 0.0
    %1958 = vmatprep.subr.mxu0 0.0
    %1959 = vmatpush1.msra.mxu0 0.0
    %1960 = vmatprep.mubr.f32.mxu0 0.0
    %1961 = vmatmul.mubr.f32.gmra.mrb[0].mxu0 %v1891
    %v1962 = vpop.f32.mrb[0].mxu0
    %v1963 = vadd.f32 %v1888, %v1962
    %v1964 = vpop.f32.mrb[0].mxu0
    %1965 = vmatprep.mubr.f32.mxu0 0.0
    %1966 = vmatmul.mubr.f32.gmra.mrb[0].mxu0 %v1894
    %v1967 = vpop.f32.mrb[0].mxu0
    %v1968 = vadd.f32 %v1888, %v1967
    %v1969 = vpop.f32.mrb[0].mxu0
    %1970 = vdwg.mxu0
    %v1971 = vadd.f32 %v62, %v1963
    %v1972 = vadd.f32 %v63, %v1968
    %v1973 = vld [vmem:[#allocation4 + $0x1] sm:$0x1]
    %v1974 = vsel %vm77, %v1971, 0.0
    %1975 = vadd.xlane.f32.xlu0 %v1974
    %v1976 = vpop.xlane.xlu0 %1975
    %v1977 = vsel %vm77, %v1972, 0.0
    %1978 = vadd.xlane.f32.xlu0 %v1977
    %v1979 = vpop.xlane.xlu0 %1978
    %v1980 = vmul.f32 %v1976, %v84
    %v1981 = vmul.f32 %v1979, %v84
    %v1982 = vsub.f32 %v1971, %v1980
    %v1983 = vsub.f32 %v1972, %v1981
    %v1984 = vmul.f32 %v1982, %v1982
    %v1985 = vmul.f32 %v1983, %v1983
    %v1986 = vsel %vm77, %v1984, 0.0
    %1987 = vadd.xlane.f32.xlu0 %v1986
    %v1988 = vpop.xlane.xlu0 %1987
    %v1989 = vsel %vm77, %v1985, 0.0
    %1990 = vadd.xlane.f32.xlu0 %v1989
    %v1991 = vpop.xlane.xlu0 %1990
    %v1992 = vmul.f32 %v1988, %v84
    %v1993 = vmul.f32 %v1991, %v84
    %v1994 = vadd.f32 %v1992, 1e-05
    %v1995 = vadd.f32 %v1993, 1e-05
    %v1996 = vrsqrt.pop %v1994
    %v1997 = vrsqrt.pop %v1995
    %v1998 = vmul.f32 %v1982, %v1996
    %v1999 = vmul.f32 %v1983, %v1997
    %v2001 = vlaneseq
    %v2002 = vshrl.u32 %v2001, 7
    %v2003 = vsub.s32 0, %v2002
    %v2004 = vrot.slane %v1973, %v2003
    %v2006 = vmul.f32 %v1998, %v2004
    %v2007 = vmul.f32 %v1999, %v2004
    %2008 = vrot.lane.b32.xlu0 %v2004, 64
    %v2009 = vpop.permute.xlu0 %2008
    %v2011 = vadd.f32 %v2006, %v2009
    %v2012 = vadd.f32 %v2007, %v2009
    %2013 = vrot.lane.b32.xlu0 %v64, 64
    %v2014 = vpop.permute.xlu0 %2013
    %2015 = vrot.lane.b32.xlu0 %v65, 64
    %v2016 = vpop.permute.xlu0 %2015
    %2017 = vrot.lane.b32.xlu0 %v66, 64
    %v2018 = vpop.permute.xlu0 %2017
    %2019 = vrot.lane.b32.xlu0 %v67, 64
    %v2020 = vpop.permute.xlu0 %2019
    %2021 = vrot.lane.b32.xlu0 %v68, 64
    %v2022 = vpop.permute.xlu0 %2021
    %2023 = vrot.lane.b32.xlu0 %v69, 64
    %v2024 = vpop.permute.xlu0 %2023
    %2025 = vrot.lane.b32.xlu0 %v70, 64
    %v2026 = vpop.permute.xlu0 %2025
    %2027 = vrot.lane.b32.xlu0 %v71, 64
    %v2028 = vpop.permute.xlu0 %2027
    %v2038 = vsel %vm77, %v2011, 0
    %v2041 = vsel %vm77, %v2012, 0
    %2043 = vmatprep.subr.mxu0 0.0
    %2044 = vmatpush1.msra.mxu0 %v2014
    %2045 = vmatprep.subr.mxu0 0.0
    %2046 = vmatpush1.msra.mxu0 %v2016
    %2047 = vmatprep.subr.mxu0 0.0
    %2048 = vmatpush1.msra.mxu0 %v2018
    %2049 = vmatprep.subr.mxu0 0.0
    %2050 = vmatpush1.msra.mxu0 %v2020
    %2051 = vmatprep.subr.mxu0 0.0
    %2052 = vmatpush1.msra.mxu0 %v2022
    %2053 = vmatprep.subr.mxu0 0.0
    %2054 = vmatpush1.msra.mxu0 %v2024
    %2055 = vmatprep.subr.mxu0 0.0
    %2056 = vmatpush1.msra.mxu0 %v2026
    %2057 = vmatprep.subr.mxu0 0.0
    %2058 = vmatpush1.msra.mxu0 %v2028
    %2059 = vmatprep.subr.mxu0 0.0
    %2060 = vmatpush1.msra.mxu0 0.0
    %2061 = vmatprep.subr.mxu0 0.0
    %2062 = vmatpush1.msra.mxu0 0.0
    %2063 = vmatprep.subr.mxu0 0.0
    %2064 = vmatpush1.msra.mxu0 0.0
    %2065 = vmatprep.subr.mxu0 0.0
    %2066 = vmatpush1.msra.mxu0 0.0
    %2067 = vmatprep.subr.mxu0 0.0
    %2068 = vmatpush1.msra.mxu0 0.0
    %2069 = vmatprep.subr.mxu0 0.0
    %2070 = vmatpush1.msra.mxu0 0.0
    %2071 = vmatprep.subr.mxu0 0.0
    %2072 = vmatpush1.msra.mxu0 0.0
    %2073 = vmatprep.subr.mxu0 0.0
    %2074 = vmatpush1.msra.mxu0 0.0
    %2075 = vmatprep.subr.mxu0 0.0
    %2076 = vmatpush1.msra.mxu0 0.0
    %2077 = vmatprep.subr.mxu0 0.0
    %2078 = vmatpush1.msra.mxu0 0.0
    %2079 = vmatprep.subr.mxu0 0.0
    %2080 = vmatpush1.msra.mxu0 0.0
    %2081 = vmatprep.subr.mxu0 0.0
    %2082 = vmatpush1.msra.mxu0 0.0
    %2083 = vmatprep.subr.mxu0 0.0
    %2084 = vmatpush1.msra.mxu0 0.0
    %2085 = vmatprep.subr.mxu0 0.0
    %2086 = vmatpush1.msra.mxu0 0.0
    %2087 = vmatprep.subr.mxu0 0.0
    %2088 = vmatpush1.msra.mxu0 0.0
    %2089 = vmatprep.subr.mxu0 0.0
    %2090 = vmatpush1.msra.mxu0 0.0
    %2091 = vmatprep.subr.mxu0 0.0
    %2092 = vmatpush1.msra.mxu0 0.0
    %2093 = vmatprep.subr.mxu0 0.0
    %2094 = vmatpush1.msra.mxu0 0.0
    %2095 = vmatprep.subr.mxu0 0.0
    %2096 = vmatpush1.msra.mxu0 0.0
    %2097 = vmatprep.subr.mxu0 0.0
    %2098 = vmatpush1.msra.mxu0 0.0
    %2099 = vmatprep.subr.mxu0 0.0
    %2100 = vmatpush1.msra.mxu0 0.0
    %2101 = vmatprep.subr.mxu0 0.0
    %2102 = vmatpush1.msra.mxu0 0.0
    %2103 = vmatprep.subr.mxu0 0.0
    %2104 = vmatpush1.msra.mxu0 0.0
    %2105 = vmatprep.subr.mxu0 0.0
    %2106 = vmatpush1.msra.mxu0 0.0
    %2107 = vmatprep.mubr.f32.mxu0 0.0
    %2108 = vmatmul.mubr.f32.gmra.mrb[0].mxu0 %v2038
    %v2109 = vpop.f32.mrb[0].mxu0
    %v2110 = vadd.f32 0.0, %v2109
    %v2111 = vpop.f32.mrb[0].mxu0
    %2112 = vmatprep.mubr.f32.mxu0 0.0
    %2113 = vmatmul.mubr.f32.gmra.mrb[0].mxu0 %v2041
    %v2114 = vpop.f32.mrb[0].mxu0
    %v2115 = vadd.f32 0.0, %v2114
    %v2116 = vpop.f32.mrb[0].mxu0
    %2117 = vdwg.mxu0
    %v2118 = vmul.f32 %v2110, 0.5
    %v2119 = vmul.f32 %v2115, 0.5
    %v2120 = vmul.f32 %v2110, 0.70710677
    %v2121 = vmul.f32 %v2115, 0.70710677
    %v2122 = vand.u32 2147483647, %v2120
    %v2123 = vand.u32 2147483647, %v2121
    %v2124 = vmul.f32 %v2122, 0.3275911
    %v2125 = vmul.f32 %v2123, 0.3275911
    %v2126 = vadd.f32 %v2124, 1.0
    %v2127 = vadd.f32 %v2125, 1.0
    %v2128 = vrcp.pop %v2126
    %v2129 = vmul.f32 1.0, %v2128
    %v2130 = vrcp.pop %v2127
    %v2131 = vmul.f32 1.0, %v2130
    %v2132 = vmul.f32 %v2129, 1.0614054
    %v2133 = vmul.f32 %v2131, 1.0614054
    %v2134 = vadd.f32 %v2132, -1.4531521
    %v2135 = vadd.f32 %v2133, -1.4531521
    %v2136 = vmul.f32 %v2134, %v2129
    %v2137 = vmul.f32 %v2135, %v2131
    %v2138 = vadd.f32 %v2136, 1.4214138
    %v2139 = vadd.f32 %v2137, 1.4214138
    %v2140 = vmul.f32 %v2138, %v2129
    %v2141 = vmul.f32 %v2139, %v2131
    %v2142 = vadd.f32 %v2140, -0.28449672
    %v2143 = vadd.f32 %v2141, -0.28449672
    %v2144 = vmul.f32 %v2142, %v2129
    %v2145 = vmul.f32 %v2143, %v2131
    %v2146 = vadd.f32 %v2144, 0.2548296
    %v2147 = vadd.f32 %v2145, 0.2548296
    %v2148 = vmul.f32 %v2146, %v2129
    %v2149 = vmul.f32 %v2147, %v2131
    %v2150 = vsub.f32 0.0, %v2122
    %v2151 = vsub.f32 0.0, %v2123
    %v2152 = vmul.f32 %v2150, %v2122
    %v2153 = vmul.f32 %v2151, %v2123
    %v2154 = vmul.f32 %v2152, 1.442695
    %v2155 = vpow.pop %v2154
    %v2156 = vmul.f32 %v2153, 1.442695
    %v2157 = vpow.pop %v2156
    %v2158 = vmul.f32 %v2148, %v2155
    %v2159 = vmul.f32 %v2149, %v2157
    %v2160 = vsub.f32 1.0, %v2158
    %v2161 = vsub.f32 1.0, %v2159
    %vm2162 = vcmp.lt.f32.partialorder %v2120, 0.0
    %vm2163 = vcmp.lt.f32.partialorder %v2121, 0.0
    %v2164 = vsub.f32 0.0, %v2160
    %v2165 = vsub.f32 0.0, %v2161
    %v2166 = vsel %vm2162, %v2164, %v2160
    %v2167 = vsel %vm2163, %v2165, %v2161
    %v2168 = vadd.f32 %v2166, 1.0
    %v2169 = vadd.f32 %v2167, 1.0
    %v2170 = vmul.f32 %v2118, %v2168
    %v2171 = vmul.f32 %v2119, %v2169
    %v2172 = vld [vmem:[#allocation4 + $0x5] sm:$0x1]
    %v2174 = vlaneseq
    %v2175 = vshrl.u32 %v2174, 7
    %v2176 = vsub.s32 0, %v2175
    %v2177 = vrot.slane %v2172, %v2176
    %v2180 = vsel %vm364, %v2170, 0
    %v2183 = vsel %vm364, %v2171, 0
    %2185 = vmatprep.subr.mxu0 0.0
    %2186 = vmatpush1.msra.mxu0 %v72
    %2187 = vmatprep.subr.mxu0 0.0
    %2188 = vmatpush1.msra.mxu0 %v73
    %2189 = vmatprep.subr.mxu0 0.0
    %2190 = vmatpush1.msra.mxu0 0.0
    %2191 = vmatprep.subr.mxu0 0.0
    %2192 = vmatpush1.msra.mxu0 0.0
    %2193 = vmatprep.subr.mxu0 0.0
    %2194 = vmatpush1.msra.mxu0 0.0
    %2195 = vmatprep.subr.mxu0 0.0
    %2196 = vmatpush1.msra.mxu0 0.0
    %2197 = vmatprep.subr.mxu0 0.0
    %2198 = vmatpush1.msra.mxu0 0.0
    %2199 = vmatprep.subr.mxu0 0.0
    %2200 = vmatpush1.msra.mxu0 0.0
    %2201 = vmatprep.subr.mxu0 0.0
    %2202 = vmatpush1.msra.mxu0 0.0
    %2203 = vmatprep.subr.mxu0 0.0
    %2204 = vmatpush1.msra.mxu0 0.0
    %2205 = vmatprep.subr.mxu0 0.0
    %2206 = vmatpush1.msra.mxu0 0.0
    %2207 = vmatprep.subr.mxu0 0.0
    %2208 = vmatpush1.msra.mxu0 0.0
    %2209 = vmatprep.subr.mxu0 0.0
    %2210 = vmatpush1.msra.mxu0 0.0
    %2211 = vmatprep.subr.mxu0 0.0
    %2212 = vmatpush1.msra.mxu0 0.0
    %2213 = vmatprep.subr.mxu0 0.0
    %2214 = vmatpush1.msra.mxu0 0.0
    %2215 = vmatprep.subr.mxu0 0.0
    %2216 = vmatpush1.msra.mxu0 0.0
    %2217 = vmatprep.subr.mxu0 0.0
    %2218 = vmatpush1.msra.mxu0 0.0
    %2219 = vmatprep.subr.mxu0 0.0
    %2220 = vmatpush1.msra.mxu0 0.0
    %2221 = vmatprep.subr.mxu0 0.0
    %2222 = vmatpush1.msra.mxu0 0.0
    %2223 = vmatprep.subr.mxu0 0.0
    %2224 = vmatpush1.msra.mxu0 0.0
    %2225 = vmatprep.subr.mxu0 0.0
    %2226 = vmatpush1.msra.mxu0 0.0
    %2227 = vmatprep.subr.mxu0 0.0
    %2228 = vmatpush1.msra.mxu0 0.0
    %2229 = vmatprep.subr.mxu0 0.0
    %2230 = vmatpush1.msra.mxu0 0.0
    %2231 = vmatprep.subr.mxu0 0.0
    %2232 = vmatpush1.msra.mxu0 0.0
    %2233 = vmatprep.subr.mxu0 0.0
    %2234 = vmatpush1.msra.mxu0 0.0
    %2235 = vmatprep.subr.mxu0 0.0
    %2236 = vmatpush1.msra.mxu0 0.0
    %2237 = vmatprep.subr.mxu0 0.0
    %2238 = vmatpush1.msra.mxu0 0.0
    %2239 = vmatprep.subr.mxu0 0.0
    %2240 = vmatpush1.msra.mxu0 0.0
    %2241 = vmatprep.subr.mxu0 0.0
    %2242 = vmatpush1.msra.mxu0 0.0
    %2243 = vmatprep.subr.mxu0 0.0
    %2244 = vmatpush1.msra.mxu0 0.0
    %2245 = vmatprep.subr.mxu0 0.0
    %2246 = vmatpush1.msra.mxu0 0.0
    %2247 = vmatprep.subr.mxu0 0.0
    %2248 = vmatpush1.msra.mxu0 0.0
    %2249 = vmatprep.mubr.f32.mxu0 0.0
    %2250 = vmatmul.mubr.f32.gmra.mrb[0].mxu0 %v2180
    %v2251 = vpop.f32.mrb[0].mxu0
    %v2252 = vadd.f32 %v2177, %v2251
    %v2253 = vpop.f32.mrb[0].mxu0
    %2254 = vmatprep.mubr.f32.mxu0 0.0
    %2255 = vmatmul.mubr.f32.gmra.mrb[0].mxu0 %v2183
    %v2256 = vpop.f32.mrb[0].mxu0
    %v2257 = vadd.f32 %v2177, %v2256
    %v2258 = vpop.f32.mrb[0].mxu0
    %2259 = vdwg.mxu0
    %v2260 = vmul.f32 %v2252, 0.5
    %v2261 = vmul.f32 %v2257, 0.5
    %v2262 = vmul.f32 %v2252, 0.70710677
    %v2263 = vmul.f32 %v2257, 0.70710677
    %v2264 = vand.u32 2147483647, %v2262
    %v2265 = vand.u32 2147483647, %v2263
    %v2266 = vmul.f32 %v2264, 0.3275911
    %v2267 = vmul.f32 %v2265, 0.3275911
    %v2268 = vadd.f32 %v2266, 1.0
    %v2269 = vadd.f32 %v2267, 1.0
    %v2270 = vrcp.pop %v2268
    %v2271 = vmul.f32 1.0, %v2270
    %v2272 = vrcp.pop %v2269
    %v2273 = vmul.f32 1.0, %v2272
    %v2274 = vmul.f32 %v2271, 1.0614054
    %v2275 = vmul.f32 %v2273, 1.0614054
    %v2276 = vadd.f32 %v2274, -1.4531521
    %v2277 = vadd.f32 %v2275, -1.4531521
    %v2278 = vmul.f32 %v2276, %v2271
    %v2279 = vmul.f32 %v2277, %v2273
    %v2280 = vadd.f32 %v2278, 1.4214138
    %v2281 = vadd.f32 %v2279, 1.4214138
    %v2282 = vmul.f32 %v2280, %v2271
    %v2283 = vmul.f32 %v2281, %v2273
    %v2284 = vadd.f32 %v2282, -0.28449672
    %v2285 = vadd.f32 %v2283, -0.28449672
    %v2286 = vmul.f32 %v2284, %v2271
    %v2287 = vmul.f32 %v2285, %v2273
    %v2288 = vadd.f32 %v2286, 0.2548296
    %v2289 = vadd.f32 %v2287, 0.2548296
    %v2290 = vmul.f32 %v2288, %v2271
    %v2291 = vmul.f32 %v2289, %v2273
    %v2292 = vsub.f32 0.0, %v2264
    %v2293 = vsub.f32 0.0, %v2265
    %v2294 = vmul.f32 %v2292, %v2264
    %v2295 = vmul.f32 %v2293, %v2265
    %v2296 = vmul.f32 %v2294, 1.442695
    %v2297 = vpow.pop %v2296
    %v2298 = vmul.f32 %v2295, 1.442695
    %v2299 = vpow.pop %v2298
    %v2300 = vmul.f32 %v2290, %v2297
    %v2301 = vmul.f32 %v2291, %v2299
    %v2302 = vsub.f32 1.0, %v2300
    %v2303 = vsub.f32 1.0, %v2301
    %vm2304 = vcmp.lt.f32.partialorder %v2262, 0.0
    %vm2305 = vcmp.lt.f32.partialorder %v2263, 0.0
    %v2306 = vsub.f32 0.0, %v2302
    %v2307 = vsub.f32 0.0, %v2303
    %v2308 = vsel %vm2304, %v2306, %v2302
    %v2309 = vsel %vm2305, %v2307, %v2303
    %v2310 = vadd.f32 %v2308, 1.0
    %v2311 = vadd.f32 %v2309, 1.0
    %v2312 = vmul.f32 %v2260, %v2310
    %v2313 = vmul.f32 %v2261, %v2311
    %v2314 = vld [vmem:[#allocation4 + $0x3] sm:$0x1]
    %v2315 = vld [vmem:[#allocation4 + $0x4] sm:$0x1]
    %2316 = vadd.xlane.f32.xlu0 %v2312
    %v2317 = vpop.xlane.xlu0 %2316
    %2318 = vadd.xlane.f32.xlu0 %v2313
    %v2319 = vpop.xlane.xlu0 %2318
    %v2320 = vrcp.pop 128.0
    %v2321 = vmul.f32 %v2317, %v2320
    %v2322 = vmul.f32 %v2319, %v2320
    %v2323 = vsub.f32 %v2312, %v2321
    %v2324 = vsub.f32 %v2313, %v2322
    %v2325 = vmul.f32 %v2323, %v2323
    %v2326 = vmul.f32 %v2324, %v2324
    %2327 = vadd.xlane.f32.xlu0 %v2325
    %v2328 = vpop.xlane.xlu0 %2327
    %2329 = vadd.xlane.f32.xlu0 %v2326
    %v2330 = vpop.xlane.xlu0 %2329
    %v2331 = vmul.f32 %v2328, %v2320
    %v2332 = vmul.f32 %v2330, %v2320
    %v2333 = vadd.f32 %v2331, 1e-05
    %v2334 = vadd.f32 %v2332, 1e-05
    %v2335 = vrsqrt.pop %v2333
    %v2336 = vrsqrt.pop %v2334
    %v2337 = vmul.f32 %v2323, %v2335
    %v2338 = vmul.f32 %v2324, %v2336
    %v2340 = vlaneseq
    %v2341 = vshrl.u32 %v2340, 7
    %v2342 = vsub.s32 0, %v2341
    %v2343 = vrot.slane %v2314, %v2342
    %v2345 = vmul.f32 %v2337, %v2343
    %v2346 = vmul.f32 %v2338, %v2343
    %v2348 = vlaneseq
    %v2349 = vshrl.u32 %v2348, 7
    %v2350 = vsub.s32 0, %v2349
    %v2351 = vrot.slane %v2315, %v2350
    %v2353 = vadd.f32 %v2345, %v2351
    %v2354 = vadd.f32 %v2346, %v2351
    %v2355 = vld [vmem:[%s3] sm:$0xff]
    %v2356 = vld [vmem:[%s3 + $0x8] sm:$0xff]
    %v2357 = vld [vmem:[%s3 + $0x10] sm:$0xff]
    %v2358 = vld [vmem:[%s3 + $0x18] sm:$0xff]
    %v2359 = vld [vmem:[%s3 + $0x20] sm:$0xff]
    %v2360 = vld [vmem:[%s3 + $0x28] sm:$0xff]
    %v2361 = vld [vmem:[%s3 + $0x30] sm:$0xff]
    %v2362 = vld [vmem:[%s3 + $0x38] sm:$0xff]
    %v2363 = vld [vmem:[%s3 + $0x40] sm:$0xff]
    %v2364 = vld [vmem:[%s3 + $0x48] sm:$0xff]
    %v2365 = vld [vmem:[%s3 + $0x50] sm:$0xff]
    %v2366 = vld [vmem:[%s3 + $0x58] sm:$0xff]
    %v2367 = vld [vmem:[%s3 + $0x60] sm:$0xff]
    %v2368 = vld [vmem:[%s3 + $0x68] sm:$0xff]
    %v2369 = vld [vmem:[%s3 + $0x70] sm:$0xff]
    %v2370 = vld [vmem:[%s3 + $0x78] sm:$0xff]
    %2371 = vmatprep.subr.mxu0 0.0
    %2372 = vmatpush1.msra.mxu0 %v2355
    %2373 = vmatprep.subr.mxu0 0.0
    %2374 = vmatpush1.msra.mxu0 %v2356
    %2375 = vmatprep.subr.mxu0 0.0
    %2376 = vmatpush1.msra.mxu0 %v2357
    %2377 = vmatprep.subr.mxu0 0.0
    %2378 = vmatpush1.msra.mxu0 %v2358
    %2379 = vmatprep.subr.mxu0 0.0
    %2380 = vmatpush1.msra.mxu0 %v2359
    %2381 = vmatprep.subr.mxu0 0.0
    %2382 = vmatpush1.msra.mxu0 %v2360
    %2383 = vmatprep.subr.mxu0 0.0
    %2384 = vmatpush1.msra.mxu0 %v2361
    %2385 = vmatprep.subr.mxu0 0.0
    %2386 = vmatpush1.msra.mxu0 %v2362
    %2387 = vmatprep.subr.mxu0 0.0
    %2388 = vmatpush1.msra.mxu0 %v2363
    %2389 = vmatprep.subr.mxu0 0.0
    %2390 = vmatpush1.msra.mxu0 %v2364
    %2391 = vmatprep.subr.mxu0 0.0
    %2392 = vmatpush1.msra.mxu0 %v2365
    %2393 = vmatprep.subr.mxu0 0.0
    %2394 = vmatpush1.msra.mxu0 %v2366
    %2395 = vmatprep.subr.mxu0 0.0
    %2396 = vmatpush1.msra.mxu0 %v2367
    %2397 = vmatprep.subr.mxu0 0.0
    %2398 = vmatpush1.msra.mxu0 %v2368
    %2399 = vmatprep.subr.mxu0 0.0
    %2400 = vmatpush1.msra.mxu0 %v2369
    %2401 = vmatprep.subr.mxu0 0.0
    %2402 = vmatpush1.msra.mxu0 %v2370
    %2403 = vmatprep.subr.mxu0 0.0
    %2404 = vmatpush1.msra.mxu0 0.0
    %2405 = vmatprep.subr.mxu0 0.0
    %2406 = vmatpush1.msra.mxu0 0.0
    %2407 = vmatprep.subr.mxu0 0.0
    %2408 = vmatpush1.msra.mxu0 0.0
    %2409 = vmatprep.subr.mxu0 0.0
    %2410 = vmatpush1.msra.mxu0 0.0
    %2411 = vmatprep.subr.mxu0 0.0
    %2412 = vmatpush1.msra.mxu0 0.0
    %2413 = vmatprep.subr.mxu0 0.0
    %2414 = vmatpush1.msra.mxu0 0.0
    %2415 = vmatprep.subr.mxu0 0.0
    %2416 = vmatpush1.msra.mxu0 0.0
    %2417 = vmatprep.subr.mxu0 0.0
    %2418 = vmatpush1.msra.mxu0 0.0
    %2419 = vmatprep.subr.mxu0 0.0
    %2420 = vmatpush1.msra.mxu0 0.0
    %2421 = vmatprep.subr.mxu0 0.0
    %2422 = vmatpush1.msra.mxu0 0.0
    %2423 = vmatprep.subr.mxu0 0.0
    %2424 = vmatpush1.msra.mxu0 0.0
    %2425 = vmatprep.subr.mxu0 0.0
    %2426 = vmatpush1.msra.mxu0 0.0
    %2427 = vmatprep.subr.mxu0 0.0
    %2428 = vmatpush1.msra.mxu0 0.0
    %2429 = vmatprep.subr.mxu0 0.0
    %2430 = vmatpush1.msra.mxu0 0.0
    %2431 = vmatprep.subr.mxu0 0.0
    %2432 = vmatpush1.msra.mxu0 0.0
    %2433 = vmatprep.subr.mxu0 0.0
    %2434 = vmatpush1.msra.mxu0 0.0
    %2435 = vmatprep.mubr.f32.mxu0 0.0
    %2436 = vmatmul.mubr.f32.gmra.mrb[0].mxu0 %v2353
    %v2437 = vpop.f32.mrb[0].mxu0
    %v2438 = vadd.f32 0.0, %v2437
    %v2439 = vpop.f32.mrb[0].mxu0
    %2440 = vmatprep.mubr.f32.mxu0 0.0
    %2441 = vmatmul.mubr.f32.gmra.mrb[0].mxu0 %v2354
    %v2442 = vpop.f32.mrb[0].mxu0
    %v2443 = vadd.f32 0.0, %v2442
    %v2444 = vpop.f32.mrb[0].mxu0
    %2445 = vdwg.mxu0
    %v2446 = vmul.f32 %v2438, 0.5
    %v2447 = vmul.f32 %v2443, 0.5
    %v2448 = vmul.f32 %v2438, 0.70710677
    %v2449 = vmul.f32 %v2443, 0.70710677
    %v2450 = vand.u32 2147483647, %v2448
    %v2451 = vand.u32 2147483647, %v2449
    %v2452 = vmul.f32 %v2450, 0.3275911
    %v2453 = vmul.f32 %v2451, 0.3275911
    %v2454 = vadd.f32 %v2452, 1.0
    %v2455 = vadd.f32 %v2453, 1.0
    %v2456 = vrcp.pop %v2454
    %v2457 = vmul.f32 1.0, %v2456
    %v2458 = vrcp.pop %v2455
    %v2459 = vmul.f32 1.0, %v2458
    %v2460 = vmul.f32 %v2457, 1.0614054
    %v2461 = vmul.f32 %v2459, 1.0614054
    %v2462 = vadd.f32 %v2460, -1.4531521
    %v2463 = vadd.f32 %v2461, -1.4531521
    %v2464 = vmul.f32 %v2462, %v2457
    %v2465 = vmul.f32 %v2463, %v2459
    %v2466 = vadd.f32 %v2464, 1.4214138
    %v2467 = vadd.f32 %v2465, 1.4214138
    %v2468 = vmul.f32 %v2466, %v2457
    %v2469 = vmul.f32 %v2467, %v2459
    %v2470 = vadd.f32 %v2468, -0.28449672
    %v2471 = vadd.f32 %v2469, -0.28449672
    %v2472 = vmul.f32 %v2470, %v2457
    %v2473 = vmul.f32 %v2471, %v2459
    %v2474 = vadd.f32 %v2472, 0.2548296
    %v2475 = vadd.f32 %v2473, 0.2548296
    %v2476 = vmul.f32 %v2474, %v2457
    %v2477 = vmul.f32 %v2475, %v2459
    %v2478 = vsub.f32 0.0, %v2450
    %v2479 = vsub.f32 0.0, %v2451
    %v2480 = vmul.f32 %v2478, %v2450
    %v2481 = vmul.f32 %v2479, %v2451
    %v2482 = vmul.f32 %v2480, 1.442695
    %v2483 = vpow.pop %v2482
    %v2484 = vmul.f32 %v2481, 1.442695
    %v2485 = vpow.pop %v2484
    %v2486 = vmul.f32 %v2476, %v2483
    %v2487 = vmul.f32 %v2477, %v2485
    %v2488 = vsub.f32 1.0, %v2486
    %v2489 = vsub.f32 1.0, %v2487
    %vm2490 = vcmp.lt.f32.partialorder %v2448, 0.0
    %vm2491 = vcmp.lt.f32.partialorder %v2449, 0.0
    %v2492 = vsub.f32 0.0, %v2488
    %v2493 = vsub.f32 0.0, %v2489
    %v2494 = vsel %vm2490, %v2492, %v2488
    %v2495 = vsel %vm2491, %v2493, %v2489
    %v2496 = vadd.f32 %v2494, 1.0
    %v2497 = vadd.f32 %v2495, 1.0
    %v2498 = vmul.f32 %v2446, %v2496
    %v2499 = vmul.f32 %v2447, %v2497
    %2502 = vrot.lane.b32.xlu0 %v74, 64
    %v2503 = vpop.permute.xlu0 %2502
    %2504 = vrot.lane.b32.xlu0 %v75, 64
    %v2505 = vpop.permute.xlu0 %2504
    %2508 = vrot.lane.b32.xlu0 %v1888, 64
    %v2509 = vpop.permute.xlu0 %2508
    %v2512 = vsel %vm364, %v2498, 0
    %v2515 = vsel %vm364, %v2499, 0
    %2517 = vmatprep.subr.mxu0 0.0
    %2518 = vmatpush1.msra.mxu0 %v2503
    %2519 = vmatprep.subr.mxu0 0.0
    %2520 = vmatpush1.msra.mxu0 %v2505
    %2521 = vmatprep.subr.mxu0 0.0
    %2522 = vmatpush1.msra.mxu0 0.0
    %2523 = vmatprep.subr.mxu0 0.0
    %2524 = vmatpush1.msra.mxu0 0.0
    %2525 = vmatprep.subr.mxu0 0.0
    %2526 = vmatpush1.msra.mxu0 0.0
    %2527 = vmatprep.subr.mxu0 0.0
    %2528 = vmatpush1.msra.mxu0 0.0
    %2529 = vmatprep.subr.mxu0 0.0
    %2530 = vmatpush1.msra.mxu0 0.0
    %2531 = vmatprep.subr.mxu0 0.0
    %2532 = vmatpush1.msra.mxu0 0.0
    %2533 = vmatprep.subr.mxu0 0.0
    %2534 = vmatpush1.msra.mxu0 0.0
    %2535 = vmatprep.subr.mxu0 0.0
    %2536 = vmatpush1.msra.mxu0 0.0
    %2537 = vmatprep.subr.mxu0 0.0
    %2538 = vmatpush1.msra.mxu0 0.0
    %2539 = vmatprep.subr.mxu0 0.0
    %2540 = vmatpush1.msra.mxu0 0.0
    %2541 = vmatprep.subr.mxu0 0.0
    %2542 = vmatpush1.msra.mxu0 0.0
    %2543 = vmatprep.subr.mxu0 0.0
    %2544 = vmatpush1.msra.mxu0 0.0
    %2545 = vmatprep.subr.mxu0 0.0
    %2546 = vmatpush1.msra.mxu0 0.0
    %2547 = vmatprep.subr.mxu0 0.0
    %2548 = vmatpush1.msra.mxu0 0.0
    %2549 = vmatprep.subr.mxu0 0.0
    %2550 = vmatpush1.msra.mxu0 0.0
    %2551 = vmatprep.subr.mxu0 0.0
    %2552 = vmatpush1.msra.mxu0 0.0
    %2553 = vmatprep.subr.mxu0 0.0
    %2554 = vmatpush1.msra.mxu0 0.0
    %2555 = vmatprep.subr.mxu0 0.0
    %2556 = vmatpush1.msra.mxu0 0.0
    %2557 = vmatprep.subr.mxu0 0.0
    %2558 = vmatpush1.msra.mxu0 0.0
    %2559 = vmatprep.subr.mxu0 0.0
    %2560 = vmatpush1.msra.mxu0 0.0
    %2561 = vmatprep.subr.mxu0 0.0
    %2562 = vmatpush1.msra.mxu0 0.0
    %2563 = vmatprep.subr.mxu0 0.0
    %2564 = vmatpush1.msra.mxu0 0.0
    %2565 = vmatprep.subr.mxu0 0.0
    %2566 = vmatpush1.msra.mxu0 0.0
    %2567 = vmatprep.subr.mxu0 0.0
    %2568 = vmatpush1.msra.mxu0 0.0
    %2569 = vmatprep.subr.mxu0 0.0
    %2570 = vmatpush1.msra.mxu0 0.0
    %2571 = vmatprep.subr.mxu0 0.0
    %2572 = vmatpush1.msra.mxu0 0.0
    %2573 = vmatprep.subr.mxu0 0.0
    %2574 = vmatpush1.msra.mxu0 0.0
    %2575 = vmatprep.subr.mxu0 0.0
    %2576 = vmatpush1.msra.mxu0 0.0
    %2577 = vmatprep.subr.mxu0 0.0
    %2578 = vmatpush1.msra.mxu0 0.0
    %2579 = vmatprep.subr.mxu0 0.0
    %2580 = vmatpush1.msra.mxu0 0.0
    %2581 = vmatprep.mubr.f32.mxu0 0.0
    %2582 = vmatmul.mubr.f32.gmra.mrb[0].mxu0 %v2512
    %v2583 = vpop.f32.mrb[0].mxu0
    %v2584 = vadd.f32 %v2509, %v2583
    %v2585 = vpop.f32.mrb[0].mxu0
    %2586 = vmatprep.mubr.f32.mxu0 0.0
    %2587 = vmatmul.mubr.f32.gmra.mrb[0].mxu0 %v2515
    %v2588 = vpop.f32.mrb[0].mxu0
    %v2589 = vadd.f32 %v2509, %v2588
    %v2590 = vpop.f32.mrb[0].mxu0
    %2591 = vdwg.mxu0
    %v2592 = vadd.f32 %v1971, %v2584
    %v2593 = vadd.f32 %v1972, %v2589
    %2594 = vrot.lane.b32.xlu0 %v251, 64
    %v2595 = vpop.permute.xlu0 %2594
    %2596 = vrot.lane.b32.xlu0 %v252, 64
    %v2597 = vpop.permute.xlu0 %2596
    %2600 = vrot.lane.b32.xlu0 %v1881, 112
    %v2601 = vpop.permute.xlu0 %2600
    %2602 = vrot.lane.b32.xlu0 %v1882, 112
    %v2603 = vpop.permute.xlu0 %2602
    %2606 = vrot.lane.b32.xlu0 %v2498, 16
    %v2607 = vpop.permute.xlu0 %2606
    %2608 = vrot.lane.b32.xlu0 %v2499, 16
    %v2609 = vpop.permute.xlu0 %2608
    %v2612 = vsel %vm77, %v2592, %v2595
    %v2613 = vsel %vm77, %v2593, %v2597
    %vm2614 = vcmask 916480
    %v2615 = vsel %vm2614, %v2612, %v2601
    %v2616 = vsel %vm2614, %v2613, %v2603
    %v2617 = vsel %vm364, %v2170, %v2607
    %v2618 = vsel %vm364, %v2171, %v2609
    %v2619 = vsel %vm1711, %v2617, 0.0
    %v2620 = vsel %vm1711, %v2618, 0.0
    %2621 = vst [vmem:[%s6] sm:$0xff] %v2615
    %2622 = vst [vmem:[%s6 + $0x8] sm:$0xff] %v2619
    %2623 = vst [vmem:[%s6 + $0x10] sm:$0xff] %v2616
    %2624 = vst [vmem:[%s6 + $0x18] sm:$0xff] %v2620
    // Predicated region
    $region38: #{block_forward.1} parent=1 // pred_check
      _
    $region39: #{block_forward.1} parent=1 // pred_check_branch
      %2626 = sbr.rel (0) target = $region41
    $region40: #{block_forward.1} parent=1 // pred_region
      _
    $region41: #{block_forward.1} parent=1 // pred_fallthru
      _
    // Predicated region
    $region42: #{block_forward.1} parent=1 // pred_check
      _
    $region43: #{block_forward.1} parent=1 // pred_check_branch
      %2628 = sbr.rel (0) target = $region45
    $region44: #{block_forward.1} parent=1 // pred_region
      _
    $region45: #{block_forward.1} parent=1 // pred_fallthru
      _
    %2629 = vsyncpa [#allocation3], 1
    %2630 = vsyncpa [#allocation5], 1

</llo_original>
